<compile_context>
chip_gen: v7x
topology: tpu7x:2x2x1
jax: 0.10.0
libtpu: 0.0.40
codegen_flags: <defaults>
</compile_context>

<pallas_src>
from functools import partial

import jax
import jax.numpy as jnp
from jax.experimental import pallas as pl
from jax.experimental.pallas import tpu as pltpu

EPS = 1e-5
DIM_P = 128    # lane-padded feature width for all FC features
N_MATS = 5     # w1, w2, w3, pw1, pw2 stacked row-wise (each 128x128)
N_VECS = 8     # g1, bt1, g2, bt2, b3, pg1, pbt1, pb2 (each 1x128)


# ----------------------------------------------------------------------------
# Pallas kernel
# ----------------------------------------------------------------------------
def _bn_train(y, gamma, beta):
    """BatchNorm1d training mode: per-feature batch stats over axis 0,
    biased variance, eps=1e-5, folded into a single scale/shift FMA."""
    mean = jnp.mean(y, axis=0, keepdims=True)
    var = jnp.mean(jnp.square(y - mean), axis=0, keepdims=True)
    scale = jax.lax.rsqrt(var + EPS) * gamma
    return y * scale + (beta - mean * scale)


def _branch(x, mats, vecs):
    """Projector (3 layers) + predictor (2 layers) for one branch / one view.
    mats: (5*128, 128) packed weight slab; vecs: (8, 128) packed BN/bias rows."""
    w1 = mats[0 * DIM_P:1 * DIM_P]
    w2 = mats[1 * DIM_P:2 * DIM_P]
    w3 = mats[2 * DIM_P:3 * DIM_P]
    pw1 = mats[3 * DIM_P:4 * DIM_P]
    pw2 = mats[4 * DIM_P:5 * DIM_P]
    g1, bt1 = vecs[0:1], vecs[1:2]
    g2, bt2 = vecs[2:3], vecs[3:4]
    b3 = vecs[4:5]
    pg1, pbt1 = vecs[5:6], vecs[6:7]
    pb2 = vecs[7:8]

    # projector: Linear(bias=False) -> BN -> ReLU
    h = jnp.dot(x, w1, preferred_element_type=jnp.float32)
    h = jnp.maximum(_bn_train(h, g1, bt1), 0.0)
    # projector: Linear(bias=False) -> BN -> ReLU
    h = jnp.dot(h, w2, preferred_element_type=jnp.float32)
    h = jnp.maximum(_bn_train(h, g2, bt2), 0.0)
    # projector: Linear(+bias) -> BN(affine=False)
    h = jnp.dot(h, w3, preferred_element_type=jnp.float32) + b3
    zf = _bn_train(h, 1.0, 0.0)

    # predictor: Linear(bias=False) -> BN -> ReLU -> Linear(+bias)
    q = jnp.dot(zf, pw1, preferred_element_type=jnp.float32)
    q = jnp.maximum(_bn_train(q, pg1, pbt1), 0.0)
    p = jnp.dot(q, pw2, preferred_element_type=jnp.float32) + pb2
    return zf, p


def _fused_kernel(patch_ref, wc_ref, mats_ref, vecs_ref,
                  enc_ref, zf_ref, p_ref):
    # patch_ref: (1, N*H*W, 9*C)  im2col patches for this view
    # wc_ref:    (9*C, 128)       conv stem weight, output dim zero-padded
    # mats_ref:  (2, 640, 128)    packed branch matrices (img, aug)
    # vecs_ref:  (2, 8, 128)      packed branch BN/bias rows (img, aug)
    # enc_ref:   (1, N, 128)      pooled encoder features for this view
    # zf_ref:    (2, 1, N, 128)   projector outputs [branch, view]
    # p_ref:     (2, 1, N, 128)   predictor outputs [branch, view]

    # --- encoder stem: conv-as-matmul + ReLU + global average pool ---
    y = jnp.dot(patch_ref[0], wc_ref[...], preferred_element_type=jnp.float32)
    y = jnp.maximum(y, 0.0)
    n = enc_ref.shape[1]
    hw = y.shape[0] // n
    enc = jnp.mean(y.reshape(n, hw, DIM_P), axis=1)
    enc_ref[0] = enc.astype(enc_ref.dtype)

    # --- both branches (0 = img, 1 = aug), unrolled; BN stats per view ---
    for br in range(2):
        zf, p = _branch(enc, mats_ref[br], vecs_ref[br])
        zf_ref[br, 0] = zf.astype(zf_ref.dtype)
        p_ref[br, 0] = p.astype(p_ref.dtype)


# ----------------------------------------------------------------------------
# Wrapper around pallas_call
# ----------------------------------------------------------------------------
def fused_forward(patches, wc, mats, vecs, n):
    """patches: (2, N*H*W, 9*C) -> enc (2,N,128), zf (2,2,N,128), p (2,2,N,128)."""
    _, nhw, kc = patches.shape
    return pl.pallas_call(
        _fused_kernel,
        grid=(2,),
        out_shape=(
            jax.ShapeDtypeStruct((2, n, DIM_P), jnp.float32),
            jax.ShapeDtypeStruct((2, 2, n, DIM_P), jnp.float32),
            jax.ShapeDtypeStruct((2, 2, n, DIM_P), jnp.float32),
        ),
        in_specs=[
            pl.BlockSpec((1, nhw, kc), lambda v: (v, 0, 0)),
            pl.BlockSpec((kc, DIM_P), lambda v: (0, 0)),
            pl.BlockSpec((2, N_MATS * DIM_P, DIM_P), lambda v: (0, 0, 0)),
            pl.BlockSpec((2, N_VECS, DIM_P), lambda v: (0, 0, 0)),
        ],
        out_specs=(
            pl.BlockSpec((1, n, DIM_P), lambda v: (v, 0, 0)),
            pl.BlockSpec((2, 1, n, DIM_P), lambda v: (0, v, 0, 0)),
            pl.BlockSpec((2, 1, n, DIM_P), lambda v: (0, v, 0, 0)),
        ),
        compiler_params=pltpu.CompilerParams(
            dimension_semantics=("parallel",)),
    )(patches, wc, mats, vecs)


# ----------------------------------------------------------------------------
# im2col (wrapper-side glue)
# ----------------------------------------------------------------------------
def im2col_3x3(x):
    """x: (B, C, H, W) NCHW -> (B, H*W, 9*C); patch feature order (kh, kw, c)."""
    b, c, h, w = x.shape
    xp = jnp.pad(x, ((0, 0), (0, 0), (1, 1), (1, 1)))
    cols = [xp[:, :, dh:dh + h, dw:dw + w] for dh in range(3) for dw in range(3)]
    patches = jnp.stack(cols, axis=1)                        # (B, 9, C, H, W)
    return patches.transpose(0, 3, 4, 1, 2).reshape(b, h * w, 9 * c)


# ----------------------------------------------------------------------------
# Parameter construction (mirrors the module's __init__ shapes)
# ----------------------------------------------------------------------------
def _normal(key, shape, scale=0.05):
    return scale * jax.random.normal(key, shape, dtype=jnp.float32)


def make_projector(key, in_dim, dim):
    k1, k2, k3, k4 = jax.random.split(key, 4)
    return dict(
        w1=_normal(k1, (in_dim, dim)),                  # Linear(in_dim, dim, bias=False)
        g1=jnp.ones((dim,)), bt1=jnp.zeros((dim,)),     # BatchNorm1d(dim)
        w2=_normal(k2, (dim, dim)),                     # Linear(dim, dim, bias=False)
        g2=jnp.ones((dim,)), bt2=jnp.zeros((dim,)),     # BatchNorm1d(dim)
        w3=_normal(k3, (dim, dim)), b3=_normal(k4, (dim,)),   # Linear(dim, dim)
        # final BatchNorm1d(dim, affine=False): no learnable gamma/beta
    )


def make_predictor(key, dim, pred_dim):
    k1, k2, k3 = jax.random.split(key, 3)
    return dict(
        w1=_normal(k1, (dim, pred_dim)),                # Linear(dim, pred_dim, bias=False)
        g1=jnp.ones((pred_dim,)), bt1=jnp.zeros((pred_dim,)),  # BatchNorm1d(pred_dim)
        w2=_normal(k2, (pred_dim, dim)), b2=_normal(k3, (dim,)),  # Linear(pred_dim, dim)
    )


def _pad_mat(w):
    k, m = w.shape
    return jnp.pad(w, ((0, DIM_P - k), (0, DIM_P - m)))


def _pad_row(v, fill=0.0):
    return jnp.pad(v, (0, DIM_P - v.shape[0]),
                   constant_values=fill).reshape(1, DIM_P)


def pack_branch(proj, pred, row_offset):
    """Pack one branch's weights into a (640,128) matrix slab and (8,128)
    vector slab.  w1 is placed at `row_offset` so the kernel consumes the full
    padded encoder output and the zero rows of w1 select the img/aug slice."""
    in_dim, dim = proj["w1"].shape
    w1 = jnp.zeros((DIM_P, DIM_P), jnp.float32)
    w1 = w1.at[row_offset:row_offset + in_dim, :dim].set(proj["w1"])
    mats = jnp.concatenate(
        [w1, _pad_mat(proj["w2"]), _pad_mat(proj["w3"]),
         _pad_mat(pred["w1"]), _pad_mat(pred["w2"])], axis=0)
    vecs = jnp.concatenate(
        [_pad_row(proj["g1"], 1.0), _pad_row(proj["bt1"]),
         _pad_row(proj["g2"], 1.0), _pad_row(proj["bt2"]),
         _pad_row(proj["b3"]),
         _pad_row(pred["g1"], 1.0), _pad_row(pred["bt1"]),
         _pad_row(pred["b2"])], axis=0)
    return mats, vecs


def prepare_params(params, size1):
    conv_w = params["conv_w"]                         # (O, C, 3, 3) torch OIHW
    prev_dim, c = conv_w.shape[0], conv_w.shape[1]
    # weight rows ordered (kh, kw, c) to match im2col_3x3 patch feature order
    w_mat = conv_w.transpose(2, 3, 1, 0).reshape(9 * c, prev_dim)
    w_mat = jnp.pad(w_mat, ((0, 0), (0, DIM_P - prev_dim)))
    mats_img, vecs_img = pack_branch(params["proj_img"], params["pred_img"], 0)
    mats_aug, vecs_aug = pack_branch(params["proj_aug"], params["pred_aug"], size1)
    return dict(
        w_mat=w_mat,
        mats=jnp.stack([mats_img, mats_aug]),          # (2, 640, 128)
        vecs=jnp.stack([vecs_img, vecs_aug]),          # (2, 8, 128)
    )


# ----------------------------------------------------------------------------
# DRL_Simsiam forward
# ----------------------------------------------------------------------------
def drl_simsiam_forward(prep, cfg, im_aug1, im_aug2):
    n, c, h, w = im_aug1.shape
    size1, prev_dim, dim = cfg["size1"], cfg["prev_dim"], cfg["dim"]

    # Batch both augmented views and run the single fused kernel.
    x = jnp.concatenate([im_aug1, im_aug2], axis=0)          # (2N, C, H, W)
    patches = im2col_3x3(x).reshape(2, n * h * w, 9 * c)
    enc, zf, p = fused_forward(patches, prep["w_mat"], prep["mats"],
                               prep["vecs"], n)

    z1_sep_img = enc[0, :, :size1]
    z1_sep_aug = enc[0, :, size1:prev_dim]
    z2_sep_img = enc[1, :, :size1]
    z2_sep_aug = enc[1, :, size1:prev_dim]

    z1_feature_img, z2_feature_img = zf[0, 0, :, :dim], zf[0, 1, :, :dim]
    z1_feature_aug, z2_feature_aug = zf[1, 0, :, :dim], zf[1, 1, :, :dim]
    p1_img, p2_img = p[0, 0, :, :dim], p[0, 1, :, :dim]
    p1_aug, p2_aug = p[1, 0, :, :dim], p[1, 1, :, :dim]

    sg = jax.lax.stop_gradient  # .detach()
    return (sg(z1_feature_img), sg(z2_feature_img),
            sg(z1_feature_aug), sg(z2_feature_aug),
            p1_img, p2_img, p1_aug, p2_aug,
            z1_sep_img, z1_sep_aug, z2_sep_img, z2_sep_aug)


# ----------------------------------------------------------------------------
# Main
# ----------------------------------------------------------------------------
if __name__ == "__main__":
    # Small, module-consistent configuration
    N, C, H, W = 8, 4, 16, 16             # batch >= 2 needed for BatchNorm1d
    prev_dim = 32                          # args.last_dim analogue
    hp1 = 0.5                              # args.hp1
    size1 = int(round(prev_dim * hp1))     # 16
    size2 = prev_dim - size1               # 16
    dim, pred_dim = 64, 32                 # SimSiam dim / pred_dim (scaled down)
    assert max(prev_dim, dim, pred_dim) <= DIM_P

    key = jax.random.PRNGKey(0)
    k_in1, k_in2, k_conv, k_pi, k_pa, k_qi, k_qa = jax.random.split(key, 7)

    params = dict(
        conv_w=_normal(k_conv, (prev_dim, C, 3, 3)),   # encoder stem conv (OIHW)
        proj_img=make_projector(k_pi, size1, dim),
        proj_aug=make_projector(k_pa, size2, dim),
        pred_img=make_predictor(k_qi, dim, pred_dim),
        pred_aug=make_predictor(k_qa, dim, pred_dim),
    )
    prep = prepare_params(params, size1)
    cfg = dict(size1=size1, prev_dim=prev_dim, dim=dim)

    im_aug1 = jax.random.normal(k_in1, (N, C, H, W), dtype=jnp.float32)
    im_aug2 = jax.random.normal(k_in2, (N, C, H, W), dtype=jnp.float32)

    fwd = jax.jit(partial(drl_simsiam_forward, prep, cfg))
    outputs = jax.block_until_ready(fwd(im_aug1, im_aug2))

    # basic sanity on shapes / values
    assert outputs[0].shape == (N, dim)        # z1_feature_img
    assert outputs[4].shape == (N, dim)        # p1_img
    assert outputs[8].shape == (N, size1)      # z1_sep_img
    assert outputs[9].shape == (N, size2)      # z1_sep_aug
    assert all(bool(jnp.all(jnp.isfinite(o))) for o in outputs)
    # z*_feature_* come out of an affine-free BatchNorm1d -> per-feature batch
    # mean must be ~0 (holds regardless of matmul precision).
    for zf_out in outputs[:4]:
        assert bool(jnp.all(jnp.abs(jnp.mean(zf_out, axis=0)) < 1e-2))

    print("KERNEL_OK")
</pallas_src>

<mosaic_0001>
module attributes {stable_mosaic.version = 11 : i64} {
  func.func @_fused_kernel(%arg0: i32, %arg1: memref<1x2048x36xf32, #tpu.memory_space<vmem>>, %arg2: memref<36x128xf32, #tpu.memory_space<vmem>>, %arg3: memref<2x640x128xf32, #tpu.memory_space<vmem>>, %arg4: memref<2x8x128xf32, #tpu.memory_space<vmem>>, %arg5: memref<1x8x128xf32, #tpu.memory_space<vmem>>, %arg6: memref<2x1x8x128xf32, #tpu.memory_space<vmem>>, %arg7: memref<2x1x8x128xf32, #tpu.memory_space<vmem>>) attributes {dimension_semantics = [#tpu.dimension_semantics<parallel>], iteration_bounds = array<i64: 2>, scalar_prefetch = 0 : i64, scratch_operands = 0 : i64, tpu.core_type = #tpu.core_type<tc>, window_params = [{transform_indices = @transform_0, window_bounds = array<i64: 1, 2048, 36>}, {pipeline_mode = #tpu.pipeline_mode<synchronous>, transform_indices = @transform_1, window_bounds = array<i64: 36, 128>}, {pipeline_mode = #tpu.pipeline_mode<synchronous>, transform_indices = @transform_2, window_bounds = array<i64: 2, 640, 128>}, {pipeline_mode = #tpu.pipeline_mode<synchronous>, transform_indices = @transform_3, window_bounds = array<i64: 2, 8, 128>}, {transform_indices = @transform_4, window_bounds = array<i64: 1, 8, 128>}, {transform_indices = @transform_5, window_bounds = array<i64: 2, 1, 8, 128>}, {transform_indices = @transform_6, window_bounds = array<i64: 2, 1, 8, 128>}]} {
    %c0 = arith.constant 0 : index
    %c0_0 = arith.constant 0 : index
    %c0_1 = arith.constant 0 : index
    %0 = vector.load %arg1[%c0, %c0_0, %c0_1] : memref<1x2048x36xf32, #tpu.memory_space<vmem>>, vector<1x2048x36xf32>
    %1 = vector.shape_cast %0 : vector<1x2048x36xf32> to vector<2048x36xf32>
    %c0_2 = arith.constant 0 : index
    %c0_3 = arith.constant 0 : index
    %2 = vector.load %arg2[%c0_2, %c0_3] : memref<36x128xf32, #tpu.memory_space<vmem>>, vector<36x128xf32>
    %cst = arith.constant dense<0.000000e+00> : vector<2048x128xf32>
    %3 = tpu.matmul %1, %2, %cst {dimension_numbers = #tpu.dot_dimension_numbers<[1], [0], [0], [1], [0, 0, 1, 1], [], []>} : vector<2048x36xf32>, vector<36x128xf32>, vector<2048x128xf32> -> vector<2048x128xf32>
    %cst_4 = arith.constant 0.000000e+00 : f32
    %4 = vector.broadcast %cst_4 : f32 to vector<2048x128xf32>
    %5 = arith.maximumf %3, %4 : vector<2048x128xf32>
    %6 = vector.shape_cast %5 : vector<2048x128xf32> to vector<8x256x128xf32>
    %cst_5 = arith.constant dense<0.000000e+00> : vector<8x128xf32>
    %7 = vector.multi_reduction <add>, %6, %cst_5 [1] : vector<8x256x128xf32> to vector<8x128xf32>
    %cst_6 = arith.constant 2.560000e+02 : f32
    %8 = vector.broadcast %cst_6 : f32 to vector<8x128xf32>
    %9 = arith.divf %7, %8 : vector<8x128xf32>
    %c0_7 = arith.constant 0 : index
    %c0_8 = arith.constant 0 : index
    %c0_9 = arith.constant 0 : index
    %10 = vector.load %arg5[%c0_7, %c0_8, %c0_9] : memref<1x8x128xf32, #tpu.memory_space<vmem>>, vector<1x8x128xf32>
    %11 = vector.shape_cast %10 : vector<1x8x128xf32> to vector<8x128xf32>
    %12 = vector.shape_cast %9 : vector<8x128xf32> to vector<1x8x128xf32>
    tpu.vector_store %arg5[%c0_7, %c0_8, %c0_9], %12 {strides = array<i32>} : memref<1x8x128xf32, #tpu.memory_space<vmem>>, vector<1x8x128xf32>,
    %c0_10 = arith.constant 0 : index
    %c0_11 = arith.constant 0 : index
    %c0_12 = arith.constant 0 : index
    %13 = vector.load %arg3[%c0_10, %c0_11, %c0_12] : memref<2x640x128xf32, #tpu.memory_space<vmem>>, vector<1x640x128xf32>
    %14 = vector.shape_cast %13 : vector<1x640x128xf32> to vector<640x128xf32>
    %c0_13 = arith.constant 0 : index
    %c0_14 = arith.constant 0 : index
    %c0_15 = arith.constant 0 : index
    %15 = vector.load %arg4[%c0_13, %c0_14, %c0_15] : memref<2x8x128xf32, #tpu.memory_space<vmem>>, vector<1x8x128xf32>
    %16 = vector.shape_cast %15 : vector<1x8x128xf32> to vector<8x128xf32>
    %17 = vector.extract_strided_slice %14 {offsets = [0, 0], sizes = [128, 128], strides = [1, 1]} : vector<640x128xf32> to vector<128x128xf32>
    %18 = vector.extract_strided_slice %14 {offsets = [128, 0], sizes = [128, 128], strides = [1, 1]} : vector<640x128xf32> to vector<128x128xf32>
    %19 = vector.extract_strided_slice %14 {offsets = [256, 0], sizes = [128, 128], strides = [1, 1]} : vector<640x128xf32> to vector<128x128xf32>
    %20 = vector.extract_strided_slice %14 {offsets = [384, 0], sizes = [128, 128], strides = [1, 1]} : vector<640x128xf32> to vector<128x128xf32>
    %21 = vector.extract_strided_slice %14 {offsets = [512, 0], sizes = [128, 128], strides = [1, 1]} : vector<640x128xf32> to vector<128x128xf32>
    %22 = vector.extract_strided_slice %16 {offsets = [0, 0], sizes = [1, 128], strides = [1, 1]} : vector<8x128xf32> to vector<1x128xf32>
    %23 = vector.extract_strided_slice %16 {offsets = [1, 0], sizes = [1, 128], strides = [1, 1]} : vector<8x128xf32> to vector<1x128xf32>
    %24 = vector.extract_strided_slice %16 {offsets = [2, 0], sizes = [1, 128], strides = [1, 1]} : vector<8x128xf32> to vector<1x128xf32>
    %25 = vector.extract_strided_slice %16 {offsets = [3, 0], sizes = [1, 128], strides = [1, 1]} : vector<8x128xf32> to vector<1x128xf32>
    %26 = vector.extract_strided_slice %16 {offsets = [4, 0], sizes = [1, 128], strides = [1, 1]} : vector<8x128xf32> to vector<1x128xf32>
    %27 = vector.extract_strided_slice %16 {offsets = [5, 0], sizes = [1, 128], strides = [1, 1]} : vector<8x128xf32> to vector<1x128xf32>
    %28 = vector.extract_strided_slice %16 {offsets = [6, 0], sizes = [1, 128], strides = [1, 1]} : vector<8x128xf32> to vector<1x128xf32>
    %29 = vector.extract_strided_slice %16 {offsets = [7, 0], sizes = [1, 128], strides = [1, 1]} : vector<8x128xf32> to vector<1x128xf32>
    %cst_16 = arith.constant dense<0.000000e+00> : vector<8x128xf32>
    %30 = tpu.matmul %9, %17, %cst_16 {dimension_numbers = #tpu.dot_dimension_numbers<[1], [0], [0], [1], [0, 0, 1, 1], [], []>} : vector<8x128xf32>, vector<128x128xf32>, vector<8x128xf32> -> vector<8x128xf32>
    %cst_17 = arith.constant dense<0.000000e+00> : vector<128xf32>
    %31 = vector.multi_reduction <add>, %30, %cst_17 [0] : vector<8x128xf32> to vector<128xf32>
    %32 = vector.shape_cast %31 : vector<128xf32> to vector<1x128xf32>
    %cst_18 = arith.constant 8.000000e+00 : f32
    %33 = vector.broadcast %cst_18 : f32 to vector<1x128xf32>
    %34 = arith.divf %32, %33 : vector<1x128xf32>
    %35 = vector.broadcast %34 : vector<1x128xf32> to vector<8x128xf32>
    %36 = arith.subf %30, %35 : vector<8x128xf32>
    %37 = arith.mulf %36, %36 : vector<8x128xf32>
    %cst_19 = arith.constant dense<0.000000e+00> : vector<128xf32>
    %38 = vector.multi_reduction <add>, %37, %cst_19 [0] : vector<8x128xf32> to vector<128xf32>
    %39 = vector.shape_cast %38 : vector<128xf32> to vector<1x128xf32>
    %cst_20 = arith.constant 8.000000e+00 : f32
    %40 = vector.broadcast %cst_20 : f32 to vector<1x128xf32>
    %41 = arith.divf %39, %40 : vector<1x128xf32>
    %cst_21 = arith.constant 9.99999974E-6 : f32
    %42 = vector.broadcast %cst_21 : f32 to vector<1x128xf32>
    %43 = arith.addf %41, %42 : vector<1x128xf32>
    %44 = math.rsqrt %43 : vector<1x128xf32>
    %45 = arith.mulf %44, %22 : vector<1x128xf32>
    %46 = vector.broadcast %45 : vector<1x128xf32> to vector<8x128xf32>
    %47 = arith.mulf %30, %46 : vector<8x128xf32>
    %48 = arith.mulf %34, %45 : vector<1x128xf32>
    %49 = arith.subf %23, %48 : vector<1x128xf32>
    %50 = vector.broadcast %49 : vector<1x128xf32> to vector<8x128xf32>
    %51 = arith.addf %47, %50 : vector<8x128xf32>
    %cst_22 = arith.constant 0.000000e+00 : f32
    %52 = vector.broadcast %cst_22 : f32 to vector<8x128xf32>
    %53 = arith.maximumf %51, %52 : vector<8x128xf32>
    %cst_23 = arith.constant dense<0.000000e+00> : vector<8x128xf32>
    %54 = tpu.matmul %53, %18, %cst_23 {dimension_numbers = #tpu.dot_dimension_numbers<[1], [0], [0], [1], [0, 0, 1, 1], [], []>} : vector<8x128xf32>, vector<128x128xf32>, vector<8x128xf32> -> vector<8x128xf32>
    %cst_24 = arith.constant dense<0.000000e+00> : vector<128xf32>
    %55 = vector.multi_reduction <add>, %54, %cst_24 [0] : vector<8x128xf32> to vector<128xf32>
    %56 = vector.shape_cast %55 : vector<128xf32> to vector<1x128xf32>
    %cst_25 = arith.constant 8.000000e+00 : f32
    %57 = vector.broadcast %cst_25 : f32 to vector<1x128xf32>
    %58 = arith.divf %56, %57 : vector<1x128xf32>
    %59 = vector.broadcast %58 : vector<1x128xf32> to vector<8x128xf32>
    %60 = arith.subf %54, %59 : vector<8x128xf32>
    %61 = arith.mulf %60, %60 : vector<8x128xf32>
    %cst_26 = arith.constant dense<0.000000e+00> : vector<128xf32>
    %62 = vector.multi_reduction <add>, %61, %cst_26 [0] : vector<8x128xf32> to vector<128xf32>
    %63 = vector.shape_cast %62 : vector<128xf32> to vector<1x128xf32>
    %cst_27 = arith.constant 8.000000e+00 : f32
    %64 = vector.broadcast %cst_27 : f32 to vector<1x128xf32>
    %65 = arith.divf %63, %64 : vector<1x128xf32>
    %cst_28 = arith.constant 9.99999974E-6 : f32
    %66 = vector.broadcast %cst_28 : f32 to vector<1x128xf32>
    %67 = arith.addf %65, %66 : vector<1x128xf32>
    %68 = math.rsqrt %67 : vector<1x128xf32>
    %69 = arith.mulf %68, %24 : vector<1x128xf32>
    %70 = vector.broadcast %69 : vector<1x128xf32> to vector<8x128xf32>
    %71 = arith.mulf %54, %70 : vector<8x128xf32>
    %72 = arith.mulf %58, %69 : vector<1x128xf32>
    %73 = arith.subf %25, %72 : vector<1x128xf32>
    %74 = vector.broadcast %73 : vector<1x128xf32> to vector<8x128xf32>
    %75 = arith.addf %71, %74 : vector<8x128xf32>
    %cst_29 = arith.constant 0.000000e+00 : f32
    %76 = vector.broadcast %cst_29 : f32 to vector<8x128xf32>
    %77 = arith.maximumf %75, %76 : vector<8x128xf32>
    %cst_30 = arith.constant dense<0.000000e+00> : vector<8x128xf32>
    %78 = tpu.matmul %77, %19, %cst_30 {dimension_numbers = #tpu.dot_dimension_numbers<[1], [0], [0], [1], [0, 0, 1, 1], [], []>} : vector<8x128xf32>, vector<128x128xf32>, vector<8x128xf32> -> vector<8x128xf32>
    %79 = vector.broadcast %26 : vector<1x128xf32> to vector<8x128xf32>
    %80 = arith.addf %78, %79 : vector<8x128xf32>
    %cst_31 = arith.constant dense<0.000000e+00> : vector<128xf32>
    %81 = vector.multi_reduction <add>, %80, %cst_31 [0] : vector<8x128xf32> to vector<128xf32>
    %82 = vector.shape_cast %81 : vector<128xf32> to vector<1x128xf32>
    %cst_32 = arith.constant 8.000000e+00 : f32
    %83 = vector.broadcast %cst_32 : f32 to vector<1x128xf32>
    %84 = arith.divf %82, %83 : vector<1x128xf32>
    %85 = vector.broadcast %84 : vector<1x128xf32> to vector<8x128xf32>
    %86 = arith.subf %80, %85 : vector<8x128xf32>
    %87 = arith.mulf %86, %86 : vector<8x128xf32>
    %cst_33 = arith.constant dense<0.000000e+00> : vector<128xf32>
    %88 = vector.multi_reduction <add>, %87, %cst_33 [0] : vector<8x128xf32> to vector<128xf32>
    %89 = vector.shape_cast %88 : vector<128xf32> to vector<1x128xf32>
    %cst_34 = arith.constant 8.000000e+00 : f32
    %90 = vector.broadcast %cst_34 : f32 to vector<1x128xf32>
    %91 = arith.divf %89, %90 : vector<1x128xf32>
    %cst_35 = arith.constant 9.99999974E-6 : f32
    %92 = vector.broadcast %cst_35 : f32 to vector<1x128xf32>
    %93 = arith.addf %91, %92 : vector<1x128xf32>
    %94 = math.rsqrt %93 : vector<1x128xf32>
    %cst_36 = arith.constant 1.000000e+00 : f32
    %95 = vector.broadcast %cst_36 : f32 to vector<1x128xf32>
    %96 = arith.mulf %94, %95 : vector<1x128xf32>
    %97 = vector.broadcast %96 : vector<1x128xf32> to vector<8x128xf32>
    %98 = arith.mulf %80, %97 : vector<8x128xf32>
    %99 = arith.mulf %84, %96 : vector<1x128xf32>
    %cst_37 = arith.constant 0.000000e+00 : f32
    %100 = vector.broadcast %cst_37 : f32 to vector<1x128xf32>
    %101 = arith.subf %100, %99 : vector<1x128xf32>
    %102 = vector.broadcast %101 : vector<1x128xf32> to vector<8x128xf32>
    %103 = arith.addf %98, %102 : vector<8x128xf32>
    %cst_38 = arith.constant dense<0.000000e+00> : vector<8x128xf32>
    %104 = tpu.matmul %103, %20, %cst_38 {dimension_numbers = #tpu.dot_dimension_numbers<[1], [0], [0], [1], [0, 0, 1, 1], [], []>} : vector<8x128xf32>, vector<128x128xf32>, vector<8x128xf32> -> vector<8x128xf32>
    %cst_39 = arith.constant dense<0.000000e+00> : vector<128xf32>
    %105 = vector.multi_reduction <add>, %104, %cst_39 [0] : vector<8x128xf32> to vector<128xf32>
    %106 = vector.shape_cast %105 : vector<128xf32> to vector<1x128xf32>
    %cst_40 = arith.constant 8.000000e+00 : f32
    %107 = vector.broadcast %cst_40 : f32 to vector<1x128xf32>
    %108 = arith.divf %106, %107 : vector<1x128xf32>
    %109 = vector.broadcast %108 : vector<1x128xf32> to vector<8x128xf32>
    %110 = arith.subf %104, %109 : vector<8x128xf32>
    %111 = arith.mulf %110, %110 : vector<8x128xf32>
    %cst_41 = arith.constant dense<0.000000e+00> : vector<128xf32>
    %112 = vector.multi_reduction <add>, %111, %cst_41 [0] : vector<8x128xf32> to vector<128xf32>
    %113 = vector.shape_cast %112 : vector<128xf32> to vector<1x128xf32>
    %cst_42 = arith.constant 8.000000e+00 : f32
    %114 = vector.broadcast %cst_42 : f32 to vector<1x128xf32>
    %115 = arith.divf %113, %114 : vector<1x128xf32>
    %cst_43 = arith.constant 9.99999974E-6 : f32
    %116 = vector.broadcast %cst_43 : f32 to vector<1x128xf32>
    %117 = arith.addf %115, %116 : vector<1x128xf32>
    %118 = math.rsqrt %117 : vector<1x128xf32>
    %119 = arith.mulf %118, %27 : vector<1x128xf32>
    %120 = vector.broadcast %119 : vector<1x128xf32> to vector<8x128xf32>
    %121 = arith.mulf %104, %120 : vector<8x128xf32>
    %122 = arith.mulf %108, %119 : vector<1x128xf32>
    %123 = arith.subf %28, %122 : vector<1x128xf32>
    %124 = vector.broadcast %123 : vector<1x128xf32> to vector<8x128xf32>
    %125 = arith.addf %121, %124 : vector<8x128xf32>
    %cst_44 = arith.constant 0.000000e+00 : f32
    %126 = vector.broadcast %cst_44 : f32 to vector<8x128xf32>
    %127 = arith.maximumf %125, %126 : vector<8x128xf32>
    %cst_45 = arith.constant dense<0.000000e+00> : vector<8x128xf32>
    %128 = tpu.matmul %127, %21, %cst_45 {dimension_numbers = #tpu.dot_dimension_numbers<[1], [0], [0], [1], [0, 0, 1, 1], [], []>} : vector<8x128xf32>, vector<128x128xf32>, vector<8x128xf32> -> vector<8x128xf32>
    %129 = vector.broadcast %29 : vector<1x128xf32> to vector<8x128xf32>
    %130 = arith.addf %128, %129 : vector<8x128xf32>
    %c0_46 = arith.constant 0 : index
    %c0_47 = arith.constant 0 : index
    %c0_48 = arith.constant 0 : index
    %c0_49 = arith.constant 0 : index
    %131 = vector.load %arg6[%c0_46, %c0_47, %c0_48, %c0_49] : memref<2x1x8x128xf32, #tpu.memory_space<vmem>>, vector<1x1x8x128xf32>
    %132 = vector.shape_cast %131 : vector<1x1x8x128xf32> to vector<8x128xf32>
    %133 = vector.shape_cast %103 : vector<8x128xf32> to vector<1x1x8x128xf32>
    tpu.vector_store %arg6[%c0_46, %c0_47, %c0_48, %c0_49], %133 {strides = array<i32>} : memref<2x1x8x128xf32, #tpu.memory_space<vmem>>, vector<1x1x8x128xf32>,
    %c0_50 = arith.constant 0 : index
    %c0_51 = arith.constant 0 : index
    %c0_52 = arith.constant 0 : index
    %c0_53 = arith.constant 0 : index
    %134 = vector.load %arg7[%c0_50, %c0_51, %c0_52, %c0_53] : memref<2x1x8x128xf32, #tpu.memory_space<vmem>>, vector<1x1x8x128xf32>
    %135 = vector.shape_cast %134 : vector<1x1x8x128xf32> to vector<8x128xf32>
    %136 = vector.shape_cast %130 : vector<8x128xf32> to vector<1x1x8x128xf32>
    tpu.vector_store %arg7[%c0_50, %c0_51, %c0_52, %c0_53], %136 {strides = array<i32>} : memref<2x1x8x128xf32, #tpu.memory_space<vmem>>, vector<1x1x8x128xf32>,
    %c1 = arith.constant 1 : index
    %c0_54 = arith.constant 0 : index
    %c0_55 = arith.constant 0 : index
    %137 = vector.load %arg3[%c1, %c0_54, %c0_55] : memref<2x640x128xf32, #tpu.memory_space<vmem>>, vector<1x640x128xf32>
    %138 = vector.shape_cast %137 : vector<1x640x128xf32> to vector<640x128xf32>
    %c1_56 = arith.constant 1 : index
    %c0_57 = arith.constant 0 : index
    %c0_58 = arith.constant 0 : index
    %139 = vector.load %arg4[%c1_56, %c0_57, %c0_58] : memref<2x8x128xf32, #tpu.memory_space<vmem>>, vector<1x8x128xf32>
    %140 = vector.shape_cast %139 : vector<1x8x128xf32> to vector<8x128xf32>
    %141 = vector.extract_strided_slice %138 {offsets = [0, 0], sizes = [128, 128], strides = [1, 1]} : vector<640x128xf32> to vector<128x128xf32>
    %142 = vector.extract_strided_slice %138 {offsets = [128, 0], sizes = [128, 128], strides = [1, 1]} : vector<640x128xf32> to vector<128x128xf32>
    %143 = vector.extract_strided_slice %138 {offsets = [256, 0], sizes = [128, 128], strides = [1, 1]} : vector<640x128xf32> to vector<128x128xf32>
    %144 = vector.extract_strided_slice %138 {offsets = [384, 0], sizes = [128, 128], strides = [1, 1]} : vector<640x128xf32> to vector<128x128xf32>
    %145 = vector.extract_strided_slice %138 {offsets = [512, 0], sizes = [128, 128], strides = [1, 1]} : vector<640x128xf32> to vector<128x128xf32>
    %146 = vector.extract_strided_slice %140 {offsets = [0, 0], sizes = [1, 128], strides = [1, 1]} : vector<8x128xf32> to vector<1x128xf32>
    %147 = vector.extract_strided_slice %140 {offsets = [1, 0], sizes = [1, 128], strides = [1, 1]} : vector<8x128xf32> to vector<1x128xf32>
    %148 = vector.extract_strided_slice %140 {offsets = [2, 0], sizes = [1, 128], strides = [1, 1]} : vector<8x128xf32> to vector<1x128xf32>
    %149 = vector.extract_strided_slice %140 {offsets = [3, 0], sizes = [1, 128], strides = [1, 1]} : vector<8x128xf32> to vector<1x128xf32>
    %150 = vector.extract_strided_slice %140 {offsets = [4, 0], sizes = [1, 128], strides = [1, 1]} : vector<8x128xf32> to vector<1x128xf32>
    %151 = vector.extract_strided_slice %140 {offsets = [5, 0], sizes = [1, 128], strides = [1, 1]} : vector<8x128xf32> to vector<1x128xf32>
    %152 = vector.extract_strided_slice %140 {offsets = [6, 0], sizes = [1, 128], strides = [1, 1]} : vector<8x128xf32> to vector<1x128xf32>
    %153 = vector.extract_strided_slice %140 {offsets = [7, 0], sizes = [1, 128], strides = [1, 1]} : vector<8x128xf32> to vector<1x128xf32>
    %cst_59 = arith.constant dense<0.000000e+00> : vector<8x128xf32>
    %154 = tpu.matmul %9, %141, %cst_59 {dimension_numbers = #tpu.dot_dimension_numbers<[1], [0], [0], [1], [0, 0, 1, 1], [], []>} : vector<8x128xf32>, vector<128x128xf32>, vector<8x128xf32> -> vector<8x128xf32>
    %cst_60 = arith.constant dense<0.000000e+00> : vector<128xf32>
    %155 = vector.multi_reduction <add>, %154, %cst_60 [0] : vector<8x128xf32> to vector<128xf32>
    %156 = vector.shape_cast %155 : vector<128xf32> to vector<1x128xf32>
    %cst_61 = arith.constant 8.000000e+00 : f32
    %157 = vector.broadcast %cst_61 : f32 to vector<1x128xf32>
    %158 = arith.divf %156, %157 : vector<1x128xf32>
    %159 = vector.broadcast %158 : vector<1x128xf32> to vector<8x128xf32>
    %160 = arith.subf %154, %159 : vector<8x128xf32>
    %161 = arith.mulf %160, %160 : vector<8x128xf32>
    %cst_62 = arith.constant dense<0.000000e+00> : vector<128xf32>
    %162 = vector.multi_reduction <add>, %161, %cst_62 [0] : vector<8x128xf32> to vector<128xf32>
    %163 = vector.shape_cast %162 : vector<128xf32> to vector<1x128xf32>
    %cst_63 = arith.constant 8.000000e+00 : f32
    %164 = vector.broadcast %cst_63 : f32 to vector<1x128xf32>
    %165 = arith.divf %163, %164 : vector<1x128xf32>
    %cst_64 = arith.constant 9.99999974E-6 : f32
    %166 = vector.broadcast %cst_64 : f32 to vector<1x128xf32>
    %167 = arith.addf %165, %166 : vector<1x128xf32>
    %168 = math.rsqrt %167 : vector<1x128xf32>
    %169 = arith.mulf %168, %146 : vector<1x128xf32>
    %170 = vector.broadcast %169 : vector<1x128xf32> to vector<8x128xf32>
    %171 = arith.mulf %154, %170 : vector<8x128xf32>
    %172 = arith.mulf %158, %169 : vector<1x128xf32>
    %173 = arith.subf %147, %172 : vector<1x128xf32>
    %174 = vector.broadcast %173 : vector<1x128xf32> to vector<8x128xf32>
    %175 = arith.addf %171, %174 : vector<8x128xf32>
    %cst_65 = arith.constant 0.000000e+00 : f32
    %176 = vector.broadcast %cst_65 : f32 to vector<8x128xf32>
    %177 = arith.maximumf %175, %176 : vector<8x128xf32>
    %cst_66 = arith.constant dense<0.000000e+00> : vector<8x128xf32>
    %178 = tpu.matmul %177, %142, %cst_66 {dimension_numbers = #tpu.dot_dimension_numbers<[1], [0], [0], [1], [0, 0, 1, 1], [], []>} : vector<8x128xf32>, vector<128x128xf32>, vector<8x128xf32> -> vector<8x128xf32>
    %cst_67 = arith.constant dense<0.000000e+00> : vector<128xf32>
    %179 = vector.multi_reduction <add>, %178, %cst_67 [0] : vector<8x128xf32> to vector<128xf32>
    %180 = vector.shape_cast %179 : vector<128xf32> to vector<1x128xf32>
    %cst_68 = arith.constant 8.000000e+00 : f32
    %181 = vector.broadcast %cst_68 : f32 to vector<1x128xf32>
    %182 = arith.divf %180, %181 : vector<1x128xf32>
    %183 = vector.broadcast %182 : vector<1x128xf32> to vector<8x128xf32>
    %184 = arith.subf %178, %183 : vector<8x128xf32>
    %185 = arith.mulf %184, %184 : vector<8x128xf32>
    %cst_69 = arith.constant dense<0.000000e+00> : vector<128xf32>
    %186 = vector.multi_reduction <add>, %185, %cst_69 [0] : vector<8x128xf32> to vector<128xf32>
    %187 = vector.shape_cast %186 : vector<128xf32> to vector<1x128xf32>
    %cst_70 = arith.constant 8.000000e+00 : f32
    %188 = vector.broadcast %cst_70 : f32 to vector<1x128xf32>
    %189 = arith.divf %187, %188 : vector<1x128xf32>
    %cst_71 = arith.constant 9.99999974E-6 : f32
    %190 = vector.broadcast %cst_71 : f32 to vector<1x128xf32>
    %191 = arith.addf %189, %190 : vector<1x128xf32>
    %192 = math.rsqrt %191 : vector<1x128xf32>
    %193 = arith.mulf %192, %148 : vector<1x128xf32>
    %194 = vector.broadcast %193 : vector<1x128xf32> to vector<8x128xf32>
    %195 = arith.mulf %178, %194 : vector<8x128xf32>
    %196 = arith.mulf %182, %193 : vector<1x128xf32>
    %197 = arith.subf %149, %196 : vector<1x128xf32>
    %198 = vector.broadcast %197 : vector<1x128xf32> to vector<8x128xf32>
    %199 = arith.addf %195, %198 : vector<8x128xf32>
    %cst_72 = arith.constant 0.000000e+00 : f32
    %200 = vector.broadcast %cst_72 : f32 to vector<8x128xf32>
    %201 = arith.maximumf %199, %200 : vector<8x128xf32>
    %cst_73 = arith.constant dense<0.000000e+00> : vector<8x128xf32>
    %202 = tpu.matmul %201, %143, %cst_73 {dimension_numbers = #tpu.dot_dimension_numbers<[1], [0], [0], [1], [0, 0, 1, 1], [], []>} : vector<8x128xf32>, vector<128x128xf32>, vector<8x128xf32> -> vector<8x128xf32>
    %203 = vector.broadcast %150 : vector<1x128xf32> to vector<8x128xf32>
    %204 = arith.addf %202, %203 : vector<8x128xf32>
    %cst_74 = arith.constant dense<0.000000e+00> : vector<128xf32>
    %205 = vector.multi_reduction <add>, %204, %cst_74 [0] : vector<8x128xf32> to vector<128xf32>
    %206 = vector.shape_cast %205 : vector<128xf32> to vector<1x128xf32>
    %cst_75 = arith.constant 8.000000e+00 : f32
    %207 = vector.broadcast %cst_75 : f32 to vector<1x128xf32>
    %208 = arith.divf %206, %207 : vector<1x128xf32>
    %209 = vector.broadcast %208 : vector<1x128xf32> to vector<8x128xf32>
    %210 = arith.subf %204, %209 : vector<8x128xf32>
    %211 = arith.mulf %210, %210 : vector<8x128xf32>
    %cst_76 = arith.constant dense<0.000000e+00> : vector<128xf32>
    %212 = vector.multi_reduction <add>, %211, %cst_76 [0] : vector<8x128xf32> to vector<128xf32>
    %213 = vector.shape_cast %212 : vector<128xf32> to vector<1x128xf32>
    %cst_77 = arith.constant 8.000000e+00 : f32
    %214 = vector.broadcast %cst_77 : f32 to vector<1x128xf32>
    %215 = arith.divf %213, %214 : vector<1x128xf32>
    %cst_78 = arith.constant 9.99999974E-6 : f32
    %216 = vector.broadcast %cst_78 : f32 to vector<1x128xf32>
    %217 = arith.addf %215, %216 : vector<1x128xf32>
    %218 = math.rsqrt %217 : vector<1x128xf32>
    %cst_79 = arith.constant 1.000000e+00 : f32
    %219 = vector.broadcast %cst_79 : f32 to vector<1x128xf32>
    %220 = arith.mulf %218, %219 : vector<1x128xf32>
    %221 = vector.broadcast %220 : vector<1x128xf32> to vector<8x128xf32>
    %222 = arith.mulf %204, %221 : vector<8x128xf32>
    %223 = arith.mulf %208, %220 : vector<1x128xf32>
    %cst_80 = arith.constant 0.000000e+00 : f32
    %224 = vector.broadcast %cst_80 : f32 to vector<1x128xf32>
    %225 = arith.subf %224, %223 : vector<1x128xf32>
    %226 = vector.broadcast %225 : vector<1x128xf32> to vector<8x128xf32>
    %227 = arith.addf %222, %226 : vector<8x128xf32>
    %cst_81 = arith.constant dense<0.000000e+00> : vector<8x128xf32>
    %228 = tpu.matmul %227, %144, %cst_81 {dimension_numbers = #tpu.dot_dimension_numbers<[1], [0], [0], [1], [0, 0, 1, 1], [], []>} : vector<8x128xf32>, vector<128x128xf32>, vector<8x128xf32> -> vector<8x128xf32>
    %cst_82 = arith.constant dense<0.000000e+00> : vector<128xf32>
    %229 = vector.multi_reduction <add>, %228, %cst_82 [0] : vector<8x128xf32> to vector<128xf32>
    %230 = vector.shape_cast %229 : vector<128xf32> to vector<1x128xf32>
    %cst_83 = arith.constant 8.000000e+00 : f32
    %231 = vector.broadcast %cst_83 : f32 to vector<1x128xf32>
    %232 = arith.divf %230, %231 : vector<1x128xf32>
    %233 = vector.broadcast %232 : vector<1x128xf32> to vector<8x128xf32>
    %234 = arith.subf %228, %233 : vector<8x128xf32>
    %235 = arith.mulf %234, %234 : vector<8x128xf32>
    %cst_84 = arith.constant dense<0.000000e+00> : vector<128xf32>
    %236 = vector.multi_reduction <add>, %235, %cst_84 [0] : vector<8x128xf32> to vector<128xf32>
    %237 = vector.shape_cast %236 : vector<128xf32> to vector<1x128xf32>
    %cst_85 = arith.constant 8.000000e+00 : f32
    %238 = vector.broadcast %cst_85 : f32 to vector<1x128xf32>
    %239 = arith.divf %237, %238 : vector<1x128xf32>
    %cst_86 = arith.constant 9.99999974E-6 : f32
    %240 = vector.broadcast %cst_86 : f32 to vector<1x128xf32>
    %241 = arith.addf %239, %240 : vector<1x128xf32>
    %242 = math.rsqrt %241 : vector<1x128xf32>
    %243 = arith.mulf %242, %151 : vector<1x128xf32>
    %244 = vector.broadcast %243 : vector<1x128xf32> to vector<8x128xf32>
    %245 = arith.mulf %228, %244 : vector<8x128xf32>
    %246 = arith.mulf %232, %243 : vector<1x128xf32>
    %247 = arith.subf %152, %246 : vector<1x128xf32>
    %248 = vector.broadcast %247 : vector<1x128xf32> to vector<8x128xf32>
    %249 = arith.addf %245, %248 : vector<8x128xf32>
    %cst_87 = arith.constant 0.000000e+00 : f32
    %250 = vector.broadcast %cst_87 : f32 to vector<8x128xf32>
    %251 = arith.maximumf %249, %250 : vector<8x128xf32>
    %cst_88 = arith.constant dense<0.000000e+00> : vector<8x128xf32>
    %252 = tpu.matmul %251, %145, %cst_88 {dimension_numbers = #tpu.dot_dimension_numbers<[1], [0], [0], [1], [0, 0, 1, 1], [], []>} : vector<8x128xf32>, vector<128x128xf32>, vector<8x128xf32> -> vector<8x128xf32>
    %253 = vector.broadcast %153 : vector<1x128xf32> to vector<8x128xf32>
    %254 = arith.addf %252, %253 : vector<8x128xf32>
    %c1_89 = arith.constant 1 : index
    %c0_90 = arith.constant 0 : index
    %c0_91 = arith.constant 0 : index
    %c0_92 = arith.constant 0 : index
    %255 = vector.load %arg6[%c1_89, %c0_90, %c0_91, %c0_92] : memref<2x1x8x128xf32, #tpu.memory_space<vmem>>, vector<1x1x8x128xf32>
    %256 = vector.shape_cast %255 : vector<1x1x8x128xf32> to vector<8x128xf32>
    %257 = vector.shape_cast %227 : vector<8x128xf32> to vector<1x1x8x128xf32>
    tpu.vector_store %arg6[%c1_89, %c0_90, %c0_91, %c0_92], %257 {strides = array<i32>} : memref<2x1x8x128xf32, #tpu.memory_space<vmem>>, vector<1x1x8x128xf32>,
    %c1_93 = arith.constant 1 : index
    %c0_94 = arith.constant 0 : index
    %c0_95 = arith.constant 0 : index
    %c0_96 = arith.constant 0 : index
    %258 = vector.load %arg7[%c1_93, %c0_94, %c0_95, %c0_96] : memref<2x1x8x128xf32, #tpu.memory_space<vmem>>, vector<1x1x8x128xf32>
    %259 = vector.shape_cast %258 : vector<1x1x8x128xf32> to vector<8x128xf32>
    %260 = vector.shape_cast %254 : vector<8x128xf32> to vector<1x1x8x128xf32>
    tpu.vector_store %arg7[%c1_93, %c0_94, %c0_95, %c0_96], %260 {strides = array<i32>} : memref<2x1x8x128xf32, #tpu.memory_space<vmem>>, vector<1x1x8x128xf32>,
    return
  }
  func.func @transform_0(%arg0: i32) -> (i32, i32, i32) {
    %c0_i32 = arith.constant 0 : i32
    %c0_i32_0 = arith.constant 0 : i32
    %c0_i32_1 = arith.constant 0 : i32
    return %arg0, %c0_i32, %c0_i32_0 : i32, i32, i32
  }
  func.func @transform_1(%arg0: i32) -> (i32, i32) {
    %c0_i32 = arith.constant 0 : i32
    %c0_i32_0 = arith.constant 0 : i32
    %c0_i32_1 = arith.constant 0 : i32
    return %c0_i32, %c0_i32_0 : i32, i32
  }
  func.func @transform_2(%arg0: i32) -> (i32, i32, i32) {
    %c0_i32 = arith.constant 0 : i32
    %c0_i32_0 = arith.constant 0 : i32
    %c0_i32_1 = arith.constant 0 : i32
    %c0_i32_2 = arith.constant 0 : i32
    return %c0_i32, %c0_i32_0, %c0_i32_1 : i32, i32, i32
  }
  func.func @transform_3(%arg0: i32) -> (i32, i32, i32) {
    %c0_i32 = arith.constant 0 : i32
    %c0_i32_0 = arith.constant 0 : i32
    %c0_i32_1 = arith.constant 0 : i32
    %c0_i32_2 = arith.constant 0 : i32
    return %c0_i32, %c0_i32_0, %c0_i32_1 : i32, i32, i32
  }
  func.func @transform_4(%arg0: i32) -> (i32, i32, i32) {
    %c0_i32 = arith.constant 0 : i32
    %c0_i32_0 = arith.constant 0 : i32
    %c0_i32_1 = arith.constant 0 : i32
    return %arg0, %c0_i32, %c0_i32_0 : i32, i32, i32
  }
  func.func @transform_5(%arg0: i32) -> (i32, i32, i32, i32) {
    %c0_i32 = arith.constant 0 : i32
    %c0_i32_0 = arith.constant 0 : i32
    %c0_i32_1 = arith.constant 0 : i32
    %c0_i32_2 = arith.constant 0 : i32
    return %c0_i32, %arg0, %c0_i32_0, %c0_i32_1 : i32, i32, i32, i32
  }
  func.func @transform_6(%arg0: i32) -> (i32, i32, i32, i32) {
    %c0_i32 = arith.constant 0 : i32
    %c0_i32_0 = arith.constant 0 : i32
    %c0_i32_1 = arith.constant 0 : i32
    %c0_i32_2 = arith.constant 0 : i32
    return %c0_i32, %arg0, %c0_i32_0, %c0_i32_1 : i32, i32, i32, i32
  }
}

</mosaic_0001>

<llo_original>
// kernel: drl_simsiam_forward.1
$region0: #{drl_simsiam_forward.1}
  #allocation0 [shape = 'u32[]', space=smem, size = 0x4, offset = 0x4, fixed_abs, tag = 'smem constant byte address 0x4 - core index']
  #allocation1 [shape = 'u32[144,128]{1,0:T(1,128)}', space=vmem, size = 0x12000, scoped, tag = 'internal scratch']
  %s0 = inlined_call_operand.vmem [shape: f32[2,2048,36], index: 0, kind: input, shape index: {}]
  %s1 = inlined_call_operand.vmem [shape: f32[36,128], index: 1, kind: input, shape index: {}]
  %s2 = inlined_call_operand.vmem [shape: f32[2,640,128], index: 2, kind: input, shape index: {}]
  %s3 = inlined_call_operand.vmem [shape: f32[2,8,128], index: 3, kind: input, shape index: {}]
  %s4 = inlined_call_operand.vmem [shape: f32[2,8,128], index: 4, kind: output, shape index: {0}]
  %s5 = inlined_call_operand.vmem [shape: f32[2,2,8,128], index: 5, kind: output, shape index: {1}]
  %s6 = inlined_call_operand.vmem [shape: f32[2,2,8,128], index: 6, kind: output, shape index: {2}]
  %7 = xla_tuple %s4, %s5, %s6
  %s8 = sld [smem:[#allocation0]]
  $region133: #{drl_simsiam_forward.1} parent=0
    _
  %s10 = ssub.s32 1, %s8
  %s11 = scalar_select 0, %s10, %s8
  $region1: #{drl_simsiam_forward.1} parent=0
    #allocation2 [shape = 'u8[16384]{0}', space=vmem, size = 0x4000, scoped, tag = 'output window, operand 1']
    #allocation3 [shape = 'u8[16384]{0}', space=vmem, size = 0x4000, scoped, tag = 'output window, operand 2']
    loop: start=0, step=1, limit=4
    $region2: #{drl_simsiam_forward.1} parent=1 // loop_pre_header
      _
    $region3: #{drl_simsiam_forward.1} parent=1 // loop_header
      %s13 = sphi 0, %s17
      %p14 = scmp.ge.s32.totalorder %s13, 4
      %s23 = sphi 0, %s25
      %s26 = sphi 0, %s23
      %s27 = sphi 0, %s26
      %s43 = sphi 0, %s27
      %s47 = sphi 0, %s47
      %s49 = sphi 0, %s47
      %s50 = sphi 0, %s49
      %s64 = sphi 0, %s50
      %s68 = sphi 0, %s68
      %s70 = sphi 0, %s68
      %s71 = sphi 0, %s70
      %s85 = sphi 0, %s71
      %s89 = sphi 0, %s89
      %s91 = sphi 0, %s89
      %s92 = sphi 0, %s91
      %s106 = sphi 0, %s92
      %s112 = sphi 0, %s114
      %s115 = sphi 0, %s112
      %s116 = sphi 0, %s115
      %s132 = sphi 0, %s116
      %s138 = sphi 0, %s140
      %s141 = sphi 0, %s138
      %s142 = sphi 0, %s141
      %s158 = sphi 0, %s142
      %s164 = sphi 0, %s166
      %s167 = sphi 0, %s164
      %s168 = sphi 0, %s167
      %s184 = sphi 0, %s168
    $region4: #{drl_simsiam_forward.1} parent=1 // loop_header_branch
      %16 = sbr.rel (%p14) target = $region8
    $region5: #{drl_simsiam_forward.1} parent=1 // loop_body
      %s18 = ssub.s32 %s13, 1
      %s19 = ssub.s32 %s13, 2
      %s20 = sadd.s32 %s13, 1
      %s21 = ssub.s32 %s13, %s20
      %p22 = scmp.eq.s32.totalorder %s21, 0
      %s24 = sadd.s32 %s23, 1
      %s25 = scalar_select %p22, %s23, %s24
      %p28 = pneg %p22
      %p29 = scmp.eq.s32.totalorder %s13, 1
      %p30 = por %p28, %p29
      %p31 = scmp.ne.s32.totalorder %s23, %s26
      %p32 = scmp.eq.s32.totalorder %s13, 0
      %p33 = por %p31, %p32
      %p34 = scmp.ne.s32.totalorder %s23, %s26
      %p35 = scmp.eq.s32.totalorder %s18, 1
      %p36 = por %p34, %p35
      %p37 = scmp.ne.s32.totalorder %s26, %s27
      %p38 = scmp.eq.s32.totalorder %s18, 0
      %p39 = por %p37, %p38
      %p40 = scmp.ne.s32.totalorder %s26, %s27
      %p41 = scmp.eq.s32.totalorder %s19, 1
      %p42 = por %p40, %p41
      %p44 = scmp.ne.s32.totalorder %s27, %s43
      %p45 = scmp.eq.s32.totalorder %s19, 0
      %p46 = por %p44, %p45
      %s48 = sadd.s32 %s47, 1
      %p51 = scmp.eq.s32.totalorder %s13, 1
      %p52 = scmp.ne.s32.totalorder %s47, %s49
      %p53 = scmp.eq.s32.totalorder %s13, 0
      %p54 = por %p52, %p53
      %p55 = scmp.ne.s32.totalorder %s47, %s49
      %p56 = scmp.eq.s32.totalorder %s18, 1
      %p57 = por %p55, %p56
      %p58 = scmp.ne.s32.totalorder %s49, %s50
      %p59 = scmp.eq.s32.totalorder %s18, 0
      %p60 = por %p58, %p59
      %p61 = scmp.ne.s32.totalorder %s49, %s50
      %p62 = scmp.eq.s32.totalorder %s19, 1
      %p63 = por %p61, %p62
      %p65 = scmp.ne.s32.totalorder %s50, %s64
      %p66 = scmp.eq.s32.totalorder %s19, 0
      %p67 = por %p65, %p66
      %s69 = sadd.s32 %s68, 1
      %p72 = scmp.eq.s32.totalorder %s13, 1
      %p73 = scmp.ne.s32.totalorder %s68, %s70
      %p74 = scmp.eq.s32.totalorder %s13, 0
      %p75 = por %p73, %p74
      %p76 = scmp.ne.s32.totalorder %s68, %s70
      %p77 = scmp.eq.s32.totalorder %s18, 1
      %p78 = por %p76, %p77
      %p79 = scmp.ne.s32.totalorder %s70, %s71
      %p80 = scmp.eq.s32.totalorder %s18, 0
      %p81 = por %p79, %p80
      %p82 = scmp.ne.s32.totalorder %s70, %s71
      %p83 = scmp.eq.s32.totalorder %s19, 1
      %p84 = por %p82, %p83
      %p86 = scmp.ne.s32.totalorder %s71, %s85
      %p87 = scmp.eq.s32.totalorder %s19, 0
      %p88 = por %p86, %p87
      %s90 = sadd.s32 %s89, 1
      %p93 = scmp.eq.s32.totalorder %s13, 1
      %p94 = scmp.ne.s32.totalorder %s89, %s91
      %p95 = scmp.eq.s32.totalorder %s13, 0
      %p96 = por %p94, %p95
      %p97 = scmp.ne.s32.totalorder %s89, %s91
      %p98 = scmp.eq.s32.totalorder %s18, 1
      %p99 = por %p97, %p98
      %p100 = scmp.ne.s32.totalorder %s91, %s92
      %p101 = scmp.eq.s32.totalorder %s18, 0
      %p102 = por %p100, %p101
      %p103 = scmp.ne.s32.totalorder %s91, %s92
      %p104 = scmp.eq.s32.totalorder %s19, 1
      %p105 = por %p103, %p104
      %p107 = scmp.ne.s32.totalorder %s92, %s106
      %p108 = scmp.eq.s32.totalorder %s19, 0
      %p109 = por %p107, %p108
      %s110 = ssub.s32 %s13, %s20
      %p111 = scmp.eq.s32.totalorder %s110, 0
      %s113 = sadd.s32 %s112, 1
      %s114 = scalar_select %p111, %s112, %s113
      %p117 = pneg %p111
      %p118 = scmp.eq.s32.totalorder %s13, 1
      %p119 = por %p117, %p118
      %p120 = scmp.ne.s32.totalorder %s112, %s115
      %p121 = scmp.eq.s32.totalorder %s13, 0
      %p122 = por %p120, %p121
      %p123 = scmp.ne.s32.totalorder %s112, %s115
      %p124 = scmp.eq.s32.totalorder %s18, 1
      %p125 = por %p123, %p124
      %p126 = scmp.ne.s32.totalorder %s115, %s116
      %p127 = scmp.eq.s32.totalorder %s18, 0
      %p128 = por %p126, %p127
      %p129 = scmp.ne.s32.totalorder %s115, %s116
      %p130 = scmp.eq.s32.totalorder %s19, 1
      %p131 = por %p129, %p130
      %p133 = scmp.ne.s32.totalorder %s116, %s132
      %p134 = scmp.eq.s32.totalorder %s19, 0
      %p135 = por %p133, %p134
      %s136 = ssub.s32 %s13, %s20
      %p137 = scmp.eq.s32.totalorder %s136, 0
      %s139 = sadd.s32 %s138, 1
      %s140 = scalar_select %p137, %s138, %s139
      %p143 = pneg %p137
      %p144 = scmp.eq.s32.totalorder %s13, 1
      %p145 = por %p143, %p144
      %p146 = scmp.ne.s32.totalorder %s138, %s141
      %p147 = scmp.eq.s32.totalorder %s13, 0
      %p148 = por %p146, %p147
      %p149 = scmp.ne.s32.totalorder %s138, %s141
      %p150 = scmp.eq.s32.totalorder %s18, 1
      %p151 = por %p149, %p150
      %p152 = scmp.ne.s32.totalorder %s141, %s142
      %p153 = scmp.eq.s32.totalorder %s18, 0
      %p154 = por %p152, %p153
      %p155 = scmp.ne.s32.totalorder %s141, %s142
      %p156 = scmp.eq.s32.totalorder %s19, 1
      %p157 = por %p155, %p156
      %p159 = scmp.ne.s32.totalorder %s142, %s158
      %p160 = scmp.eq.s32.totalorder %s19, 0
      %p161 = por %p159, %p160
      %s162 = ssub.s32 %s13, %s20
      %p163 = scmp.eq.s32.totalorder %s162, 0
      %s165 = sadd.s32 %s164, 1
      %s166 = scalar_select %p163, %s164, %s165
      %p169 = pneg %p163
      %p170 = scmp.eq.s32.totalorder %s13, 1
      %p171 = por %p169, %p170
      %p172 = scmp.ne.s32.totalorder %s164, %s167
      %p173 = scmp.eq.s32.totalorder %s13, 0
      %p174 = por %p172, %p173
      %p175 = scmp.ne.s32.totalorder %s164, %s167
      %p176 = scmp.eq.s32.totalorder %s18, 1
      %p177 = por %p175, %p176
      %p178 = scmp.ne.s32.totalorder %s167, %s168
      %p179 = scmp.eq.s32.totalorder %s18, 0
      %p180 = por %p178, %p179
      %p181 = scmp.ne.s32.totalorder %s167, %s168
      %p182 = scmp.eq.s32.totalorder %s19, 1
      %p183 = por %p181, %p182
      %p185 = scmp.ne.s32.totalorder %s168, %s184
      %p186 = scmp.eq.s32.totalorder %s19, 0
      %p187 = por %p185, %p186
      %p188 = scmp.le.s32.totalorder 1, %s13
      %p189 = scmp.lt.s32.totalorder %s13, 3
      %p190 = pnand %p188, %p189
      %p191 = pneg %p190
      // Predicated region
      $region9: #{drl_simsiam_forward.1} parent=5 // pred_check
        _
      $region10: #{drl_simsiam_forward.1} parent=5 // pred_check_branch
        %193 = sbr.rel (%p190) target = $region12
      $region11: #{drl_simsiam_forward.1} parent=5 // pred_region
        %s194 = ssub.s32 %s13, 1
        // Predicated region
        $region13: #{drl_simsiam_forward.1} parent=11 // pred_check
          %p195 = pneg %p60
        $region14: #{drl_simsiam_forward.1} parent=11 // pred_check_branch
          %197 = sbr.rel (%p195) target = $region16
        $region15: #{drl_simsiam_forward.1} parent=11 // pred_region
          _
        $region16: #{drl_simsiam_forward.1} parent=11 // pred_fallthru
          _
        // Predicated region
        $region17: #{drl_simsiam_forward.1} parent=11 // pred_check
          %p198 = pneg %p81
        $region18: #{drl_simsiam_forward.1} parent=11 // pred_check_branch
          %200 = sbr.rel (%p198) target = $region20
        $region19: #{drl_simsiam_forward.1} parent=11 // pred_region
          _
        $region20: #{drl_simsiam_forward.1} parent=11 // pred_fallthru
          _
        // Predicated region
        $region21: #{drl_simsiam_forward.1} parent=11 // pred_check
          %p201 = pneg %p102
        $region22: #{drl_simsiam_forward.1} parent=11 // pred_check_branch
          %203 = sbr.rel (%p201) target = $region24
        $region23: #{drl_simsiam_forward.1} parent=11 // pred_region
          _
        $region24: #{drl_simsiam_forward.1} parent=11 // pred_fallthru
          _
      $region12: #{drl_simsiam_forward.1} parent=5 // pred_fallthru
        _
      %p204 = scmp.lt.s32.totalorder %s13, 2
      // Predicated region
      $region25: #{drl_simsiam_forward.1} parent=5 // pred_check
        %p205 = pneg %p204
      $region26: #{drl_simsiam_forward.1} parent=5 // pred_check_branch
        %207 = sbr.rel (%p205) target = $region28
      $region27: #{drl_simsiam_forward.1} parent=5 // pred_region
        // Predicated region
        $region29: #{drl_simsiam_forward.1} parent=27 // pred_check
          %p208 = pneg %p33
        $region30: #{drl_simsiam_forward.1} parent=27 // pred_check_branch
          %210 = sbr.rel (%p208) target = $region32
        $region31: #{drl_simsiam_forward.1} parent=27 // pred_region
          %p211 = scmp.lt.s32.totalorder %s13, 1
          %s212 = scalar_select %p211, %s13, 1
          %s213 = smul.addr %s212, 256
          %s214 = smul.addr %s213, 8
          %s215 = scalar_lea.vmem %s0, %s214
        $region32: #{drl_simsiam_forward.1} parent=27 // pred_fallthru
          _
      $region28: #{drl_simsiam_forward.1} parent=5 // pred_fallthru
        _
      %p216 = scmp.le.s32.totalorder 1, %s13
      %p217 = scmp.lt.s32.totalorder %s13, 3
      %p218 = pnand %p216, %p217
      %p219 = pneg %p218
      // Predicated region
      $region33: #{drl_simsiam_forward.1} parent=5 // pred_check
        _
      $region34: #{drl_simsiam_forward.1} parent=5 // pred_check_branch
        %221 = sbr.rel (%p218) target = $region36
      $region35: #{drl_simsiam_forward.1} parent=5 // pred_region
        %s222 = ssub.s32 %s13, 1
        %p223 = scmp.lt.s32.totalorder %s18, 1
        %s224 = scalar_select %p223, %s18, 1
        %s225 = smul.addr %s224, 256
        %s226 = smul.addr %s225, 8
        %s227 = scalar_lea.vmem %s0, %s226
        %p228 = pneg %p39
        %p229 = pneg %p36
        %p230 = pneg %p60
        %p231 = pneg %p57
        %p232 = pneg %p81
        %p233 = pneg %p78
        %p234 = pneg %p102
        %p235 = pneg %p99
        %p236 = pneg %p128
        %p237 = pneg %p125
        %p238 = scmp.lt.s32.totalorder %s18, 1
        %s239 = scalar_select %p238, %s18, 1
        %s240 = smul.addr %s239, 8
        %s241 = scalar_lea.vmem %s4, %s240
        %p242 = pneg %p154
        %p243 = pneg %p151
        %s244 = sand.u32 %s141, 1
        %s245 = sand.u32 %s141, 1
        %s246 = smul.addr %s245, 16
        %s247 = scalar_lea.vmem [#allocation2], %s246
        %p248 = pneg %p180
        %p249 = pneg %p177
        %s250 = sand.u32 %s167, 1
        %s251 = sand.u32 %s167, 1
        %s252 = smul.addr %s251, 16
        %s253 = scalar_lea.vmem [#allocation3], %s252
        %p254 = scmp.lt.s32.totalorder %s18, 1
        %s255 = scalar_select %p254, %s18, 1
        %s256 = smul.addr %s255, 256
        %s257 = smul.addr %s256, 8
        %s258 = scalar_lea.vmem %s0, %s257
        %p259 = scmp.lt.s32.totalorder %s18, 1
        %s260 = scalar_select %p259, %s18, 1
        %s261 = smul.addr %s260, 8
        %s262 = scalar_lea.vmem %s4, %s261
        %v263 = vld [vmem:[%s258] sm:$0xff]
        %v264 = vld [vmem:[%s258 + $0x8] sm:$0xff]
        %v265 = vld [vmem:[%s258 + $0x10] sm:$0xff]
        %v266 = vld [vmem:[%s258 + $0x18] sm:$0xff]
        %v267 = vld [vmem:[%s258 + $0x20] sm:$0xff]
        %v268 = vld [vmem:[%s258 + $0x28] sm:$0xff]
        %v269 = vld [vmem:[%s258 + $0x30] sm:$0xff]
        %v270 = vld [vmem:[%s258 + $0x38] sm:$0xff]
        %v271 = vld [vmem:[%s258 + $0x40] sm:$0xff]
        %v272 = vld [vmem:[%s258 + $0x48] sm:$0xff]
        %v273 = vld [vmem:[%s258 + $0x50] sm:$0xff]
        %v274 = vld [vmem:[%s258 + $0x58] sm:$0xff]
        %v275 = vld [vmem:[%s258 + $0x60] sm:$0xff]
        %v276 = vld [vmem:[%s258 + $0x68] sm:$0xff]
        %v277 = vld [vmem:[%s258 + $0x70] sm:$0xff]
        %v278 = vld [vmem:[%s258 + $0x78] sm:$0xff]
        %v279 = vld [vmem:[%s258 + $0x80] sm:$0xff]
        %v280 = vld [vmem:[%s258 + $0x88] sm:$0xff]
        %v281 = vld [vmem:[%s258 + $0x90] sm:$0xff]
        %v282 = vld [vmem:[%s258 + $0x98] sm:$0xff]
        %v283 = vld [vmem:[%s258 + $0xa0] sm:$0xff]
        %v284 = vld [vmem:[%s258 + $0xa8] sm:$0xff]
        %v285 = vld [vmem:[%s258 + $0xb0] sm:$0xff]
        %v286 = vld [vmem:[%s258 + $0xb8] sm:$0xff]
        %v287 = vld [vmem:[%s258 + $0xc0] sm:$0xff]
        %v288 = vld [vmem:[%s258 + $0xc8] sm:$0xff]
        %v289 = vld [vmem:[%s258 + $0xd0] sm:$0xff]
        %v290 = vld [vmem:[%s258 + $0xd8] sm:$0xff]
        %v291 = vld [vmem:[%s258 + $0xe0] sm:$0xff]
        %v292 = vld [vmem:[%s258 + $0xe8] sm:$0xff]
        %v293 = vld [vmem:[%s258 + $0xf0] sm:$0xff]
        %v294 = vld [vmem:[%s258 + $0xf8] sm:$0xff]
        %v295 = vld [vmem:[%s258 + $0x100] sm:$0xff]
        %v296 = vld [vmem:[%s258 + $0x108] sm:$0xff]
        %v297 = vld [vmem:[%s258 + $0x110] sm:$0xff]
        %v298 = vld [vmem:[%s258 + $0x118] sm:$0xff]
        %v299 = vld [vmem:[%s258 + $0x120] sm:$0xff]
        %v300 = vld [vmem:[%s258 + $0x128] sm:$0xff]
        %v301 = vld [vmem:[%s258 + $0x130] sm:$0xff]
        %v302 = vld [vmem:[%s258 + $0x138] sm:$0xff]
        %v303 = vld [vmem:[%s258 + $0x140] sm:$0xff]
        %v304 = vld [vmem:[%s258 + $0x148] sm:$0xff]
        %v305 = vld [vmem:[%s258 + $0x150] sm:$0xff]
        %v306 = vld [vmem:[%s258 + $0x158] sm:$0xff]
        %v307 = vld [vmem:[%s258 + $0x160] sm:$0xff]
        %v308 = vld [vmem:[%s258 + $0x168] sm:$0xff]
        %v309 = vld [vmem:[%s258 + $0x170] sm:$0xff]
        %v310 = vld [vmem:[%s258 + $0x178] sm:$0xff]
        %v311 = vld [vmem:[%s258 + $0x180] sm:$0xff]
        %v312 = vld [vmem:[%s258 + $0x188] sm:$0xff]
        %v313 = vld [vmem:[%s258 + $0x190] sm:$0xff]
        %v314 = vld [vmem:[%s258 + $0x198] sm:$0xff]
        %v315 = vld [vmem:[%s258 + $0x1a0] sm:$0xff]
        %v316 = vld [vmem:[%s258 + $0x1a8] sm:$0xff]
        %v317 = vld [vmem:[%s258 + $0x1b0] sm:$0xff]
        %v318 = vld [vmem:[%s258 + $0x1b8] sm:$0xff]
        %v319 = vld [vmem:[%s258 + $0x1c0] sm:$0xff]
        %v320 = vld [vmem:[%s258 + $0x1c8] sm:$0xff]
        %v321 = vld [vmem:[%s258 + $0x1d0] sm:$0xff]
        %v322 = vld [vmem:[%s258 + $0x1d8] sm:$0xff]
        %v323 = vld [vmem:[%s258 + $0x1e0] sm:$0xff]
        %v324 = vld [vmem:[%s258 + $0x1e8] sm:$0xff]
        %v325 = vld [vmem:[%s258 + $0x1f0] sm:$0xff]
        %v326 = vld [vmem:[%s258 + $0x1f8] sm:$0xff]
        %v327 = vld [vmem:[%s258 + $0x200] sm:$0xff]
        %v328 = vld [vmem:[%s258 + $0x208] sm:$0xff]
        %v329 = vld [vmem:[%s258 + $0x210] sm:$0xff]
        %v330 = vld [vmem:[%s258 + $0x218] sm:$0xff]
        %v331 = vld [vmem:[%s258 + $0x220] sm:$0xff]
        %v332 = vld [vmem:[%s258 + $0x228] sm:$0xff]
        %v333 = vld [vmem:[%s258 + $0x230] sm:$0xff]
        %v334 = vld [vmem:[%s258 + $0x238] sm:$0xff]
        %v335 = vld [vmem:[%s258 + $0x240] sm:$0xff]
        %v336 = vld [vmem:[%s258 + $0x248] sm:$0xff]
        %v337 = vld [vmem:[%s258 + $0x250] sm:$0xff]
        %v338 = vld [vmem:[%s258 + $0x258] sm:$0xff]
        %v339 = vld [vmem:[%s258 + $0x260] sm:$0xff]
        %v340 = vld [vmem:[%s258 + $0x268] sm:$0xff]
        %v341 = vld [vmem:[%s258 + $0x270] sm:$0xff]
        %v342 = vld [vmem:[%s258 + $0x278] sm:$0xff]
        %v343 = vld [vmem:[%s258 + $0x280] sm:$0xff]
        %v344 = vld [vmem:[%s258 + $0x288] sm:$0xff]
        %v345 = vld [vmem:[%s258 + $0x290] sm:$0xff]
        %v346 = vld [vmem:[%s258 + $0x298] sm:$0xff]
        %v347 = vld [vmem:[%s258 + $0x2a0] sm:$0xff]
        %v348 = vld [vmem:[%s258 + $0x2a8] sm:$0xff]
        %v349 = vld [vmem:[%s258 + $0x2b0] sm:$0xff]
        %v350 = vld [vmem:[%s258 + $0x2b8] sm:$0xff]
        %v351 = vld [vmem:[%s258 + $0x2c0] sm:$0xff]
        %v352 = vld [vmem:[%s258 + $0x2c8] sm:$0xff]
        %v353 = vld [vmem:[%s258 + $0x2d0] sm:$0xff]
        %v354 = vld [vmem:[%s258 + $0x2d8] sm:$0xff]
        %v355 = vld [vmem:[%s258 + $0x2e0] sm:$0xff]
        %v356 = vld [vmem:[%s258 + $0x2e8] sm:$0xff]
        %v357 = vld [vmem:[%s258 + $0x2f0] sm:$0xff]
        %v358 = vld [vmem:[%s258 + $0x2f8] sm:$0xff]
        %v359 = vld [vmem:[%s258 + $0x300] sm:$0xff]
        %v360 = vld [vmem:[%s258 + $0x308] sm:$0xff]
        %v361 = vld [vmem:[%s258 + $0x310] sm:$0xff]
        %v362 = vld [vmem:[%s258 + $0x318] sm:$0xff]
        %v363 = vld [vmem:[%s258 + $0x320] sm:$0xff]
        %v364 = vld [vmem:[%s258 + $0x328] sm:$0xff]
        %v365 = vld [vmem:[%s258 + $0x330] sm:$0xff]
        %v366 = vld [vmem:[%s258 + $0x338] sm:$0xff]
        %v367 = vld [vmem:[%s258 + $0x340] sm:$0xff]
        %v368 = vld [vmem:[%s258 + $0x348] sm:$0xff]
        %v369 = vld [vmem:[%s258 + $0x350] sm:$0xff]
        %v370 = vld [vmem:[%s258 + $0x358] sm:$0xff]
        %v371 = vld [vmem:[%s258 + $0x360] sm:$0xff]
        %v372 = vld [vmem:[%s258 + $0x368] sm:$0xff]
        %v373 = vld [vmem:[%s258 + $0x370] sm:$0xff]
        %v374 = vld [vmem:[%s258 + $0x378] sm:$0xff]
        %v375 = vld [vmem:[%s258 + $0x380] sm:$0xff]
        %v376 = vld [vmem:[%s258 + $0x388] sm:$0xff]
        %v377 = vld [vmem:[%s258 + $0x390] sm:$0xff]
        %v378 = vld [vmem:[%s258 + $0x398] sm:$0xff]
        %v379 = vld [vmem:[%s258 + $0x3a0] sm:$0xff]
        %v380 = vld [vmem:[%s258 + $0x3a8] sm:$0xff]
        %v381 = vld [vmem:[%s258 + $0x3b0] sm:$0xff]
        %v382 = vld [vmem:[%s258 + $0x3b8] sm:$0xff]
        %v383 = vld [vmem:[%s258 + $0x3c0] sm:$0xff]
        %v384 = vld [vmem:[%s258 + $0x3c8] sm:$0xff]
        %v385 = vld [vmem:[%s258 + $0x3d0] sm:$0xff]
        %v386 = vld [vmem:[%s258 + $0x3d8] sm:$0xff]
        %v387 = vld [vmem:[%s258 + $0x3e0] sm:$0xff]
        %v388 = vld [vmem:[%s258 + $0x3e8] sm:$0xff]
        %v389 = vld [vmem:[%s258 + $0x3f0] sm:$0xff]
        %v390 = vld [vmem:[%s258 + $0x3f8] sm:$0xff]
        %v391 = vld [vmem:[%s258 + $0x400] sm:$0xff]
        %v392 = vld [vmem:[%s258 + $0x408] sm:$0xff]
        %v393 = vld [vmem:[%s258 + $0x410] sm:$0xff]
        %v394 = vld [vmem:[%s258 + $0x418] sm:$0xff]
        %v395 = vld [vmem:[%s258 + $0x420] sm:$0xff]
        %v396 = vld [vmem:[%s258 + $0x428] sm:$0xff]
        %v397 = vld [vmem:[%s258 + $0x430] sm:$0xff]
        %v398 = vld [vmem:[%s258 + $0x438] sm:$0xff]
        %v399 = vld [vmem:[%s258 + $0x440] sm:$0xff]
        %v400 = vld [vmem:[%s258 + $0x448] sm:$0xff]
        %v401 = vld [vmem:[%s258 + $0x450] sm:$0xff]
        %v402 = vld [vmem:[%s258 + $0x458] sm:$0xff]
        %v403 = vld [vmem:[%s258 + $0x460] sm:$0xff]
        %v404 = vld [vmem:[%s258 + $0x468] sm:$0xff]
        %v405 = vld [vmem:[%s258 + $0x470] sm:$0xff]
        %v406 = vld [vmem:[%s258 + $0x478] sm:$0xff]
        %v407 = vld [vmem:[%s258 + $0x480] sm:$0xff]
        %v408 = vld [vmem:[%s258 + $0x488] sm:$0xff]
        %v409 = vld [vmem:[%s258 + $0x490] sm:$0xff]
        %v410 = vld [vmem:[%s258 + $0x498] sm:$0xff]
        %v411 = vld [vmem:[%s258 + $0x4a0] sm:$0xff]
        %v412 = vld [vmem:[%s258 + $0x4a8] sm:$0xff]
        %v413 = vld [vmem:[%s258 + $0x4b0] sm:$0xff]
        %v414 = vld [vmem:[%s258 + $0x4b8] sm:$0xff]
        %v415 = vld [vmem:[%s258 + $0x4c0] sm:$0xff]
        %v416 = vld [vmem:[%s258 + $0x4c8] sm:$0xff]
        %v417 = vld [vmem:[%s258 + $0x4d0] sm:$0xff]
        %v418 = vld [vmem:[%s258 + $0x4d8] sm:$0xff]
        %v419 = vld [vmem:[%s258 + $0x4e0] sm:$0xff]
        %v420 = vld [vmem:[%s258 + $0x4e8] sm:$0xff]
        %v421 = vld [vmem:[%s258 + $0x4f0] sm:$0xff]
        %v422 = vld [vmem:[%s258 + $0x4f8] sm:$0xff]
        %v423 = vld [vmem:[%s258 + $0x500] sm:$0xff]
        %v424 = vld [vmem:[%s258 + $0x508] sm:$0xff]
        %v425 = vld [vmem:[%s258 + $0x510] sm:$0xff]
        %v426 = vld [vmem:[%s258 + $0x518] sm:$0xff]
        %v427 = vld [vmem:[%s258 + $0x520] sm:$0xff]
        %v428 = vld [vmem:[%s258 + $0x528] sm:$0xff]
        %v429 = vld [vmem:[%s258 + $0x530] sm:$0xff]
        %v430 = vld [vmem:[%s258 + $0x538] sm:$0xff]
        %v431 = vld [vmem:[%s258 + $0x540] sm:$0xff]
        %v432 = vld [vmem:[%s258 + $0x548] sm:$0xff]
        %v433 = vld [vmem:[%s258 + $0x550] sm:$0xff]
        %v434 = vld [vmem:[%s258 + $0x558] sm:$0xff]
        %v435 = vld [vmem:[%s258 + $0x560] sm:$0xff]
        %v436 = vld [vmem:[%s258 + $0x568] sm:$0xff]
        %v437 = vld [vmem:[%s258 + $0x570] sm:$0xff]
        %v438 = vld [vmem:[%s258 + $0x578] sm:$0xff]
        %v439 = vld [vmem:[%s258 + $0x580] sm:$0xff]
        %v440 = vld [vmem:[%s258 + $0x588] sm:$0xff]
        %v441 = vld [vmem:[%s258 + $0x590] sm:$0xff]
        %v442 = vld [vmem:[%s258 + $0x598] sm:$0xff]
        %v443 = vld [vmem:[%s258 + $0x5a0] sm:$0xff]
        %v444 = vld [vmem:[%s258 + $0x5a8] sm:$0xff]
        %v445 = vld [vmem:[%s258 + $0x5b0] sm:$0xff]
        %v446 = vld [vmem:[%s258 + $0x5b8] sm:$0xff]
        %v447 = vld [vmem:[%s258 + $0x5c0] sm:$0xff]
        %v448 = vld [vmem:[%s258 + $0x5c8] sm:$0xff]
        %v449 = vld [vmem:[%s258 + $0x5d0] sm:$0xff]
        %v450 = vld [vmem:[%s258 + $0x5d8] sm:$0xff]
        %v451 = vld [vmem:[%s258 + $0x5e0] sm:$0xff]
        %v452 = vld [vmem:[%s258 + $0x5e8] sm:$0xff]
        %v453 = vld [vmem:[%s258 + $0x5f0] sm:$0xff]
        %v454 = vld [vmem:[%s258 + $0x5f8] sm:$0xff]
        %v455 = vld [vmem:[%s258 + $0x600] sm:$0xff]
        %v456 = vld [vmem:[%s258 + $0x608] sm:$0xff]
        %v457 = vld [vmem:[%s258 + $0x610] sm:$0xff]
        %v458 = vld [vmem:[%s258 + $0x618] sm:$0xff]
        %v459 = vld [vmem:[%s258 + $0x620] sm:$0xff]
        %v460 = vld [vmem:[%s258 + $0x628] sm:$0xff]
        %v461 = vld [vmem:[%s258 + $0x630] sm:$0xff]
        %v462 = vld [vmem:[%s258 + $0x638] sm:$0xff]
        %v463 = vld [vmem:[%s258 + $0x640] sm:$0xff]
        %v464 = vld [vmem:[%s258 + $0x648] sm:$0xff]
        %v465 = vld [vmem:[%s258 + $0x650] sm:$0xff]
        %v466 = vld [vmem:[%s258 + $0x658] sm:$0xff]
        %v467 = vld [vmem:[%s258 + $0x660] sm:$0xff]
        %v468 = vld [vmem:[%s258 + $0x668] sm:$0xff]
        %v469 = vld [vmem:[%s258 + $0x670] sm:$0xff]
        %v470 = vld [vmem:[%s258 + $0x678] sm:$0xff]
        %v471 = vld [vmem:[%s258 + $0x680] sm:$0xff]
        %v472 = vld [vmem:[%s258 + $0x688] sm:$0xff]
        %v473 = vld [vmem:[%s258 + $0x690] sm:$0xff]
        %v474 = vld [vmem:[%s258 + $0x698] sm:$0xff]
        %v475 = vld [vmem:[%s258 + $0x6a0] sm:$0xff]
        %v476 = vld [vmem:[%s258 + $0x6a8] sm:$0xff]
        %v477 = vld [vmem:[%s258 + $0x6b0] sm:$0xff]
        %v478 = vld [vmem:[%s258 + $0x6b8] sm:$0xff]
        %v479 = vld [vmem:[%s258 + $0x6c0] sm:$0xff]
        %v480 = vld [vmem:[%s258 + $0x6c8] sm:$0xff]
        %v481 = vld [vmem:[%s258 + $0x6d0] sm:$0xff]
        %v482 = vld [vmem:[%s258 + $0x6d8] sm:$0xff]
        %v483 = vld [vmem:[%s258 + $0x6e0] sm:$0xff]
        %v484 = vld [vmem:[%s258 + $0x6e8] sm:$0xff]
        %v485 = vld [vmem:[%s258 + $0x6f0] sm:$0xff]
        %v486 = vld [vmem:[%s258 + $0x6f8] sm:$0xff]
        %v487 = vld [vmem:[%s258 + $0x700] sm:$0xff]
        %v488 = vld [vmem:[%s258 + $0x708] sm:$0xff]
        %v489 = vld [vmem:[%s258 + $0x710] sm:$0xff]
        %v490 = vld [vmem:[%s258 + $0x718] sm:$0xff]
        %v491 = vld [vmem:[%s258 + $0x720] sm:$0xff]
        %v492 = vld [vmem:[%s258 + $0x728] sm:$0xff]
        %v493 = vld [vmem:[%s258 + $0x730] sm:$0xff]
        %v494 = vld [vmem:[%s258 + $0x738] sm:$0xff]
        %v495 = vld [vmem:[%s258 + $0x740] sm:$0xff]
        %v496 = vld [vmem:[%s258 + $0x748] sm:$0xff]
        %v497 = vld [vmem:[%s258 + $0x750] sm:$0xff]
        %v498 = vld [vmem:[%s258 + $0x758] sm:$0xff]
        %v499 = vld [vmem:[%s258 + $0x760] sm:$0xff]
        %v500 = vld [vmem:[%s258 + $0x768] sm:$0xff]
        %v501 = vld [vmem:[%s258 + $0x770] sm:$0xff]
        %v502 = vld [vmem:[%s258 + $0x778] sm:$0xff]
        %v503 = vld [vmem:[%s258 + $0x780] sm:$0xff]
        %v504 = vld [vmem:[%s258 + $0x788] sm:$0xff]
        %v505 = vld [vmem:[%s258 + $0x790] sm:$0xff]
        %v506 = vld [vmem:[%s258 + $0x798] sm:$0xff]
        %v507 = vld [vmem:[%s258 + $0x7a0] sm:$0xff]
        %v508 = vld [vmem:[%s258 + $0x7a8] sm:$0xff]
        %v509 = vld [vmem:[%s258 + $0x7b0] sm:$0xff]
        %v510 = vld [vmem:[%s258 + $0x7b8] sm:$0xff]
        %v511 = vld [vmem:[%s258 + $0x7c0] sm:$0xff]
        %v512 = vld [vmem:[%s258 + $0x7c8] sm:$0xff]
        %v513 = vld [vmem:[%s258 + $0x7d0] sm:$0xff]
        %v514 = vld [vmem:[%s258 + $0x7d8] sm:$0xff]
        %v515 = vld [vmem:[%s258 + $0x7e0] sm:$0xff]
        %v516 = vld [vmem:[%s258 + $0x7e8] sm:$0xff]
        %v517 = vld [vmem:[%s258 + $0x7f0] sm:$0xff]
        %v518 = vld [vmem:[%s258 + $0x7f8] sm:$0xff]
        %v519 = vld [vmem:[%s1] sm:$0xff]
        %v520 = vld [vmem:[%s1 + $0x8] sm:$0xff]
        %v521 = vld [vmem:[%s1 + $0x10] sm:$0xff]
        %v522 = vld [vmem:[%s1 + $0x18] sm:$0xff]
        %v523 = vld [vmem:[%s1 + $0x20] sm:$0xf]
        %vm524 = vcmask 293888
        %v526 = vsel %vm524, %v263, 0
        %v529 = vsel %vm524, %v264, 0
        %v532 = vsel %vm524, %v265, 0
        %v535 = vsel %vm524, %v266, 0
        %v538 = vsel %vm524, %v267, 0
        %v541 = vsel %vm524, %v268, 0
        %v544 = vsel %vm524, %v269, 0
        %v547 = vsel %vm524, %v270, 0
        %v550 = vsel %vm524, %v271, 0
        %v553 = vsel %vm524, %v272, 0
        %v556 = vsel %vm524, %v273, 0
        %v559 = vsel %vm524, %v274, 0
        %v562 = vsel %vm524, %v275, 0
        %v565 = vsel %vm524, %v276, 0
        %v568 = vsel %vm524, %v277, 0
        %v571 = vsel %vm524, %v278, 0
        %v574 = vsel %vm524, %v279, 0
        %v577 = vsel %vm524, %v280, 0
        %v580 = vsel %vm524, %v281, 0
        %v583 = vsel %vm524, %v282, 0
        %v586 = vsel %vm524, %v283, 0
        %v589 = vsel %vm524, %v284, 0
        %v592 = vsel %vm524, %v285, 0
        %v595 = vsel %vm524, %v286, 0
        %v598 = vsel %vm524, %v287, 0
        %v601 = vsel %vm524, %v288, 0
        %v604 = vsel %vm524, %v289, 0
        %v607 = vsel %vm524, %v290, 0
        %v610 = vsel %vm524, %v291, 0
        %v613 = vsel %vm524, %v292, 0
        %v616 = vsel %vm524, %v293, 0
        %v619 = vsel %vm524, %v294, 0
        %v622 = vsel %vm524, %v295, 0
        %v625 = vsel %vm524, %v296, 0
        %v628 = vsel %vm524, %v297, 0
        %v631 = vsel %vm524, %v298, 0
        %v634 = vsel %vm524, %v299, 0
        %v637 = vsel %vm524, %v300, 0
        %v640 = vsel %vm524, %v301, 0
        %v643 = vsel %vm524, %v302, 0
        %v646 = vsel %vm524, %v303, 0
        %v649 = vsel %vm524, %v304, 0
        %v652 = vsel %vm524, %v305, 0
        %v655 = vsel %vm524, %v306, 0
        %v658 = vsel %vm524, %v307, 0
        %v661 = vsel %vm524, %v308, 0
        %v664 = vsel %vm524, %v309, 0
        %v667 = vsel %vm524, %v310, 0
        %v670 = vsel %vm524, %v311, 0
        %v673 = vsel %vm524, %v312, 0
        %v676 = vsel %vm524, %v313, 0
        %v679 = vsel %vm524, %v314, 0
        %v682 = vsel %vm524, %v315, 0
        %v685 = vsel %vm524, %v316, 0
        %v688 = vsel %vm524, %v317, 0
        %v691 = vsel %vm524, %v318, 0
        %v694 = vsel %vm524, %v319, 0
        %v697 = vsel %vm524, %v320, 0
        %v700 = vsel %vm524, %v321, 0
        %v703 = vsel %vm524, %v322, 0
        %v706 = vsel %vm524, %v323, 0
        %v709 = vsel %vm524, %v324, 0
        %v712 = vsel %vm524, %v325, 0
        %v715 = vsel %vm524, %v326, 0
        %v718 = vsel %vm524, %v327, 0
        %v721 = vsel %vm524, %v328, 0
        %v724 = vsel %vm524, %v329, 0
        %v727 = vsel %vm524, %v330, 0
        %v730 = vsel %vm524, %v331, 0
        %v733 = vsel %vm524, %v332, 0
        %v736 = vsel %vm524, %v333, 0
        %v739 = vsel %vm524, %v334, 0
        %v742 = vsel %vm524, %v335, 0
        %v745 = vsel %vm524, %v336, 0
        %v748 = vsel %vm524, %v337, 0
        %v751 = vsel %vm524, %v338, 0
        %v754 = vsel %vm524, %v339, 0
        %v757 = vsel %vm524, %v340, 0
        %v760 = vsel %vm524, %v341, 0
        %v763 = vsel %vm524, %v342, 0
        %v766 = vsel %vm524, %v343, 0
        %v769 = vsel %vm524, %v344, 0
        %v772 = vsel %vm524, %v345, 0
        %v775 = vsel %vm524, %v346, 0
        %v778 = vsel %vm524, %v347, 0
        %v781 = vsel %vm524, %v348, 0
        %v784 = vsel %vm524, %v349, 0
        %v787 = vsel %vm524, %v350, 0
        %v790 = vsel %vm524, %v351, 0
        %v793 = vsel %vm524, %v352, 0
        %v796 = vsel %vm524, %v353, 0
        %v799 = vsel %vm524, %v354, 0
        %v802 = vsel %vm524, %v355, 0
        %v805 = vsel %vm524, %v356, 0
        %v808 = vsel %vm524, %v357, 0
        %v811 = vsel %vm524, %v358, 0
        %v814 = vsel %vm524, %v359, 0
        %v817 = vsel %vm524, %v360, 0
        %v820 = vsel %vm524, %v361, 0
        %v823 = vsel %vm524, %v362, 0
        %v826 = vsel %vm524, %v363, 0
        %v829 = vsel %vm524, %v364, 0
        %v832 = vsel %vm524, %v365, 0
        %v835 = vsel %vm524, %v366, 0
        %v838 = vsel %vm524, %v367, 0
        %v841 = vsel %vm524, %v368, 0
        %v844 = vsel %vm524, %v369, 0
        %v847 = vsel %vm524, %v370, 0
        %v850 = vsel %vm524, %v371, 0
        %v853 = vsel %vm524, %v372, 0
        %v856 = vsel %vm524, %v373, 0
        %v859 = vsel %vm524, %v374, 0
        %v862 = vsel %vm524, %v375, 0
        %v865 = vsel %vm524, %v376, 0
        %v868 = vsel %vm524, %v377, 0
        %v871 = vsel %vm524, %v378, 0
        %v874 = vsel %vm524, %v379, 0
        %v877 = vsel %vm524, %v380, 0
        %v880 = vsel %vm524, %v381, 0
        %v883 = vsel %vm524, %v382, 0
        %v886 = vsel %vm524, %v383, 0
        %v889 = vsel %vm524, %v384, 0
        %v892 = vsel %vm524, %v385, 0
        %v895 = vsel %vm524, %v386, 0
        %v898 = vsel %vm524, %v387, 0
        %v901 = vsel %vm524, %v388, 0
        %v904 = vsel %vm524, %v389, 0
        %v907 = vsel %vm524, %v390, 0
        %v910 = vsel %vm524, %v391, 0
        %v913 = vsel %vm524, %v392, 0
        %v916 = vsel %vm524, %v393, 0
        %v919 = vsel %vm524, %v394, 0
        %v922 = vsel %vm524, %v395, 0
        %v925 = vsel %vm524, %v396, 0
        %v928 = vsel %vm524, %v397, 0
        %v931 = vsel %vm524, %v398, 0
        %v934 = vsel %vm524, %v399, 0
        %v937 = vsel %vm524, %v400, 0
        %v940 = vsel %vm524, %v401, 0
        %v943 = vsel %vm524, %v402, 0
        %v946 = vsel %vm524, %v403, 0
        %v949 = vsel %vm524, %v404, 0
        %v952 = vsel %vm524, %v405, 0
        %v955 = vsel %vm524, %v406, 0
        %v958 = vsel %vm524, %v407, 0
        %v961 = vsel %vm524, %v408, 0
        %v964 = vsel %vm524, %v409, 0
        %v967 = vsel %vm524, %v410, 0
        %v970 = vsel %vm524, %v411, 0
        %v973 = vsel %vm524, %v412, 0
        %v976 = vsel %vm524, %v413, 0
        %v979 = vsel %vm524, %v414, 0
        %v982 = vsel %vm524, %v415, 0
        %v985 = vsel %vm524, %v416, 0
        %v988 = vsel %vm524, %v417, 0
        %v991 = vsel %vm524, %v418, 0
        %v994 = vsel %vm524, %v419, 0
        %v997 = vsel %vm524, %v420, 0
        %v1000 = vsel %vm524, %v421, 0
        %v1003 = vsel %vm524, %v422, 0
        %v1006 = vsel %vm524, %v423, 0
        %v1009 = vsel %vm524, %v424, 0
        %v1012 = vsel %vm524, %v425, 0
        %v1015 = vsel %vm524, %v426, 0
        %v1018 = vsel %vm524, %v427, 0
        %v1021 = vsel %vm524, %v428, 0
        %v1024 = vsel %vm524, %v429, 0
        %v1027 = vsel %vm524, %v430, 0
        %v1030 = vsel %vm524, %v431, 0
        %v1033 = vsel %vm524, %v432, 0
        %v1036 = vsel %vm524, %v433, 0
        %v1039 = vsel %vm524, %v434, 0
        %v1042 = vsel %vm524, %v435, 0
        %v1045 = vsel %vm524, %v436, 0
        %v1048 = vsel %vm524, %v437, 0
        %v1051 = vsel %vm524, %v438, 0
        %v1054 = vsel %vm524, %v439, 0
        %v1057 = vsel %vm524, %v440, 0
        %v1060 = vsel %vm524, %v441, 0
        %v1063 = vsel %vm524, %v442, 0
        %v1066 = vsel %vm524, %v443, 0
        %v1069 = vsel %vm524, %v444, 0
        %v1072 = vsel %vm524, %v445, 0
        %v1075 = vsel %vm524, %v446, 0
        %v1078 = vsel %vm524, %v447, 0
        %v1081 = vsel %vm524, %v448, 0
        %v1084 = vsel %vm524, %v449, 0
        %v1087 = vsel %vm524, %v450, 0
        %v1090 = vsel %vm524, %v451, 0
        %v1093 = vsel %vm524, %v452, 0
        %v1096 = vsel %vm524, %v453, 0
        %v1099 = vsel %vm524, %v454, 0
        %v1102 = vsel %vm524, %v455, 0
        %v1105 = vsel %vm524, %v456, 0
        %v1108 = vsel %vm524, %v457, 0
        %v1111 = vsel %vm524, %v458, 0
        %v1114 = vsel %vm524, %v459, 0
        %v1117 = vsel %vm524, %v460, 0
        %v1120 = vsel %vm524, %v461, 0
        %v1123 = vsel %vm524, %v462, 0
        %v1126 = vsel %vm524, %v463, 0
        %v1129 = vsel %vm524, %v464, 0
        %v1132 = vsel %vm524, %v465, 0
        %v1135 = vsel %vm524, %v466, 0
        %v1138 = vsel %vm524, %v467, 0
        %v1141 = vsel %vm524, %v468, 0
        %v1144 = vsel %vm524, %v469, 0
        %v1147 = vsel %vm524, %v470, 0
        %v1150 = vsel %vm524, %v471, 0
        %v1153 = vsel %vm524, %v472, 0
        %v1156 = vsel %vm524, %v473, 0
        %v1159 = vsel %vm524, %v474, 0
        %v1162 = vsel %vm524, %v475, 0
        %v1165 = vsel %vm524, %v476, 0
        %v1168 = vsel %vm524, %v477, 0
        %v1171 = vsel %vm524, %v478, 0
        %v1174 = vsel %vm524, %v479, 0
        %v1177 = vsel %vm524, %v480, 0
        %v1180 = vsel %vm524, %v481, 0
        %v1183 = vsel %vm524, %v482, 0
        %v1186 = vsel %vm524, %v483, 0
        %v1189 = vsel %vm524, %v484, 0
        %v1192 = vsel %vm524, %v485, 0
        %v1195 = vsel %vm524, %v486, 0
        %v1198 = vsel %vm524, %v487, 0
        %v1201 = vsel %vm524, %v488, 0
        %v1204 = vsel %vm524, %v489, 0
        %v1207 = vsel %vm524, %v490, 0
        %v1210 = vsel %vm524, %v491, 0
        %v1213 = vsel %vm524, %v492, 0
        %v1216 = vsel %vm524, %v493, 0
        %v1219 = vsel %vm524, %v494, 0
        %v1222 = vsel %vm524, %v495, 0
        %v1225 = vsel %vm524, %v496, 0
        %v1228 = vsel %vm524, %v497, 0
        %v1231 = vsel %vm524, %v498, 0
        %v1234 = vsel %vm524, %v499, 0
        %v1237 = vsel %vm524, %v500, 0
        %v1240 = vsel %vm524, %v501, 0
        %v1243 = vsel %vm524, %v502, 0
        %v1246 = vsel %vm524, %v503, 0
        %v1249 = vsel %vm524, %v504, 0
        %v1252 = vsel %vm524, %v505, 0
        %v1255 = vsel %vm524, %v506, 0
        %v1258 = vsel %vm524, %v507, 0
        %v1261 = vsel %vm524, %v508, 0
        %v1264 = vsel %vm524, %v509, 0
        %v1267 = vsel %vm524, %v510, 0
        %v1270 = vsel %vm524, %v511, 0
        %v1273 = vsel %vm524, %v512, 0
        %v1276 = vsel %vm524, %v513, 0
        %v1279 = vsel %vm524, %v514, 0
        %v1282 = vsel %vm524, %v515, 0
        %v1285 = vsel %vm524, %v516, 0
        %v1288 = vsel %vm524, %v517, 0
        %v1291 = vsel %vm524, %v518, 0
        %vm1293 = vcmask 1043456
        %v1295 = vsel %vm1293, %v523, 0
        %1297 = vmatprep.subr.mxu0 0.0
        %1298 = vmatpush1.msra.mxu0 %v519
        %1299 = vmatprep.subr.mxu0 0.0
        %1300 = vmatpush1.msra.mxu0 %v520
        %1301 = vmatprep.subr.mxu0 0.0
        %1302 = vmatpush1.msra.mxu0 %v521
        %1303 = vmatprep.subr.mxu0 0.0
        %1304 = vmatpush1.msra.mxu0 %v522
        %1305 = vmatprep.subr.mxu0 0.0
        %1306 = vmatpush1.msra.mxu0 %v1295
        %1307 = vmatprep.subr.mxu0 0.0
        %1308 = vmatpush1.msra.mxu0 0.0
        %1309 = vmatprep.subr.mxu0 0.0
        %1310 = vmatpush1.msra.mxu0 0.0
        %1311 = vmatprep.subr.mxu0 0.0
        %1312 = vmatpush1.msra.mxu0 0.0
        %1313 = vmatprep.subr.mxu0 0.0
        %1314 = vmatpush1.msra.mxu0 0.0
        %1315 = vmatprep.subr.mxu0 0.0
        %1316 = vmatpush1.msra.mxu0 0.0
        %1317 = vmatprep.subr.mxu0 0.0
        %1318 = vmatpush1.msra.mxu0 0.0
        %1319 = vmatprep.subr.mxu0 0.0
        %1320 = vmatpush1.msra.mxu0 0.0
        %1321 = vmatprep.subr.mxu0 0.0
        %1322 = vmatpush1.msra.mxu0 0.0
        %1323 = vmatprep.subr.mxu0 0.0
        %1324 = vmatpush1.msra.mxu0 0.0
        %1325 = vmatprep.subr.mxu0 0.0
        %1326 = vmatpush1.msra.mxu0 0.0
        %1327 = vmatprep.subr.mxu0 0.0
        %1328 = vmatpush1.msra.mxu0 0.0
        %1329 = vmatprep.subr.mxu0 0.0
        %1330 = vmatpush1.msra.mxu0 0.0
        %1331 = vmatprep.subr.mxu0 0.0
        %1332 = vmatpush1.msra.mxu0 0.0
        %1333 = vmatprep.subr.mxu0 0.0
        %1334 = vmatpush1.msra.mxu0 0.0
        %1335 = vmatprep.subr.mxu0 0.0
        %1336 = vmatpush1.msra.mxu0 0.0
        %1337 = vmatprep.subr.mxu0 0.0
        %1338 = vmatpush1.msra.mxu0 0.0
        %1339 = vmatprep.subr.mxu0 0.0
        %1340 = vmatpush1.msra.mxu0 0.0
        %1341 = vmatprep.subr.mxu0 0.0
        %1342 = vmatpush1.msra.mxu0 0.0
        %1343 = vmatprep.subr.mxu0 0.0
        %1344 = vmatpush1.msra.mxu0 0.0
        %1345 = vmatprep.subr.mxu0 0.0
        %1346 = vmatpush1.msra.mxu0 0.0
        %1347 = vmatprep.subr.mxu0 0.0
        %1348 = vmatpush1.msra.mxu0 0.0
        %1349 = vmatprep.subr.mxu0 0.0
        %1350 = vmatpush1.msra.mxu0 0.0
        %1351 = vmatprep.subr.mxu0 0.0
        %1352 = vmatpush1.msra.mxu0 0.0
        %1353 = vmatprep.subr.mxu0 0.0
        %1354 = vmatpush1.msra.mxu0 0.0
        %1355 = vmatprep.subr.mxu0 0.0
        %1356 = vmatpush1.msra.mxu0 0.0
        %1357 = vmatprep.subr.mxu0 0.0
        %1358 = vmatpush1.msra.mxu0 0.0
        %1359 = vmatprep.subr.mxu0 0.0
        %1360 = vmatpush1.msra.mxu0 0.0
        %1361 = vmatprep.mubr.f32.mxu0 0.0
        %1362 = vmatmul.mubr.f32.gmra.mrb[0].mxu0 %v526
        %v1363 = vpop.f32.mrb[0].mxu0
        %v1364 = vadd.f32 0.0, %v1363
        %v1365 = vpop.f32.mrb[0].mxu0
        %1366 = vmatprep.mubr.f32.mxu0 0.0
        %1367 = vmatmul.mubr.f32.gmra.mrb[0].mxu0 %v529
        %v1368 = vpop.f32.mrb[0].mxu0
        %v1369 = vadd.f32 0.0, %v1368
        %v1370 = vpop.f32.mrb[0].mxu0
        %1371 = vmatprep.mubr.f32.mxu0 0.0
        %1372 = vmatmul.mubr.f32.gmra.mrb[0].mxu0 %v532
        %v1373 = vpop.f32.mrb[0].mxu0
        %v1374 = vadd.f32 0.0, %v1373
        %v1375 = vpop.f32.mrb[0].mxu0
        %1376 = vmatprep.mubr.f32.mxu0 0.0
        %1377 = vmatmul.mubr.f32.gmra.mrb[0].mxu0 %v535
        %v1378 = vpop.f32.mrb[0].mxu0
        %v1379 = vadd.f32 0.0, %v1378
        %v1380 = vpop.f32.mrb[0].mxu0
        %1381 = vmatprep.mubr.f32.mxu0 0.0
        %1382 = vmatmul.mubr.f32.gmra.mrb[0].mxu0 %v538
        %v1383 = vpop.f32.mrb[0].mxu0
        %v1384 = vadd.f32 0.0, %v1383
        %v1385 = vpop.f32.mrb[0].mxu0
        %1386 = vmatprep.mubr.f32.mxu0 0.0
        %1387 = vmatmul.mubr.f32.gmra.mrb[0].mxu0 %v541
        %v1388 = vpop.f32.mrb[0].mxu0
        %v1389 = vadd.f32 0.0, %v1388
        %v1390 = vpop.f32.mrb[0].mxu0
        %1391 = vmatprep.mubr.f32.mxu0 0.0
        %1392 = vmatmul.mubr.f32.gmra.mrb[0].mxu0 %v544
        %v1393 = vpop.f32.mrb[0].mxu0
        %v1394 = vadd.f32 0.0, %v1393
        %v1395 = vpop.f32.mrb[0].mxu0
        %1396 = vmatprep.mubr.f32.mxu0 0.0
        %1397 = vmatmul.mubr.f32.gmra.mrb[0].mxu0 %v547
        %v1398 = vpop.f32.mrb[0].mxu0
        %v1399 = vadd.f32 0.0, %v1398
        %v1400 = vpop.f32.mrb[0].mxu0
        %1401 = vmatprep.mubr.f32.mxu0 0.0
        %1402 = vmatmul.mubr.f32.gmra.mrb[0].mxu0 %v550
        %v1403 = vpop.f32.mrb[0].mxu0
        %v1404 = vadd.f32 0.0, %v1403
        %v1405 = vpop.f32.mrb[0].mxu0
        %1406 = vmatprep.mubr.f32.mxu0 0.0
        %1407 = vmatmul.mubr.f32.gmra.mrb[0].mxu0 %v553
        %v1408 = vpop.f32.mrb[0].mxu0
        %v1409 = vadd.f32 0.0, %v1408
        %v1410 = vpop.f32.mrb[0].mxu0
        %1411 = vmatprep.mubr.f32.mxu0 0.0
        %1412 = vmatmul.mubr.f32.gmra.mrb[0].mxu0 %v556
        %v1413 = vpop.f32.mrb[0].mxu0
        %v1414 = vadd.f32 0.0, %v1413
        %v1415 = vpop.f32.mrb[0].mxu0
        %1416 = vmatprep.mubr.f32.mxu0 0.0
        %1417 = vmatmul.mubr.f32.gmra.mrb[0].mxu0 %v559
        %v1418 = vpop.f32.mrb[0].mxu0
        %v1419 = vadd.f32 0.0, %v1418
        %v1420 = vpop.f32.mrb[0].mxu0
        %1421 = vmatprep.mubr.f32.mxu0 0.0
        %1422 = vmatmul.mubr.f32.gmra.mrb[0].mxu0 %v562
        %v1423 = vpop.f32.mrb[0].mxu0
        %v1424 = vadd.f32 0.0, %v1423
        %v1425 = vpop.f32.mrb[0].mxu0
        %1426 = vmatprep.mubr.f32.mxu0 0.0
        %1427 = vmatmul.mubr.f32.gmra.mrb[0].mxu0 %v565
        %v1428 = vpop.f32.mrb[0].mxu0
        %v1429 = vadd.f32 0.0, %v1428
        %v1430 = vpop.f32.mrb[0].mxu0
        %1431 = vmatprep.mubr.f32.mxu0 0.0
        %1432 = vmatmul.mubr.f32.gmra.mrb[0].mxu0 %v568
        %v1433 = vpop.f32.mrb[0].mxu0
        %v1434 = vadd.f32 0.0, %v1433
        %v1435 = vpop.f32.mrb[0].mxu0
        %1436 = vmatprep.mubr.f32.mxu0 0.0
        %1437 = vmatmul.mubr.f32.gmra.mrb[0].mxu0 %v571
        %v1438 = vpop.f32.mrb[0].mxu0
        %v1439 = vadd.f32 0.0, %v1438
        %v1440 = vpop.f32.mrb[0].mxu0
        %1441 = vmatprep.mubr.f32.mxu0 0.0
        %1442 = vmatmul.mubr.f32.gmra.mrb[0].mxu0 %v574
        %v1443 = vpop.f32.mrb[0].mxu0
        %v1444 = vadd.f32 0.0, %v1443
        %v1445 = vpop.f32.mrb[0].mxu0
        %1446 = vmatprep.mubr.f32.mxu0 0.0
        %1447 = vmatmul.mubr.f32.gmra.mrb[0].mxu0 %v577
        %v1448 = vpop.f32.mrb[0].mxu0
        %v1449 = vadd.f32 0.0, %v1448
        %v1450 = vpop.f32.mrb[0].mxu0
        %1451 = vmatprep.mubr.f32.mxu0 0.0
        %1452 = vmatmul.mubr.f32.gmra.mrb[0].mxu0 %v580
        %v1453 = vpop.f32.mrb[0].mxu0
        %v1454 = vadd.f32 0.0, %v1453
        %v1455 = vpop.f32.mrb[0].mxu0
        %1456 = vmatprep.mubr.f32.mxu0 0.0
        %1457 = vmatmul.mubr.f32.gmra.mrb[0].mxu0 %v583
        %v1458 = vpop.f32.mrb[0].mxu0
        %v1459 = vadd.f32 0.0, %v1458
        %v1460 = vpop.f32.mrb[0].mxu0
        %1461 = vmatprep.mubr.f32.mxu0 0.0
        %1462 = vmatmul.mubr.f32.gmra.mrb[0].mxu0 %v586
        %v1463 = vpop.f32.mrb[0].mxu0
        %v1464 = vadd.f32 0.0, %v1463
        %v1465 = vpop.f32.mrb[0].mxu0
        %1466 = vmatprep.mubr.f32.mxu0 0.0
        %1467 = vmatmul.mubr.f32.gmra.mrb[0].mxu0 %v589
        %v1468 = vpop.f32.mrb[0].mxu0
        %v1469 = vadd.f32 0.0, %v1468
        %v1470 = vpop.f32.mrb[0].mxu0
        %1471 = vmatprep.mubr.f32.mxu0 0.0
        %1472 = vmatmul.mubr.f32.gmra.mrb[0].mxu0 %v592
        %v1473 = vpop.f32.mrb[0].mxu0
        %v1474 = vadd.f32 0.0, %v1473
        %v1475 = vpop.f32.mrb[0].mxu0
        %1476 = vmatprep.mubr.f32.mxu0 0.0
        %1477 = vmatmul.mubr.f32.gmra.mrb[0].mxu0 %v595
        %v1478 = vpop.f32.mrb[0].mxu0
        %v1479 = vadd.f32 0.0, %v1478
        %v1480 = vpop.f32.mrb[0].mxu0
        %1481 = vmatprep.mubr.f32.mxu0 0.0
        %1482 = vmatmul.mubr.f32.gmra.mrb[0].mxu0 %v598
        %v1483 = vpop.f32.mrb[0].mxu0
        %v1484 = vadd.f32 0.0, %v1483
        %v1485 = vpop.f32.mrb[0].mxu0
        %1486 = vmatprep.mubr.f32.mxu0 0.0
        %1487 = vmatmul.mubr.f32.gmra.mrb[0].mxu0 %v601
        %v1488 = vpop.f32.mrb[0].mxu0
        %v1489 = vadd.f32 0.0, %v1488
        %v1490 = vpop.f32.mrb[0].mxu0
        %1491 = vmatprep.mubr.f32.mxu0 0.0
        %1492 = vmatmul.mubr.f32.gmra.mrb[0].mxu0 %v604
        %v1493 = vpop.f32.mrb[0].mxu0
        %v1494 = vadd.f32 0.0, %v1493
        %v1495 = vpop.f32.mrb[0].mxu0
        %1496 = vmatprep.mubr.f32.mxu0 0.0
        %1497 = vmatmul.mubr.f32.gmra.mrb[0].mxu0 %v607
        %v1498 = vpop.f32.mrb[0].mxu0
        %v1499 = vadd.f32 0.0, %v1498
        %v1500 = vpop.f32.mrb[0].mxu0
        %1501 = vmatprep.mubr.f32.mxu0 0.0
        %1502 = vmatmul.mubr.f32.gmra.mrb[0].mxu0 %v610
        %v1503 = vpop.f32.mrb[0].mxu0
        %v1504 = vadd.f32 0.0, %v1503
        %v1505 = vpop.f32.mrb[0].mxu0
        %1506 = vmatprep.mubr.f32.mxu0 0.0
        %1507 = vmatmul.mubr.f32.gmra.mrb[0].mxu0 %v613
        %v1508 = vpop.f32.mrb[0].mxu0
        %v1509 = vadd.f32 0.0, %v1508
        %v1510 = vpop.f32.mrb[0].mxu0
        %1511 = vmatprep.mubr.f32.mxu0 0.0
        %1512 = vmatmul.mubr.f32.gmra.mrb[0].mxu0 %v616
        %v1513 = vpop.f32.mrb[0].mxu0
        %v1514 = vadd.f32 0.0, %v1513
        %v1515 = vpop.f32.mrb[0].mxu0
        %1516 = vmatprep.mubr.f32.mxu0 0.0
        %1517 = vmatmul.mubr.f32.gmra.mrb[0].mxu0 %v619
        %v1518 = vpop.f32.mrb[0].mxu0
        %v1519 = vadd.f32 0.0, %v1518
        %v1520 = vpop.f32.mrb[0].mxu0
        %1521 = vmatprep.mubr.f32.mxu0 0.0
        %1522 = vmatmul.mubr.f32.gmra.mrb[0].mxu0 %v622
        %v1523 = vpop.f32.mrb[0].mxu0
        %v1524 = vadd.f32 0.0, %v1523
        %v1525 = vpop.f32.mrb[0].mxu0
        %1526 = vmatprep.mubr.f32.mxu0 0.0
        %1527 = vmatmul.mubr.f32.gmra.mrb[0].mxu0 %v625
        %v1528 = vpop.f32.mrb[0].mxu0
        %v1529 = vadd.f32 0.0, %v1528
        %v1530 = vpop.f32.mrb[0].mxu0
        %1531 = vmatprep.mubr.f32.mxu0 0.0
        %1532 = vmatmul.mubr.f32.gmra.mrb[0].mxu0 %v628
        %v1533 = vpop.f32.mrb[0].mxu0
        %v1534 = vadd.f32 0.0, %v1533
        %v1535 = vpop.f32.mrb[0].mxu0
        %1536 = vmatprep.mubr.f32.mxu0 0.0
        %1537 = vmatmul.mubr.f32.gmra.mrb[0].mxu0 %v631
        %v1538 = vpop.f32.mrb[0].mxu0
        %v1539 = vadd.f32 0.0, %v1538
        %v1540 = vpop.f32.mrb[0].mxu0
        %1541 = vmatprep.mubr.f32.mxu0 0.0
        %1542 = vmatmul.mubr.f32.gmra.mrb[0].mxu0 %v634
        %v1543 = vpop.f32.mrb[0].mxu0
        %v1544 = vadd.f32 0.0, %v1543
        %v1545 = vpop.f32.mrb[0].mxu0
        %1546 = vmatprep.mubr.f32.mxu0 0.0
        %1547 = vmatmul.mubr.f32.gmra.mrb[0].mxu0 %v637
        %v1548 = vpop.f32.mrb[0].mxu0
        %v1549 = vadd.f32 0.0, %v1548
        %v1550 = vpop.f32.mrb[0].mxu0
        %1551 = vmatprep.mubr.f32.mxu0 0.0
        %1552 = vmatmul.mubr.f32.gmra.mrb[0].mxu0 %v640
        %v1553 = vpop.f32.mrb[0].mxu0
        %v1554 = vadd.f32 0.0, %v1553
        %v1555 = vpop.f32.mrb[0].mxu0
        %1556 = vmatprep.mubr.f32.mxu0 0.0
        %1557 = vmatmul.mubr.f32.gmra.mrb[0].mxu0 %v643
        %v1558 = vpop.f32.mrb[0].mxu0
        %v1559 = vadd.f32 0.0, %v1558
        %v1560 = vpop.f32.mrb[0].mxu0
        %1561 = vmatprep.mubr.f32.mxu0 0.0
        %1562 = vmatmul.mubr.f32.gmra.mrb[0].mxu0 %v646
        %v1563 = vpop.f32.mrb[0].mxu0
        %v1564 = vadd.f32 0.0, %v1563
        %v1565 = vpop.f32.mrb[0].mxu0
        %1566 = vmatprep.mubr.f32.mxu0 0.0
        %1567 = vmatmul.mubr.f32.gmra.mrb[0].mxu0 %v649
        %v1568 = vpop.f32.mrb[0].mxu0
        %v1569 = vadd.f32 0.0, %v1568
        %v1570 = vpop.f32.mrb[0].mxu0
        %1571 = vmatprep.mubr.f32.mxu0 0.0
        %1572 = vmatmul.mubr.f32.gmra.mrb[0].mxu0 %v652
        %v1573 = vpop.f32.mrb[0].mxu0
        %v1574 = vadd.f32 0.0, %v1573
        %v1575 = vpop.f32.mrb[0].mxu0
        %1576 = vmatprep.mubr.f32.mxu0 0.0
        %1577 = vmatmul.mubr.f32.gmra.mrb[0].mxu0 %v655
        %v1578 = vpop.f32.mrb[0].mxu0
        %v1579 = vadd.f32 0.0, %v1578
        %v1580 = vpop.f32.mrb[0].mxu0
        %1581 = vmatprep.mubr.f32.mxu0 0.0
        %1582 = vmatmul.mubr.f32.gmra.mrb[0].mxu0 %v658
        %v1583 = vpop.f32.mrb[0].mxu0
        %v1584 = vadd.f32 0.0, %v1583
        %v1585 = vpop.f32.mrb[0].mxu0
        %1586 = vmatprep.mubr.f32.mxu0 0.0
        %1587 = vmatmul.mubr.f32.gmra.mrb[0].mxu0 %v661
        %v1588 = vpop.f32.mrb[0].mxu0
        %v1589 = vadd.f32 0.0, %v1588
        %v1590 = vpop.f32.mrb[0].mxu0
        %1591 = vmatprep.mubr.f32.mxu0 0.0
        %1592 = vmatmul.mubr.f32.gmra.mrb[0].mxu0 %v664
        %v1593 = vpop.f32.mrb[0].mxu0
        %v1594 = vadd.f32 0.0, %v1593
        %v1595 = vpop.f32.mrb[0].mxu0
        %1596 = vmatprep.mubr.f32.mxu0 0.0
        %1597 = vmatmul.mubr.f32.gmra.mrb[0].mxu0 %v667
        %v1598 = vpop.f32.mrb[0].mxu0
        %v1599 = vadd.f32 0.0, %v1598
        %v1600 = vpop.f32.mrb[0].mxu0
        %1601 = vmatprep.mubr.f32.mxu0 0.0
        %1602 = vmatmul.mubr.f32.gmra.mrb[0].mxu0 %v670
        %v1603 = vpop.f32.mrb[0].mxu0
        %v1604 = vadd.f32 0.0, %v1603
        %v1605 = vpop.f32.mrb[0].mxu0
        %1606 = vmatprep.mubr.f32.mxu0 0.0
        %1607 = vmatmul.mubr.f32.gmra.mrb[0].mxu0 %v673
        %v1608 = vpop.f32.mrb[0].mxu0
        %v1609 = vadd.f32 0.0, %v1608
        %v1610 = vpop.f32.mrb[0].mxu0
        %1611 = vmatprep.mubr.f32.mxu0 0.0
        %1612 = vmatmul.mubr.f32.gmra.mrb[0].mxu0 %v676
        %v1613 = vpop.f32.mrb[0].mxu0
        %v1614 = vadd.f32 0.0, %v1613
        %v1615 = vpop.f32.mrb[0].mxu0
        %1616 = vmatprep.mubr.f32.mxu0 0.0
        %1617 = vmatmul.mubr.f32.gmra.mrb[0].mxu0 %v679
        %v1618 = vpop.f32.mrb[0].mxu0
        %v1619 = vadd.f32 0.0, %v1618
        %v1620 = vpop.f32.mrb[0].mxu0
        %1621 = vmatprep.mubr.f32.mxu0 0.0
        %1622 = vmatmul.mubr.f32.gmra.mrb[0].mxu0 %v682
        %v1623 = vpop.f32.mrb[0].mxu0
        %v1624 = vadd.f32 0.0, %v1623
        %v1625 = vpop.f32.mrb[0].mxu0
        %1626 = vmatprep.mubr.f32.mxu0 0.0
        %1627 = vmatmul.mubr.f32.gmra.mrb[0].mxu0 %v685
        %v1628 = vpop.f32.mrb[0].mxu0
        %v1629 = vadd.f32 0.0, %v1628
        %v1630 = vpop.f32.mrb[0].mxu0
        %1631 = vmatprep.mubr.f32.mxu0 0.0
        %1632 = vmatmul.mubr.f32.gmra.mrb[0].mxu0 %v688
        %v1633 = vpop.f32.mrb[0].mxu0
        %v1634 = vadd.f32 0.0, %v1633
        %v1635 = vpop.f32.mrb[0].mxu0
        %1636 = vmatprep.mubr.f32.mxu0 0.0
        %1637 = vmatmul.mubr.f32.gmra.mrb[0].mxu0 %v691
        %v1638 = vpop.f32.mrb[0].mxu0
        %v1639 = vadd.f32 0.0, %v1638
        %v1640 = vpop.f32.mrb[0].mxu0
        %1641 = vmatprep.mubr.f32.mxu0 0.0
        %1642 = vmatmul.mubr.f32.gmra.mrb[0].mxu0 %v694
        %v1643 = vpop.f32.mrb[0].mxu0
        %v1644 = vadd.f32 0.0, %v1643
        %v1645 = vpop.f32.mrb[0].mxu0
        %1646 = vmatprep.mubr.f32.mxu0 0.0
        %1647 = vmatmul.mubr.f32.gmra.mrb[0].mxu0 %v697
        %v1648 = vpop.f32.mrb[0].mxu0
        %v1649 = vadd.f32 0.0, %v1648
        %v1650 = vpop.f32.mrb[0].mxu0
        %1651 = vmatprep.mubr.f32.mxu0 0.0
        %1652 = vmatmul.mubr.f32.gmra.mrb[0].mxu0 %v700
        %v1653 = vpop.f32.mrb[0].mxu0
        %v1654 = vadd.f32 0.0, %v1653
        %v1655 = vpop.f32.mrb[0].mxu0
        %1656 = vmatprep.mubr.f32.mxu0 0.0
        %1657 = vmatmul.mubr.f32.gmra.mrb[0].mxu0 %v703
        %v1658 = vpop.f32.mrb[0].mxu0
        %v1659 = vadd.f32 0.0, %v1658
        %v1660 = vpop.f32.mrb[0].mxu0
        %1661 = vmatprep.mubr.f32.mxu0 0.0
        %1662 = vmatmul.mubr.f32.gmra.mrb[0].mxu0 %v706
        %v1663 = vpop.f32.mrb[0].mxu0
        %v1664 = vadd.f32 0.0, %v1663
        %v1665 = vpop.f32.mrb[0].mxu0
        %1666 = vmatprep.mubr.f32.mxu0 0.0
        %1667 = vmatmul.mubr.f32.gmra.mrb[0].mxu0 %v709
        %v1668 = vpop.f32.mrb[0].mxu0
        %v1669 = vadd.f32 0.0, %v1668
        %v1670 = vpop.f32.mrb[0].mxu0
        %1671 = vmatprep.mubr.f32.mxu0 0.0
        %1672 = vmatmul.mubr.f32.gmra.mrb[0].mxu0 %v712
        %v1673 = vpop.f32.mrb[0].mxu0
        %v1674 = vadd.f32 0.0, %v1673
        %v1675 = vpop.f32.mrb[0].mxu0
        %1676 = vmatprep.mubr.f32.mxu0 0.0
        %1677 = vmatmul.mubr.f32.gmra.mrb[0].mxu0 %v715
        %v1678 = vpop.f32.mrb[0].mxu0
        %v1679 = vadd.f32 0.0, %v1678
        %v1680 = vpop.f32.mrb[0].mxu0
        %1681 = vmatprep.mubr.f32.mxu0 0.0
        %1682 = vmatmul.mubr.f32.gmra.mrb[0].mxu0 %v718
        %v1683 = vpop.f32.mrb[0].mxu0
        %v1684 = vadd.f32 0.0, %v1683
        %v1685 = vpop.f32.mrb[0].mxu0
        %1686 = vmatprep.mubr.f32.mxu0 0.0
        %1687 = vmatmul.mubr.f32.gmra.mrb[0].mxu0 %v721
        %v1688 = vpop.f32.mrb[0].mxu0
        %v1689 = vadd.f32 0.0, %v1688
        %v1690 = vpop.f32.mrb[0].mxu0
        %1691 = vmatprep.mubr.f32.mxu0 0.0
        %1692 = vmatmul.mubr.f32.gmra.mrb[0].mxu0 %v724
        %v1693 = vpop.f32.mrb[0].mxu0
        %v1694 = vadd.f32 0.0, %v1693
        %v1695 = vpop.f32.mrb[0].mxu0
        %1696 = vmatprep.mubr.f32.mxu0 0.0
        %1697 = vmatmul.mubr.f32.gmra.mrb[0].mxu0 %v727
        %v1698 = vpop.f32.mrb[0].mxu0
        %v1699 = vadd.f32 0.0, %v1698
        %v1700 = vpop.f32.mrb[0].mxu0
        %1701 = vmatprep.mubr.f32.mxu0 0.0
        %1702 = vmatmul.mubr.f32.gmra.mrb[0].mxu0 %v730
        %v1703 = vpop.f32.mrb[0].mxu0
        %v1704 = vadd.f32 0.0, %v1703
        %v1705 = vpop.f32.mrb[0].mxu0
        %1706 = vmatprep.mubr.f32.mxu0 0.0
        %1707 = vmatmul.mubr.f32.gmra.mrb[0].mxu0 %v733
        %v1708 = vpop.f32.mrb[0].mxu0
        %v1709 = vadd.f32 0.0, %v1708
        %v1710 = vpop.f32.mrb[0].mxu0
        %1711 = vmatprep.mubr.f32.mxu0 0.0
        %1712 = vmatmul.mubr.f32.gmra.mrb[0].mxu0 %v736
        %v1713 = vpop.f32.mrb[0].mxu0
        %v1714 = vadd.f32 0.0, %v1713
        %v1715 = vpop.f32.mrb[0].mxu0
        %1716 = vmatprep.mubr.f32.mxu0 0.0
        %1717 = vmatmul.mubr.f32.gmra.mrb[0].mxu0 %v739
        %v1718 = vpop.f32.mrb[0].mxu0
        %v1719 = vadd.f32 0.0, %v1718
        %v1720 = vpop.f32.mrb[0].mxu0
        %1721 = vmatprep.mubr.f32.mxu0 0.0
        %1722 = vmatmul.mubr.f32.gmra.mrb[0].mxu0 %v742
        %v1723 = vpop.f32.mrb[0].mxu0
        %v1724 = vadd.f32 0.0, %v1723
        %v1725 = vpop.f32.mrb[0].mxu0
        %1726 = vmatprep.mubr.f32.mxu0 0.0
        %1727 = vmatmul.mubr.f32.gmra.mrb[0].mxu0 %v745
        %v1728 = vpop.f32.mrb[0].mxu0
        %v1729 = vadd.f32 0.0, %v1728
        %v1730 = vpop.f32.mrb[0].mxu0
        %1731 = vmatprep.mubr.f32.mxu0 0.0
        %1732 = vmatmul.mubr.f32.gmra.mrb[0].mxu0 %v748
        %v1733 = vpop.f32.mrb[0].mxu0
        %v1734 = vadd.f32 0.0, %v1733
        %v1735 = vpop.f32.mrb[0].mxu0
        %1736 = vmatprep.mubr.f32.mxu0 0.0
        %1737 = vmatmul.mubr.f32.gmra.mrb[0].mxu0 %v751
        %v1738 = vpop.f32.mrb[0].mxu0
        %v1739 = vadd.f32 0.0, %v1738
        %v1740 = vpop.f32.mrb[0].mxu0
        %1741 = vmatprep.mubr.f32.mxu0 0.0
        %1742 = vmatmul.mubr.f32.gmra.mrb[0].mxu0 %v754
        %v1743 = vpop.f32.mrb[0].mxu0
        %v1744 = vadd.f32 0.0, %v1743
        %v1745 = vpop.f32.mrb[0].mxu0
        %1746 = vmatprep.mubr.f32.mxu0 0.0
        %1747 = vmatmul.mubr.f32.gmra.mrb[0].mxu0 %v757
        %v1748 = vpop.f32.mrb[0].mxu0
        %v1749 = vadd.f32 0.0, %v1748
        %v1750 = vpop.f32.mrb[0].mxu0
        %1751 = vmatprep.mubr.f32.mxu0 0.0
        %1752 = vmatmul.mubr.f32.gmra.mrb[0].mxu0 %v760
        %v1753 = vpop.f32.mrb[0].mxu0
        %v1754 = vadd.f32 0.0, %v1753
        %v1755 = vpop.f32.mrb[0].mxu0
        %1756 = vmatprep.mubr.f32.mxu0 0.0
        %1757 = vmatmul.mubr.f32.gmra.mrb[0].mxu0 %v763
        %v1758 = vpop.f32.mrb[0].mxu0
        %v1759 = vadd.f32 0.0, %v1758
        %v1760 = vpop.f32.mrb[0].mxu0
        %1761 = vmatprep.mubr.f32.mxu0 0.0
        %1762 = vmatmul.mubr.f32.gmra.mrb[0].mxu0 %v766
        %v1763 = vpop.f32.mrb[0].mxu0
        %v1764 = vadd.f32 0.0, %v1763
        %v1765 = vpop.f32.mrb[0].mxu0
        %1766 = vmatprep.mubr.f32.mxu0 0.0
        %1767 = vmatmul.mubr.f32.gmra.mrb[0].mxu0 %v769
        %v1768 = vpop.f32.mrb[0].mxu0
        %v1769 = vadd.f32 0.0, %v1768
        %v1770 = vpop.f32.mrb[0].mxu0
        %1771 = vmatprep.mubr.f32.mxu0 0.0
        %1772 = vmatmul.mubr.f32.gmra.mrb[0].mxu0 %v772
        %v1773 = vpop.f32.mrb[0].mxu0
        %v1774 = vadd.f32 0.0, %v1773
        %v1775 = vpop.f32.mrb[0].mxu0
        %1776 = vmatprep.mubr.f32.mxu0 0.0
        %1777 = vmatmul.mubr.f32.gmra.mrb[0].mxu0 %v775
        %v1778 = vpop.f32.mrb[0].mxu0
        %v1779 = vadd.f32 0.0, %v1778
        %v1780 = vpop.f32.mrb[0].mxu0
        %1781 = vmatprep.mubr.f32.mxu0 0.0
        %1782 = vmatmul.mubr.f32.gmra.mrb[0].mxu0 %v778
        %v1783 = vpop.f32.mrb[0].mxu0
        %v1784 = vadd.f32 0.0, %v1783
        %v1785 = vpop.f32.mrb[0].mxu0
        %1786 = vmatprep.mubr.f32.mxu0 0.0
        %1787 = vmatmul.mubr.f32.gmra.mrb[0].mxu0 %v781
        %v1788 = vpop.f32.mrb[0].mxu0
        %v1789 = vadd.f32 0.0, %v1788
        %v1790 = vpop.f32.mrb[0].mxu0
        %1791 = vmatprep.mubr.f32.mxu0 0.0
        %1792 = vmatmul.mubr.f32.gmra.mrb[0].mxu0 %v784
        %v1793 = vpop.f32.mrb[0].mxu0
        %v1794 = vadd.f32 0.0, %v1793
        %v1795 = vpop.f32.mrb[0].mxu0
        %1796 = vmatprep.mubr.f32.mxu0 0.0
        %1797 = vmatmul.mubr.f32.gmra.mrb[0].mxu0 %v787
        %v1798 = vpop.f32.mrb[0].mxu0
        %v1799 = vadd.f32 0.0, %v1798
        %v1800 = vpop.f32.mrb[0].mxu0
        %1801 = vmatprep.mubr.f32.mxu0 0.0
        %1802 = vmatmul.mubr.f32.gmra.mrb[0].mxu0 %v790
        %v1803 = vpop.f32.mrb[0].mxu0
        %v1804 = vadd.f32 0.0, %v1803
        %v1805 = vpop.f32.mrb[0].mxu0
        %1806 = vmatprep.mubr.f32.mxu0 0.0
        %1807 = vmatmul.mubr.f32.gmra.mrb[0].mxu0 %v793
        %v1808 = vpop.f32.mrb[0].mxu0
        %v1809 = vadd.f32 0.0, %v1808
        %v1810 = vpop.f32.mrb[0].mxu0
        %1811 = vmatprep.mubr.f32.mxu0 0.0
        %1812 = vmatmul.mubr.f32.gmra.mrb[0].mxu0 %v796
        %v1813 = vpop.f32.mrb[0].mxu0
        %v1814 = vadd.f32 0.0, %v1813
        %v1815 = vpop.f32.mrb[0].mxu0
        %1816 = vmatprep.mubr.f32.mxu0 0.0
        %1817 = vmatmul.mubr.f32.gmra.mrb[0].mxu0 %v799
        %v1818 = vpop.f32.mrb[0].mxu0
        %v1819 = vadd.f32 0.0, %v1818
        %v1820 = vpop.f32.mrb[0].mxu0
        %1821 = vmatprep.mubr.f32.mxu0 0.0
        %1822 = vmatmul.mubr.f32.gmra.mrb[0].mxu0 %v802
        %v1823 = vpop.f32.mrb[0].mxu0
        %v1824 = vadd.f32 0.0, %v1823
        %v1825 = vpop.f32.mrb[0].mxu0
        %1826 = vmatprep.mubr.f32.mxu0 0.0
        %1827 = vmatmul.mubr.f32.gmra.mrb[0].mxu0 %v805
        %v1828 = vpop.f32.mrb[0].mxu0
        %v1829 = vadd.f32 0.0, %v1828
        %v1830 = vpop.f32.mrb[0].mxu0
        %1831 = vmatprep.mubr.f32.mxu0 0.0
        %1832 = vmatmul.mubr.f32.gmra.mrb[0].mxu0 %v808
        %v1833 = vpop.f32.mrb[0].mxu0
        %v1834 = vadd.f32 0.0, %v1833
        %v1835 = vpop.f32.mrb[0].mxu0
        %1836 = vmatprep.mubr.f32.mxu0 0.0
        %1837 = vmatmul.mubr.f32.gmra.mrb[0].mxu0 %v811
        %v1838 = vpop.f32.mrb[0].mxu0
        %v1839 = vadd.f32 0.0, %v1838
        %v1840 = vpop.f32.mrb[0].mxu0
        %1841 = vmatprep.mubr.f32.mxu0 0.0
        %1842 = vmatmul.mubr.f32.gmra.mrb[0].mxu0 %v814
        %v1843 = vpop.f32.mrb[0].mxu0
        %v1844 = vadd.f32 0.0, %v1843
        %v1845 = vpop.f32.mrb[0].mxu0
        %1846 = vmatprep.mubr.f32.mxu0 0.0
        %1847 = vmatmul.mubr.f32.gmra.mrb[0].mxu0 %v817
        %v1848 = vpop.f32.mrb[0].mxu0
        %v1849 = vadd.f32 0.0, %v1848
        %v1850 = vpop.f32.mrb[0].mxu0
        %1851 = vmatprep.mubr.f32.mxu0 0.0
        %1852 = vmatmul.mubr.f32.gmra.mrb[0].mxu0 %v820
        %v1853 = vpop.f32.mrb[0].mxu0
        %v1854 = vadd.f32 0.0, %v1853
        %v1855 = vpop.f32.mrb[0].mxu0
        %1856 = vmatprep.mubr.f32.mxu0 0.0
        %1857 = vmatmul.mubr.f32.gmra.mrb[0].mxu0 %v823
        %v1858 = vpop.f32.mrb[0].mxu0
        %v1859 = vadd.f32 0.0, %v1858
        %v1860 = vpop.f32.mrb[0].mxu0
        %1861 = vmatprep.mubr.f32.mxu0 0.0
        %1862 = vmatmul.mubr.f32.gmra.mrb[0].mxu0 %v826
        %v1863 = vpop.f32.mrb[0].mxu0
        %v1864 = vadd.f32 0.0, %v1863
        %v1865 = vpop.f32.mrb[0].mxu0
        %1866 = vmatprep.mubr.f32.mxu0 0.0
        %1867 = vmatmul.mubr.f32.gmra.mrb[0].mxu0 %v829
        %v1868 = vpop.f32.mrb[0].mxu0
        %v1869 = vadd.f32 0.0, %v1868
        %v1870 = vpop.f32.mrb[0].mxu0
        %1871 = vmatprep.mubr.f32.mxu0 0.0
        %1872 = vmatmul.mubr.f32.gmra.mrb[0].mxu0 %v832
        %v1873 = vpop.f32.mrb[0].mxu0
        %v1874 = vadd.f32 0.0, %v1873
        %v1875 = vpop.f32.mrb[0].mxu0
        %1876 = vmatprep.mubr.f32.mxu0 0.0
        %1877 = vmatmul.mubr.f32.gmra.mrb[0].mxu0 %v835
        %v1878 = vpop.f32.mrb[0].mxu0
        %v1879 = vadd.f32 0.0, %v1878
        %v1880 = vpop.f32.mrb[0].mxu0
        %1881 = vmatprep.mubr.f32.mxu0 0.0
        %1882 = vmatmul.mubr.f32.gmra.mrb[0].mxu0 %v838
        %v1883 = vpop.f32.mrb[0].mxu0
        %v1884 = vadd.f32 0.0, %v1883
        %v1885 = vpop.f32.mrb[0].mxu0
        %1886 = vmatprep.mubr.f32.mxu0 0.0
        %1887 = vmatmul.mubr.f32.gmra.mrb[0].mxu0 %v841
        %v1888 = vpop.f32.mrb[0].mxu0
        %v1889 = vadd.f32 0.0, %v1888
        %v1890 = vpop.f32.mrb[0].mxu0
        %1891 = vmatprep.mubr.f32.mxu0 0.0
        %1892 = vmatmul.mubr.f32.gmra.mrb[0].mxu0 %v844
        %v1893 = vpop.f32.mrb[0].mxu0
        %v1894 = vadd.f32 0.0, %v1893
        %v1895 = vpop.f32.mrb[0].mxu0
        %1896 = vmatprep.mubr.f32.mxu0 0.0
        %1897 = vmatmul.mubr.f32.gmra.mrb[0].mxu0 %v847
        %v1898 = vpop.f32.mrb[0].mxu0
        %v1899 = vadd.f32 0.0, %v1898
        %v1900 = vpop.f32.mrb[0].mxu0
        %1901 = vmatprep.mubr.f32.mxu0 0.0
        %1902 = vmatmul.mubr.f32.gmra.mrb[0].mxu0 %v850
        %v1903 = vpop.f32.mrb[0].mxu0
        %v1904 = vadd.f32 0.0, %v1903
        %v1905 = vpop.f32.mrb[0].mxu0
        %1906 = vmatprep.mubr.f32.mxu0 0.0
        %1907 = vmatmul.mubr.f32.gmra.mrb[0].mxu0 %v853
        %v1908 = vpop.f32.mrb[0].mxu0
        %v1909 = vadd.f32 0.0, %v1908
        %v1910 = vpop.f32.mrb[0].mxu0
        %1911 = vmatprep.mubr.f32.mxu0 0.0
        %1912 = vmatmul.mubr.f32.gmra.mrb[0].mxu0 %v856
        %v1913 = vpop.f32.mrb[0].mxu0
        %v1914 = vadd.f32 0.0, %v1913
        %v1915 = vpop.f32.mrb[0].mxu0
        %1916 = vmatprep.mubr.f32.mxu0 0.0
        %1917 = vmatmul.mubr.f32.gmra.mrb[0].mxu0 %v859
        %v1918 = vpop.f32.mrb[0].mxu0
        %v1919 = vadd.f32 0.0, %v1918
        %v1920 = vpop.f32.mrb[0].mxu0
        %1921 = vmatprep.mubr.f32.mxu0 0.0
        %1922 = vmatmul.mubr.f32.gmra.mrb[0].mxu0 %v862
        %v1923 = vpop.f32.mrb[0].mxu0
        %v1924 = vadd.f32 0.0, %v1923
        %v1925 = vpop.f32.mrb[0].mxu0
        %1926 = vmatprep.mubr.f32.mxu0 0.0
        %1927 = vmatmul.mubr.f32.gmra.mrb[0].mxu0 %v865
        %v1928 = vpop.f32.mrb[0].mxu0
        %v1929 = vadd.f32 0.0, %v1928
        %v1930 = vpop.f32.mrb[0].mxu0
        %1931 = vmatprep.mubr.f32.mxu0 0.0
        %1932 = vmatmul.mubr.f32.gmra.mrb[0].mxu0 %v868
        %v1933 = vpop.f32.mrb[0].mxu0
        %v1934 = vadd.f32 0.0, %v1933
        %v1935 = vpop.f32.mrb[0].mxu0
        %1936 = vmatprep.mubr.f32.mxu0 0.0
        %1937 = vmatmul.mubr.f32.gmra.mrb[0].mxu0 %v871
        %v1938 = vpop.f32.mrb[0].mxu0
        %v1939 = vadd.f32 0.0, %v1938
        %v1940 = vpop.f32.mrb[0].mxu0
        %1941 = vmatprep.mubr.f32.mxu0 0.0
        %1942 = vmatmul.mubr.f32.gmra.mrb[0].mxu0 %v874
        %v1943 = vpop.f32.mrb[0].mxu0
        %v1944 = vadd.f32 0.0, %v1943
        %v1945 = vpop.f32.mrb[0].mxu0
        %1946 = vmatprep.mubr.f32.mxu0 0.0
        %1947 = vmatmul.mubr.f32.gmra.mrb[0].mxu0 %v877
        %v1948 = vpop.f32.mrb[0].mxu0
        %v1949 = vadd.f32 0.0, %v1948
        %v1950 = vpop.f32.mrb[0].mxu0
        %1951 = vmatprep.mubr.f32.mxu0 0.0
        %1952 = vmatmul.mubr.f32.gmra.mrb[0].mxu0 %v880
        %v1953 = vpop.f32.mrb[0].mxu0
        %v1954 = vadd.f32 0.0, %v1953
        %v1955 = vpop.f32.mrb[0].mxu0
        %1956 = vmatprep.mubr.f32.mxu0 0.0
        %1957 = vmatmul.mubr.f32.gmra.mrb[0].mxu0 %v883
        %v1958 = vpop.f32.mrb[0].mxu0
        %v1959 = vadd.f32 0.0, %v1958
        %v1960 = vpop.f32.mrb[0].mxu0
        %1961 = vmatprep.mubr.f32.mxu0 0.0
        %1962 = vmatmul.mubr.f32.gmra.mrb[0].mxu0 %v886
        %v1963 = vpop.f32.mrb[0].mxu0
        %v1964 = vadd.f32 0.0, %v1963
        %v1965 = vpop.f32.mrb[0].mxu0
        %1966 = vmatprep.mubr.f32.mxu0 0.0
        %1967 = vmatmul.mubr.f32.gmra.mrb[0].mxu0 %v889
        %v1968 = vpop.f32.mrb[0].mxu0
        %v1969 = vadd.f32 0.0, %v1968
        %v1970 = vpop.f32.mrb[0].mxu0
        %1971 = vmatprep.mubr.f32.mxu0 0.0
        %1972 = vmatmul.mubr.f32.gmra.mrb[0].mxu0 %v892
        %v1973 = vpop.f32.mrb[0].mxu0
        %v1974 = vadd.f32 0.0, %v1973
        %v1975 = vpop.f32.mrb[0].mxu0
        %1976 = vmatprep.mubr.f32.mxu0 0.0
        %1977 = vmatmul.mubr.f32.gmra.mrb[0].mxu0 %v895
        %v1978 = vpop.f32.mrb[0].mxu0
        %v1979 = vadd.f32 0.0, %v1978
        %v1980 = vpop.f32.mrb[0].mxu0
        %1981 = vmatprep.mubr.f32.mxu0 0.0
        %1982 = vmatmul.mubr.f32.gmra.mrb[0].mxu0 %v898
        %v1983 = vpop.f32.mrb[0].mxu0
        %v1984 = vadd.f32 0.0, %v1983
        %v1985 = vpop.f32.mrb[0].mxu0
        %1986 = vmatprep.mubr.f32.mxu0 0.0
        %1987 = vmatmul.mubr.f32.gmra.mrb[0].mxu0 %v901
        %v1988 = vpop.f32.mrb[0].mxu0
        %v1989 = vadd.f32 0.0, %v1988
        %v1990 = vpop.f32.mrb[0].mxu0
        %1991 = vmatprep.mubr.f32.mxu0 0.0
        %1992 = vmatmul.mubr.f32.gmra.mrb[0].mxu0 %v904
        %v1993 = vpop.f32.mrb[0].mxu0
        %v1994 = vadd.f32 0.0, %v1993
        %v1995 = vpop.f32.mrb[0].mxu0
        %1996 = vmatprep.mubr.f32.mxu0 0.0
        %1997 = vmatmul.mubr.f32.gmra.mrb[0].mxu0 %v907
        %v1998 = vpop.f32.mrb[0].mxu0
        %v1999 = vadd.f32 0.0, %v1998
        %v2000 = vpop.f32.mrb[0].mxu0
        %2001 = vmatprep.mubr.f32.mxu0 0.0
        %2002 = vmatmul.mubr.f32.gmra.mrb[0].mxu0 %v910
        %v2003 = vpop.f32.mrb[0].mxu0
        %v2004 = vadd.f32 0.0, %v2003
        %v2005 = vpop.f32.mrb[0].mxu0
        %2006 = vmatprep.mubr.f32.mxu0 0.0
        %2007 = vmatmul.mubr.f32.gmra.mrb[0].mxu0 %v913
        %v2008 = vpop.f32.mrb[0].mxu0
        %v2009 = vadd.f32 0.0, %v2008
        %v2010 = vpop.f32.mrb[0].mxu0
        %2011 = vmatprep.mubr.f32.mxu0 0.0
        %2012 = vmatmul.mubr.f32.gmra.mrb[0].mxu0 %v916
        %v2013 = vpop.f32.mrb[0].mxu0
        %v2014 = vadd.f32 0.0, %v2013
        %v2015 = vpop.f32.mrb[0].mxu0
        %2016 = vmatprep.mubr.f32.mxu0 0.0
        %2017 = vmatmul.mubr.f32.gmra.mrb[0].mxu0 %v919
        %v2018 = vpop.f32.mrb[0].mxu0
        %v2019 = vadd.f32 0.0, %v2018
        %v2020 = vpop.f32.mrb[0].mxu0
        %2021 = vmatprep.mubr.f32.mxu0 0.0
        %2022 = vmatmul.mubr.f32.gmra.mrb[0].mxu0 %v922
        %v2023 = vpop.f32.mrb[0].mxu0
        %v2024 = vadd.f32 0.0, %v2023
        %v2025 = vpop.f32.mrb[0].mxu0
        %2026 = vmatprep.mubr.f32.mxu0 0.0
        %2027 = vmatmul.mubr.f32.gmra.mrb[0].mxu0 %v925
        %v2028 = vpop.f32.mrb[0].mxu0
        %v2029 = vadd.f32 0.0, %v2028
        %v2030 = vpop.f32.mrb[0].mxu0
        %2031 = vmatprep.mubr.f32.mxu0 0.0
        %2032 = vmatmul.mubr.f32.gmra.mrb[0].mxu0 %v928
        %v2033 = vpop.f32.mrb[0].mxu0
        %v2034 = vadd.f32 0.0, %v2033
        %v2035 = vpop.f32.mrb[0].mxu0
        %2036 = vmatprep.mubr.f32.mxu0 0.0
        %2037 = vmatmul.mubr.f32.gmra.mrb[0].mxu0 %v931
        %v2038 = vpop.f32.mrb[0].mxu0
        %v2039 = vadd.f32 0.0, %v2038
        %v2040 = vpop.f32.mrb[0].mxu0
        %2041 = vmatprep.mubr.f32.mxu0 0.0
        %2042 = vmatmul.mubr.f32.gmra.mrb[0].mxu0 %v934
        %v2043 = vpop.f32.mrb[0].mxu0
        %v2044 = vadd.f32 0.0, %v2043
        %v2045 = vpop.f32.mrb[0].mxu0
        %2046 = vmatprep.mubr.f32.mxu0 0.0
        %2047 = vmatmul.mubr.f32.gmra.mrb[0].mxu0 %v937
        %v2048 = vpop.f32.mrb[0].mxu0
        %v2049 = vadd.f32 0.0, %v2048
        %v2050 = vpop.f32.mrb[0].mxu0
        %2051 = vmatprep.mubr.f32.mxu0 0.0
        %2052 = vmatmul.mubr.f32.gmra.mrb[0].mxu0 %v940
        %v2053 = vpop.f32.mrb[0].mxu0
        %v2054 = vadd.f32 0.0, %v2053
        %v2055 = vpop.f32.mrb[0].mxu0
        %2056 = vmatprep.mubr.f32.mxu0 0.0
        %2057 = vmatmul.mubr.f32.gmra.mrb[0].mxu0 %v943
        %v2058 = vpop.f32.mrb[0].mxu0
        %v2059 = vadd.f32 0.0, %v2058
        %v2060 = vpop.f32.mrb[0].mxu0
        %2061 = vmatprep.mubr.f32.mxu0 0.0
        %2062 = vmatmul.mubr.f32.gmra.mrb[0].mxu0 %v946
        %v2063 = vpop.f32.mrb[0].mxu0
        %v2064 = vadd.f32 0.0, %v2063
        %v2065 = vpop.f32.mrb[0].mxu0
        %2066 = vmatprep.mubr.f32.mxu0 0.0
        %2067 = vmatmul.mubr.f32.gmra.mrb[0].mxu0 %v949
        %v2068 = vpop.f32.mrb[0].mxu0
        %v2069 = vadd.f32 0.0, %v2068
        %v2070 = vpop.f32.mrb[0].mxu0
        %2071 = vmatprep.mubr.f32.mxu0 0.0
        %2072 = vmatmul.mubr.f32.gmra.mrb[0].mxu0 %v952
        %v2073 = vpop.f32.mrb[0].mxu0
        %v2074 = vadd.f32 0.0, %v2073
        %v2075 = vpop.f32.mrb[0].mxu0
        %2076 = vmatprep.mubr.f32.mxu0 0.0
        %2077 = vmatmul.mubr.f32.gmra.mrb[0].mxu0 %v955
        %v2078 = vpop.f32.mrb[0].mxu0
        %v2079 = vadd.f32 0.0, %v2078
        %v2080 = vpop.f32.mrb[0].mxu0
        %2081 = vmatprep.mubr.f32.mxu0 0.0
        %2082 = vmatmul.mubr.f32.gmra.mrb[0].mxu0 %v958
        %v2083 = vpop.f32.mrb[0].mxu0
        %v2084 = vadd.f32 0.0, %v2083
        %v2085 = vpop.f32.mrb[0].mxu0
        %2086 = vmatprep.mubr.f32.mxu0 0.0
        %2087 = vmatmul.mubr.f32.gmra.mrb[0].mxu0 %v961
        %v2088 = vpop.f32.mrb[0].mxu0
        %v2089 = vadd.f32 0.0, %v2088
        %v2090 = vpop.f32.mrb[0].mxu0
        %2091 = vmatprep.mubr.f32.mxu0 0.0
        %2092 = vmatmul.mubr.f32.gmra.mrb[0].mxu0 %v964
        %v2093 = vpop.f32.mrb[0].mxu0
        %v2094 = vadd.f32 0.0, %v2093
        %v2095 = vpop.f32.mrb[0].mxu0
        %2096 = vmatprep.mubr.f32.mxu0 0.0
        %2097 = vmatmul.mubr.f32.gmra.mrb[0].mxu0 %v967
        %v2098 = vpop.f32.mrb[0].mxu0
        %v2099 = vadd.f32 0.0, %v2098
        %v2100 = vpop.f32.mrb[0].mxu0
        %2101 = vmatprep.mubr.f32.mxu0 0.0
        %2102 = vmatmul.mubr.f32.gmra.mrb[0].mxu0 %v970
        %v2103 = vpop.f32.mrb[0].mxu0
        %v2104 = vadd.f32 0.0, %v2103
        %v2105 = vpop.f32.mrb[0].mxu0
        %2106 = vmatprep.mubr.f32.mxu0 0.0
        %2107 = vmatmul.mubr.f32.gmra.mrb[0].mxu0 %v973
        %v2108 = vpop.f32.mrb[0].mxu0
        %v2109 = vadd.f32 0.0, %v2108
        %v2110 = vpop.f32.mrb[0].mxu0
        %2111 = vmatprep.mubr.f32.mxu0 0.0
        %2112 = vmatmul.mubr.f32.gmra.mrb[0].mxu0 %v976
        %v2113 = vpop.f32.mrb[0].mxu0
        %v2114 = vadd.f32 0.0, %v2113
        %v2115 = vpop.f32.mrb[0].mxu0
        %2116 = vmatprep.mubr.f32.mxu0 0.0
        %2117 = vmatmul.mubr.f32.gmra.mrb[0].mxu0 %v979
        %v2118 = vpop.f32.mrb[0].mxu0
        %v2119 = vadd.f32 0.0, %v2118
        %v2120 = vpop.f32.mrb[0].mxu0
        %2121 = vmatprep.mubr.f32.mxu0 0.0
        %2122 = vmatmul.mubr.f32.gmra.mrb[0].mxu0 %v982
        %v2123 = vpop.f32.mrb[0].mxu0
        %v2124 = vadd.f32 0.0, %v2123
        %v2125 = vpop.f32.mrb[0].mxu0
        %2126 = vmatprep.mubr.f32.mxu0 0.0
        %2127 = vmatmul.mubr.f32.gmra.mrb[0].mxu0 %v985
        %v2128 = vpop.f32.mrb[0].mxu0
        %v2129 = vadd.f32 0.0, %v2128
        %v2130 = vpop.f32.mrb[0].mxu0
        %2131 = vmatprep.mubr.f32.mxu0 0.0
        %2132 = vmatmul.mubr.f32.gmra.mrb[0].mxu0 %v988
        %v2133 = vpop.f32.mrb[0].mxu0
        %v2134 = vadd.f32 0.0, %v2133
        %v2135 = vpop.f32.mrb[0].mxu0
        %2136 = vmatprep.mubr.f32.mxu0 0.0
        %2137 = vmatmul.mubr.f32.gmra.mrb[0].mxu0 %v991
        %v2138 = vpop.f32.mrb[0].mxu0
        %v2139 = vadd.f32 0.0, %v2138
        %v2140 = vpop.f32.mrb[0].mxu0
        %2141 = vmatprep.mubr.f32.mxu0 0.0
        %2142 = vmatmul.mubr.f32.gmra.mrb[0].mxu0 %v994
        %v2143 = vpop.f32.mrb[0].mxu0
        %v2144 = vadd.f32 0.0, %v2143
        %v2145 = vpop.f32.mrb[0].mxu0
        %2146 = vmatprep.mubr.f32.mxu0 0.0
        %2147 = vmatmul.mubr.f32.gmra.mrb[0].mxu0 %v997
        %v2148 = vpop.f32.mrb[0].mxu0
        %v2149 = vadd.f32 0.0, %v2148
        %v2150 = vpop.f32.mrb[0].mxu0
        %2151 = vmatprep.mubr.f32.mxu0 0.0
        %2152 = vmatmul.mubr.f32.gmra.mrb[0].mxu0 %v1000
        %v2153 = vpop.f32.mrb[0].mxu0
        %v2154 = vadd.f32 0.0, %v2153
        %v2155 = vpop.f32.mrb[0].mxu0
        %2156 = vmatprep.mubr.f32.mxu0 0.0
        %2157 = vmatmul.mubr.f32.gmra.mrb[0].mxu0 %v1003
        %v2158 = vpop.f32.mrb[0].mxu0
        %v2159 = vadd.f32 0.0, %v2158
        %v2160 = vpop.f32.mrb[0].mxu0
        %2161 = vmatprep.mubr.f32.mxu0 0.0
        %2162 = vmatmul.mubr.f32.gmra.mrb[0].mxu0 %v1006
        %v2163 = vpop.f32.mrb[0].mxu0
        %v2164 = vadd.f32 0.0, %v2163
        %v2165 = vpop.f32.mrb[0].mxu0
        %2166 = vmatprep.mubr.f32.mxu0 0.0
        %2167 = vmatmul.mubr.f32.gmra.mrb[0].mxu0 %v1009
        %v2168 = vpop.f32.mrb[0].mxu0
        %v2169 = vadd.f32 0.0, %v2168
        %v2170 = vpop.f32.mrb[0].mxu0
        %2171 = vmatprep.mubr.f32.mxu0 0.0
        %2172 = vmatmul.mubr.f32.gmra.mrb[0].mxu0 %v1012
        %v2173 = vpop.f32.mrb[0].mxu0
        %v2174 = vadd.f32 0.0, %v2173
        %v2175 = vpop.f32.mrb[0].mxu0
        %2176 = vmatprep.mubr.f32.mxu0 0.0
        %2177 = vmatmul.mubr.f32.gmra.mrb[0].mxu0 %v1015
        %v2178 = vpop.f32.mrb[0].mxu0
        %v2179 = vadd.f32 0.0, %v2178
        %v2180 = vpop.f32.mrb[0].mxu0
        %2181 = vmatprep.mubr.f32.mxu0 0.0
        %2182 = vmatmul.mubr.f32.gmra.mrb[0].mxu0 %v1018
        %v2183 = vpop.f32.mrb[0].mxu0
        %v2184 = vadd.f32 0.0, %v2183
        %v2185 = vpop.f32.mrb[0].mxu0
        %2186 = vmatprep.mubr.f32.mxu0 0.0
        %2187 = vmatmul.mubr.f32.gmra.mrb[0].mxu0 %v1021
        %v2188 = vpop.f32.mrb[0].mxu0
        %v2189 = vadd.f32 0.0, %v2188
        %v2190 = vpop.f32.mrb[0].mxu0
        %2191 = vmatprep.mubr.f32.mxu0 0.0
        %2192 = vmatmul.mubr.f32.gmra.mrb[0].mxu0 %v1024
        %v2193 = vpop.f32.mrb[0].mxu0
        %v2194 = vadd.f32 0.0, %v2193
        %v2195 = vpop.f32.mrb[0].mxu0
        %2196 = vmatprep.mubr.f32.mxu0 0.0
        %2197 = vmatmul.mubr.f32.gmra.mrb[0].mxu0 %v1027
        %v2198 = vpop.f32.mrb[0].mxu0
        %v2199 = vadd.f32 0.0, %v2198
        %v2200 = vpop.f32.mrb[0].mxu0
        %2201 = vmatprep.mubr.f32.mxu0 0.0
        %2202 = vmatmul.mubr.f32.gmra.mrb[0].mxu0 %v1030
        %v2203 = vpop.f32.mrb[0].mxu0
        %v2204 = vadd.f32 0.0, %v2203
        %v2205 = vpop.f32.mrb[0].mxu0
        %2206 = vmatprep.mubr.f32.mxu0 0.0
        %2207 = vmatmul.mubr.f32.gmra.mrb[0].mxu0 %v1033
        %v2208 = vpop.f32.mrb[0].mxu0
        %v2209 = vadd.f32 0.0, %v2208
        %v2210 = vpop.f32.mrb[0].mxu0
        %2211 = vmatprep.mubr.f32.mxu0 0.0
        %2212 = vmatmul.mubr.f32.gmra.mrb[0].mxu0 %v1036
        %v2213 = vpop.f32.mrb[0].mxu0
        %v2214 = vadd.f32 0.0, %v2213
        %v2215 = vpop.f32.mrb[0].mxu0
        %2216 = vmatprep.mubr.f32.mxu0 0.0
        %2217 = vmatmul.mubr.f32.gmra.mrb[0].mxu0 %v1039
        %v2218 = vpop.f32.mrb[0].mxu0
        %v2219 = vadd.f32 0.0, %v2218
        %v2220 = vpop.f32.mrb[0].mxu0
        %2221 = vmatprep.mubr.f32.mxu0 0.0
        %2222 = vmatmul.mubr.f32.gmra.mrb[0].mxu0 %v1042
        %v2223 = vpop.f32.mrb[0].mxu0
        %v2224 = vadd.f32 0.0, %v2223
        %v2225 = vpop.f32.mrb[0].mxu0
        %2226 = vmatprep.mubr.f32.mxu0 0.0
        %2227 = vmatmul.mubr.f32.gmra.mrb[0].mxu0 %v1045
        %v2228 = vpop.f32.mrb[0].mxu0
        %v2229 = vadd.f32 0.0, %v2228
        %v2230 = vpop.f32.mrb[0].mxu0
        %2231 = vmatprep.mubr.f32.mxu0 0.0
        %2232 = vmatmul.mubr.f32.gmra.mrb[0].mxu0 %v1048
        %v2233 = vpop.f32.mrb[0].mxu0
        %v2234 = vadd.f32 0.0, %v2233
        %v2235 = vpop.f32.mrb[0].mxu0
        %2236 = vmatprep.mubr.f32.mxu0 0.0
        %2237 = vmatmul.mubr.f32.gmra.mrb[0].mxu0 %v1051
        %v2238 = vpop.f32.mrb[0].mxu0
        %v2239 = vadd.f32 0.0, %v2238
        %v2240 = vpop.f32.mrb[0].mxu0
        %2241 = vmatprep.mubr.f32.mxu0 0.0
        %2242 = vmatmul.mubr.f32.gmra.mrb[0].mxu0 %v1054
        %v2243 = vpop.f32.mrb[0].mxu0
        %v2244 = vadd.f32 0.0, %v2243
        %v2245 = vpop.f32.mrb[0].mxu0
        %2246 = vmatprep.mubr.f32.mxu0 0.0
        %2247 = vmatmul.mubr.f32.gmra.mrb[0].mxu0 %v1057
        %v2248 = vpop.f32.mrb[0].mxu0
        %v2249 = vadd.f32 0.0, %v2248
        %v2250 = vpop.f32.mrb[0].mxu0
        %2251 = vmatprep.mubr.f32.mxu0 0.0
        %2252 = vmatmul.mubr.f32.gmra.mrb[0].mxu0 %v1060
        %v2253 = vpop.f32.mrb[0].mxu0
        %v2254 = vadd.f32 0.0, %v2253
        %v2255 = vpop.f32.mrb[0].mxu0
        %2256 = vmatprep.mubr.f32.mxu0 0.0
        %2257 = vmatmul.mubr.f32.gmra.mrb[0].mxu0 %v1063
        %v2258 = vpop.f32.mrb[0].mxu0
        %v2259 = vadd.f32 0.0, %v2258
        %v2260 = vpop.f32.mrb[0].mxu0
        %2261 = vmatprep.mubr.f32.mxu0 0.0
        %2262 = vmatmul.mubr.f32.gmra.mrb[0].mxu0 %v1066
        %v2263 = vpop.f32.mrb[0].mxu0
        %v2264 = vadd.f32 0.0, %v2263
        %v2265 = vpop.f32.mrb[0].mxu0
        %2266 = vmatprep.mubr.f32.mxu0 0.0
        %2267 = vmatmul.mubr.f32.gmra.mrb[0].mxu0 %v1069
        %v2268 = vpop.f32.mrb[0].mxu0
        %v2269 = vadd.f32 0.0, %v2268
        %v2270 = vpop.f32.mrb[0].mxu0
        %2271 = vmatprep.mubr.f32.mxu0 0.0
        %2272 = vmatmul.mubr.f32.gmra.mrb[0].mxu0 %v1072
        %v2273 = vpop.f32.mrb[0].mxu0
        %v2274 = vadd.f32 0.0, %v2273
        %v2275 = vpop.f32.mrb[0].mxu0
        %2276 = vmatprep.mubr.f32.mxu0 0.0
        %2277 = vmatmul.mubr.f32.gmra.mrb[0].mxu0 %v1075
        %v2278 = vpop.f32.mrb[0].mxu0
        %v2279 = vadd.f32 0.0, %v2278
        %v2280 = vpop.f32.mrb[0].mxu0
        %2281 = vmatprep.mubr.f32.mxu0 0.0
        %2282 = vmatmul.mubr.f32.gmra.mrb[0].mxu0 %v1078
        %v2283 = vpop.f32.mrb[0].mxu0
        %v2284 = vadd.f32 0.0, %v2283
        %v2285 = vpop.f32.mrb[0].mxu0
        %2286 = vmatprep.mubr.f32.mxu0 0.0
        %2287 = vmatmul.mubr.f32.gmra.mrb[0].mxu0 %v1081
        %v2288 = vpop.f32.mrb[0].mxu0
        %v2289 = vadd.f32 0.0, %v2288
        %v2290 = vpop.f32.mrb[0].mxu0
        %2291 = vmatprep.mubr.f32.mxu0 0.0
        %2292 = vmatmul.mubr.f32.gmra.mrb[0].mxu0 %v1084
        %v2293 = vpop.f32.mrb[0].mxu0
        %v2294 = vadd.f32 0.0, %v2293
        %v2295 = vpop.f32.mrb[0].mxu0
        %2296 = vmatprep.mubr.f32.mxu0 0.0
        %2297 = vmatmul.mubr.f32.gmra.mrb[0].mxu0 %v1087
        %v2298 = vpop.f32.mrb[0].mxu0
        %v2299 = vadd.f32 0.0, %v2298
        %v2300 = vpop.f32.mrb[0].mxu0
        %2301 = vmatprep.mubr.f32.mxu0 0.0
        %2302 = vmatmul.mubr.f32.gmra.mrb[0].mxu0 %v1090
        %v2303 = vpop.f32.mrb[0].mxu0
        %v2304 = vadd.f32 0.0, %v2303
        %v2305 = vpop.f32.mrb[0].mxu0
        %2306 = vmatprep.mubr.f32.mxu0 0.0
        %2307 = vmatmul.mubr.f32.gmra.mrb[0].mxu0 %v1093
        %v2308 = vpop.f32.mrb[0].mxu0
        %v2309 = vadd.f32 0.0, %v2308
        %v2310 = vpop.f32.mrb[0].mxu0
        %2311 = vmatprep.mubr.f32.mxu0 0.0
        %2312 = vmatmul.mubr.f32.gmra.mrb[0].mxu0 %v1096
        %v2313 = vpop.f32.mrb[0].mxu0
        %v2314 = vadd.f32 0.0, %v2313
        %v2315 = vpop.f32.mrb[0].mxu0
        %2316 = vmatprep.mubr.f32.mxu0 0.0
        %2317 = vmatmul.mubr.f32.gmra.mrb[0].mxu0 %v1099
        %v2318 = vpop.f32.mrb[0].mxu0
        %v2319 = vadd.f32 0.0, %v2318
        %v2320 = vpop.f32.mrb[0].mxu0
        %2321 = vmatprep.mubr.f32.mxu0 0.0
        %2322 = vmatmul.mubr.f32.gmra.mrb[0].mxu0 %v1102
        %v2323 = vpop.f32.mrb[0].mxu0
        %v2324 = vadd.f32 0.0, %v2323
        %v2325 = vpop.f32.mrb[0].mxu0
        %2326 = vmatprep.mubr.f32.mxu0 0.0
        %2327 = vmatmul.mubr.f32.gmra.mrb[0].mxu0 %v1105
        %v2328 = vpop.f32.mrb[0].mxu0
        %v2329 = vadd.f32 0.0, %v2328
        %v2330 = vpop.f32.mrb[0].mxu0
        %2331 = vmatprep.mubr.f32.mxu0 0.0
        %2332 = vmatmul.mubr.f32.gmra.mrb[0].mxu0 %v1108
        %v2333 = vpop.f32.mrb[0].mxu0
        %v2334 = vadd.f32 0.0, %v2333
        %v2335 = vpop.f32.mrb[0].mxu0
        %2336 = vmatprep.mubr.f32.mxu0 0.0
        %2337 = vmatmul.mubr.f32.gmra.mrb[0].mxu0 %v1111
        %v2338 = vpop.f32.mrb[0].mxu0
        %v2339 = vadd.f32 0.0, %v2338
        %v2340 = vpop.f32.mrb[0].mxu0
        %2341 = vmatprep.mubr.f32.mxu0 0.0
        %2342 = vmatmul.mubr.f32.gmra.mrb[0].mxu0 %v1114
        %v2343 = vpop.f32.mrb[0].mxu0
        %v2344 = vadd.f32 0.0, %v2343
        %v2345 = vpop.f32.mrb[0].mxu0
        %2346 = vmatprep.mubr.f32.mxu0 0.0
        %2347 = vmatmul.mubr.f32.gmra.mrb[0].mxu0 %v1117
        %v2348 = vpop.f32.mrb[0].mxu0
        %v2349 = vadd.f32 0.0, %v2348
        %v2350 = vpop.f32.mrb[0].mxu0
        %2351 = vmatprep.mubr.f32.mxu0 0.0
        %2352 = vmatmul.mubr.f32.gmra.mrb[0].mxu0 %v1120
        %v2353 = vpop.f32.mrb[0].mxu0
        %v2354 = vadd.f32 0.0, %v2353
        %v2355 = vpop.f32.mrb[0].mxu0
        %2356 = vmatprep.mubr.f32.mxu0 0.0
        %2357 = vmatmul.mubr.f32.gmra.mrb[0].mxu0 %v1123
        %v2358 = vpop.f32.mrb[0].mxu0
        %v2359 = vadd.f32 0.0, %v2358
        %v2360 = vpop.f32.mrb[0].mxu0
        %2361 = vmatprep.mubr.f32.mxu0 0.0
        %2362 = vmatmul.mubr.f32.gmra.mrb[0].mxu0 %v1126
        %v2363 = vpop.f32.mrb[0].mxu0
        %v2364 = vadd.f32 0.0, %v2363
        %v2365 = vpop.f32.mrb[0].mxu0
        %2366 = vmatprep.mubr.f32.mxu0 0.0
        %2367 = vmatmul.mubr.f32.gmra.mrb[0].mxu0 %v1129
        %v2368 = vpop.f32.mrb[0].mxu0
        %v2369 = vadd.f32 0.0, %v2368
        %v2370 = vpop.f32.mrb[0].mxu0
        %2371 = vmatprep.mubr.f32.mxu0 0.0
        %2372 = vmatmul.mubr.f32.gmra.mrb[0].mxu0 %v1132
        %v2373 = vpop.f32.mrb[0].mxu0
        %v2374 = vadd.f32 0.0, %v2373
        %v2375 = vpop.f32.mrb[0].mxu0
        %2376 = vmatprep.mubr.f32.mxu0 0.0
        %2377 = vmatmul.mubr.f32.gmra.mrb[0].mxu0 %v1135
        %v2378 = vpop.f32.mrb[0].mxu0
        %v2379 = vadd.f32 0.0, %v2378
        %v2380 = vpop.f32.mrb[0].mxu0
        %2381 = vmatprep.mubr.f32.mxu0 0.0
        %2382 = vmatmul.mubr.f32.gmra.mrb[0].mxu0 %v1138
        %v2383 = vpop.f32.mrb[0].mxu0
        %v2384 = vadd.f32 0.0, %v2383
        %v2385 = vpop.f32.mrb[0].mxu0
        %2386 = vmatprep.mubr.f32.mxu0 0.0
        %2387 = vmatmul.mubr.f32.gmra.mrb[0].mxu0 %v1141
        %v2388 = vpop.f32.mrb[0].mxu0
        %v2389 = vadd.f32 0.0, %v2388
        %v2390 = vpop.f32.mrb[0].mxu0
        %2391 = vmatprep.mubr.f32.mxu0 0.0
        %2392 = vmatmul.mubr.f32.gmra.mrb[0].mxu0 %v1144
        %v2393 = vpop.f32.mrb[0].mxu0
        %v2394 = vadd.f32 0.0, %v2393
        %v2395 = vpop.f32.mrb[0].mxu0
        %2396 = vmatprep.mubr.f32.mxu0 0.0
        %2397 = vmatmul.mubr.f32.gmra.mrb[0].mxu0 %v1147
        %v2398 = vpop.f32.mrb[0].mxu0
        %v2399 = vadd.f32 0.0, %v2398
        %v2400 = vpop.f32.mrb[0].mxu0
        %2401 = vmatprep.mubr.f32.mxu0 0.0
        %2402 = vmatmul.mubr.f32.gmra.mrb[0].mxu0 %v1150
        %v2403 = vpop.f32.mrb[0].mxu0
        %v2404 = vadd.f32 0.0, %v2403
        %v2405 = vpop.f32.mrb[0].mxu0
        %2406 = vmatprep.mubr.f32.mxu0 0.0
        %2407 = vmatmul.mubr.f32.gmra.mrb[0].mxu0 %v1153
        %v2408 = vpop.f32.mrb[0].mxu0
        %v2409 = vadd.f32 0.0, %v2408
        %v2410 = vpop.f32.mrb[0].mxu0
        %2411 = vmatprep.mubr.f32.mxu0 0.0
        %2412 = vmatmul.mubr.f32.gmra.mrb[0].mxu0 %v1156
        %v2413 = vpop.f32.mrb[0].mxu0
        %v2414 = vadd.f32 0.0, %v2413
        %v2415 = vpop.f32.mrb[0].mxu0
        %2416 = vmatprep.mubr.f32.mxu0 0.0
        %2417 = vmatmul.mubr.f32.gmra.mrb[0].mxu0 %v1159
        %v2418 = vpop.f32.mrb[0].mxu0
        %v2419 = vadd.f32 0.0, %v2418
        %v2420 = vpop.f32.mrb[0].mxu0
        %2421 = vmatprep.mubr.f32.mxu0 0.0
        %2422 = vmatmul.mubr.f32.gmra.mrb[0].mxu0 %v1162
        %v2423 = vpop.f32.mrb[0].mxu0
        %v2424 = vadd.f32 0.0, %v2423
        %v2425 = vpop.f32.mrb[0].mxu0
        %2426 = vmatprep.mubr.f32.mxu0 0.0
        %2427 = vmatmul.mubr.f32.gmra.mrb[0].mxu0 %v1165
        %v2428 = vpop.f32.mrb[0].mxu0
        %v2429 = vadd.f32 0.0, %v2428
        %v2430 = vpop.f32.mrb[0].mxu0
        %2431 = vmatprep.mubr.f32.mxu0 0.0
        %2432 = vmatmul.mubr.f32.gmra.mrb[0].mxu0 %v1168
        %v2433 = vpop.f32.mrb[0].mxu0
        %v2434 = vadd.f32 0.0, %v2433
        %v2435 = vpop.f32.mrb[0].mxu0
        %2436 = vmatprep.mubr.f32.mxu0 0.0
        %2437 = vmatmul.mubr.f32.gmra.mrb[0].mxu0 %v1171
        %v2438 = vpop.f32.mrb[0].mxu0
        %v2439 = vadd.f32 0.0, %v2438
        %v2440 = vpop.f32.mrb[0].mxu0
        %2441 = vmatprep.mubr.f32.mxu0 0.0
        %2442 = vmatmul.mubr.f32.gmra.mrb[0].mxu0 %v1174
        %v2443 = vpop.f32.mrb[0].mxu0
        %v2444 = vadd.f32 0.0, %v2443
        %v2445 = vpop.f32.mrb[0].mxu0
        %2446 = vmatprep.mubr.f32.mxu0 0.0
        %2447 = vmatmul.mubr.f32.gmra.mrb[0].mxu0 %v1177
        %v2448 = vpop.f32.mrb[0].mxu0
        %v2449 = vadd.f32 0.0, %v2448
        %v2450 = vpop.f32.mrb[0].mxu0
        %2451 = vmatprep.mubr.f32.mxu0 0.0
        %2452 = vmatmul.mubr.f32.gmra.mrb[0].mxu0 %v1180
        %v2453 = vpop.f32.mrb[0].mxu0
        %v2454 = vadd.f32 0.0, %v2453
        %v2455 = vpop.f32.mrb[0].mxu0
        %2456 = vmatprep.mubr.f32.mxu0 0.0
        %2457 = vmatmul.mubr.f32.gmra.mrb[0].mxu0 %v1183
        %v2458 = vpop.f32.mrb[0].mxu0
        %v2459 = vadd.f32 0.0, %v2458
        %v2460 = vpop.f32.mrb[0].mxu0
        %2461 = vmatprep.mubr.f32.mxu0 0.0
        %2462 = vmatmul.mubr.f32.gmra.mrb[0].mxu0 %v1186
        %v2463 = vpop.f32.mrb[0].mxu0
        %v2464 = vadd.f32 0.0, %v2463
        %v2465 = vpop.f32.mrb[0].mxu0
        %2466 = vmatprep.mubr.f32.mxu0 0.0
        %2467 = vmatmul.mubr.f32.gmra.mrb[0].mxu0 %v1189
        %v2468 = vpop.f32.mrb[0].mxu0
        %v2469 = vadd.f32 0.0, %v2468
        %v2470 = vpop.f32.mrb[0].mxu0
        %2471 = vmatprep.mubr.f32.mxu0 0.0
        %2472 = vmatmul.mubr.f32.gmra.mrb[0].mxu0 %v1192
        %v2473 = vpop.f32.mrb[0].mxu0
        %v2474 = vadd.f32 0.0, %v2473
        %v2475 = vpop.f32.mrb[0].mxu0
        %2476 = vmatprep.mubr.f32.mxu0 0.0
        %2477 = vmatmul.mubr.f32.gmra.mrb[0].mxu0 %v1195
        %v2478 = vpop.f32.mrb[0].mxu0
        %v2479 = vadd.f32 0.0, %v2478
        %v2480 = vpop.f32.mrb[0].mxu0
        %2481 = vmatprep.mubr.f32.mxu0 0.0
        %2482 = vmatmul.mubr.f32.gmra.mrb[0].mxu0 %v1198
        %v2483 = vpop.f32.mrb[0].mxu0
        %v2484 = vadd.f32 0.0, %v2483
        %v2485 = vpop.f32.mrb[0].mxu0
        %2486 = vmatprep.mubr.f32.mxu0 0.0
        %2487 = vmatmul.mubr.f32.gmra.mrb[0].mxu0 %v1201
        %v2488 = vpop.f32.mrb[0].mxu0
        %v2489 = vadd.f32 0.0, %v2488
        %v2490 = vpop.f32.mrb[0].mxu0
        %2491 = vmatprep.mubr.f32.mxu0 0.0
        %2492 = vmatmul.mubr.f32.gmra.mrb[0].mxu0 %v1204
        %v2493 = vpop.f32.mrb[0].mxu0
        %v2494 = vadd.f32 0.0, %v2493
        %v2495 = vpop.f32.mrb[0].mxu0
        %2496 = vmatprep.mubr.f32.mxu0 0.0
        %2497 = vmatmul.mubr.f32.gmra.mrb[0].mxu0 %v1207
        %v2498 = vpop.f32.mrb[0].mxu0
        %v2499 = vadd.f32 0.0, %v2498
        %v2500 = vpop.f32.mrb[0].mxu0
        %2501 = vmatprep.mubr.f32.mxu0 0.0
        %2502 = vmatmul.mubr.f32.gmra.mrb[0].mxu0 %v1210
        %v2503 = vpop.f32.mrb[0].mxu0
        %v2504 = vadd.f32 0.0, %v2503
        %v2505 = vpop.f32.mrb[0].mxu0
        %2506 = vmatprep.mubr.f32.mxu0 0.0
        %2507 = vmatmul.mubr.f32.gmra.mrb[0].mxu0 %v1213
        %v2508 = vpop.f32.mrb[0].mxu0
        %v2509 = vadd.f32 0.0, %v2508
        %v2510 = vpop.f32.mrb[0].mxu0
        %2511 = vmatprep.mubr.f32.mxu0 0.0
        %2512 = vmatmul.mubr.f32.gmra.mrb[0].mxu0 %v1216
        %v2513 = vpop.f32.mrb[0].mxu0
        %v2514 = vadd.f32 0.0, %v2513
        %v2515 = vpop.f32.mrb[0].mxu0
        %2516 = vmatprep.mubr.f32.mxu0 0.0
        %2517 = vmatmul.mubr.f32.gmra.mrb[0].mxu0 %v1219
        %v2518 = vpop.f32.mrb[0].mxu0
        %v2519 = vadd.f32 0.0, %v2518
        %v2520 = vpop.f32.mrb[0].mxu0
        %2521 = vmatprep.mubr.f32.mxu0 0.0
        %2522 = vmatmul.mubr.f32.gmra.mrb[0].mxu0 %v1222
        %v2523 = vpop.f32.mrb[0].mxu0
        %v2524 = vadd.f32 0.0, %v2523
        %v2525 = vpop.f32.mrb[0].mxu0
        %2526 = vmatprep.mubr.f32.mxu0 0.0
        %2527 = vmatmul.mubr.f32.gmra.mrb[0].mxu0 %v1225
        %v2528 = vpop.f32.mrb[0].mxu0
        %v2529 = vadd.f32 0.0, %v2528
        %v2530 = vpop.f32.mrb[0].mxu0
        %2531 = vmatprep.mubr.f32.mxu0 0.0
        %2532 = vmatmul.mubr.f32.gmra.mrb[0].mxu0 %v1228
        %v2533 = vpop.f32.mrb[0].mxu0
        %v2534 = vadd.f32 0.0, %v2533
        %v2535 = vpop.f32.mrb[0].mxu0
        %2536 = vmatprep.mubr.f32.mxu0 0.0
        %2537 = vmatmul.mubr.f32.gmra.mrb[0].mxu0 %v1231
        %v2538 = vpop.f32.mrb[0].mxu0
        %v2539 = vadd.f32 0.0, %v2538
        %v2540 = vpop.f32.mrb[0].mxu0
        %2541 = vmatprep.mubr.f32.mxu0 0.0
        %2542 = vmatmul.mubr.f32.gmra.mrb[0].mxu0 %v1234
        %v2543 = vpop.f32.mrb[0].mxu0
        %v2544 = vadd.f32 0.0, %v2543
        %v2545 = vpop.f32.mrb[0].mxu0
        %2546 = vmatprep.mubr.f32.mxu0 0.0
        %2547 = vmatmul.mubr.f32.gmra.mrb[0].mxu0 %v1237
        %v2548 = vpop.f32.mrb[0].mxu0
        %v2549 = vadd.f32 0.0, %v2548
        %v2550 = vpop.f32.mrb[0].mxu0
        %2551 = vmatprep.mubr.f32.mxu0 0.0
        %2552 = vmatmul.mubr.f32.gmra.mrb[0].mxu0 %v1240
        %v2553 = vpop.f32.mrb[0].mxu0
        %v2554 = vadd.f32 0.0, %v2553
        %v2555 = vpop.f32.mrb[0].mxu0
        %2556 = vmatprep.mubr.f32.mxu0 0.0
        %2557 = vmatmul.mubr.f32.gmra.mrb[0].mxu0 %v1243
        %v2558 = vpop.f32.mrb[0].mxu0
        %v2559 = vadd.f32 0.0, %v2558
        %v2560 = vpop.f32.mrb[0].mxu0
        %2561 = vmatprep.mubr.f32.mxu0 0.0
        %2562 = vmatmul.mubr.f32.gmra.mrb[0].mxu0 %v1246
        %v2563 = vpop.f32.mrb[0].mxu0
        %v2564 = vadd.f32 0.0, %v2563
        %v2565 = vpop.f32.mrb[0].mxu0
        %2566 = vmatprep.mubr.f32.mxu0 0.0
        %2567 = vmatmul.mubr.f32.gmra.mrb[0].mxu0 %v1249
        %v2568 = vpop.f32.mrb[0].mxu0
        %v2569 = vadd.f32 0.0, %v2568
        %v2570 = vpop.f32.mrb[0].mxu0
        %2571 = vmatprep.mubr.f32.mxu0 0.0
        %2572 = vmatmul.mubr.f32.gmra.mrb[0].mxu0 %v1252
        %v2573 = vpop.f32.mrb[0].mxu0
        %v2574 = vadd.f32 0.0, %v2573
        %v2575 = vpop.f32.mrb[0].mxu0
        %2576 = vmatprep.mubr.f32.mxu0 0.0
        %2577 = vmatmul.mubr.f32.gmra.mrb[0].mxu0 %v1255
        %v2578 = vpop.f32.mrb[0].mxu0
        %v2579 = vadd.f32 0.0, %v2578
        %v2580 = vpop.f32.mrb[0].mxu0
        %2581 = vmatprep.mubr.f32.mxu0 0.0
        %2582 = vmatmul.mubr.f32.gmra.mrb[0].mxu0 %v1258
        %v2583 = vpop.f32.mrb[0].mxu0
        %v2584 = vadd.f32 0.0, %v2583
        %v2585 = vpop.f32.mrb[0].mxu0
        %2586 = vmatprep.mubr.f32.mxu0 0.0
        %2587 = vmatmul.mubr.f32.gmra.mrb[0].mxu0 %v1261
        %v2588 = vpop.f32.mrb[0].mxu0
        %v2589 = vadd.f32 0.0, %v2588
        %v2590 = vpop.f32.mrb[0].mxu0
        %2591 = vmatprep.mubr.f32.mxu0 0.0
        %2592 = vmatmul.mubr.f32.gmra.mrb[0].mxu0 %v1264
        %v2593 = vpop.f32.mrb[0].mxu0
        %v2594 = vadd.f32 0.0, %v2593
        %v2595 = vpop.f32.mrb[0].mxu0
        %2596 = vmatprep.mubr.f32.mxu0 0.0
        %2597 = vmatmul.mubr.f32.gmra.mrb[0].mxu0 %v1267
        %v2598 = vpop.f32.mrb[0].mxu0
        %v2599 = vadd.f32 0.0, %v2598
        %v2600 = vpop.f32.mrb[0].mxu0
        %2601 = vmatprep.mubr.f32.mxu0 0.0
        %2602 = vmatmul.mubr.f32.gmra.mrb[0].mxu0 %v1270
        %v2603 = vpop.f32.mrb[0].mxu0
        %v2604 = vadd.f32 0.0, %v2603
        %v2605 = vpop.f32.mrb[0].mxu0
        %2606 = vmatprep.mubr.f32.mxu0 0.0
        %2607 = vmatmul.mubr.f32.gmra.mrb[0].mxu0 %v1273
        %v2608 = vpop.f32.mrb[0].mxu0
        %v2609 = vadd.f32 0.0, %v2608
        %v2610 = vpop.f32.mrb[0].mxu0
        %2611 = vmatprep.mubr.f32.mxu0 0.0
        %2612 = vmatmul.mubr.f32.gmra.mrb[0].mxu0 %v1276
        %v2613 = vpop.f32.mrb[0].mxu0
        %v2614 = vadd.f32 0.0, %v2613
        %v2615 = vpop.f32.mrb[0].mxu0
        %2616 = vmatprep.mubr.f32.mxu0 0.0
        %2617 = vmatmul.mubr.f32.gmra.mrb[0].mxu0 %v1279
        %v2618 = vpop.f32.mrb[0].mxu0
        %v2619 = vadd.f32 0.0, %v2618
        %v2620 = vpop.f32.mrb[0].mxu0
        %2621 = vmatprep.mubr.f32.mxu0 0.0
        %2622 = vmatmul.mubr.f32.gmra.mrb[0].mxu0 %v1282
        %v2623 = vpop.f32.mrb[0].mxu0
        %v2624 = vadd.f32 0.0, %v2623
        %v2625 = vpop.f32.mrb[0].mxu0
        %2626 = vmatprep.mubr.f32.mxu0 0.0
        %2627 = vmatmul.mubr.f32.gmra.mrb[0].mxu0 %v1285
        %v2628 = vpop.f32.mrb[0].mxu0
        %v2629 = vadd.f32 0.0, %v2628
        %v2630 = vpop.f32.mrb[0].mxu0
        %2631 = vmatprep.mubr.f32.mxu0 0.0
        %2632 = vmatmul.mubr.f32.gmra.mrb[0].mxu0 %v1288
        %v2633 = vpop.f32.mrb[0].mxu0
        %v2634 = vadd.f32 0.0, %v2633
        %v2635 = vpop.f32.mrb[0].mxu0
        %2636 = vmatprep.mubr.f32.mxu0 0.0
        %2637 = vmatmul.mubr.f32.gmra.mrb[0].mxu0 %v1291
        %v2638 = vpop.f32.mrb[0].mxu0
        %v2639 = vadd.f32 0.0, %v2638
        %v2640 = vpop.f32.mrb[0].mxu0
        %2641 = vdwg.mxu0
        %v2642 = vmax.f32 %v1364, 0.0
        %v2643 = vmax.f32 %v1369, 0.0
        %v2644 = vmax.f32 %v1374, 0.0
        %v2645 = vmax.f32 %v1379, 0.0
        %v2646 = vmax.f32 %v1384, 0.0
        %v2647 = vmax.f32 %v1389, 0.0
        %v2648 = vmax.f32 %v1394, 0.0
        %v2649 = vmax.f32 %v1399, 0.0
        %v2650 = vmax.f32 %v1404, 0.0
        %v2651 = vmax.f32 %v1409, 0.0
        %v2652 = vmax.f32 %v1414, 0.0
        %v2653 = vmax.f32 %v1419, 0.0
        %v2654 = vmax.f32 %v1424, 0.0
        %v2655 = vmax.f32 %v1429, 0.0
        %v2656 = vmax.f32 %v1434, 0.0
        %v2657 = vmax.f32 %v1439, 0.0
        %v2658 = vmax.f32 %v1444, 0.0
        %v2659 = vmax.f32 %v1449, 0.0
        %v2660 = vmax.f32 %v1454, 0.0
        %v2661 = vmax.f32 %v1459, 0.0
        %v2662 = vmax.f32 %v1464, 0.0
        %v2663 = vmax.f32 %v1469, 0.0
        %v2664 = vmax.f32 %v1474, 0.0
        %v2665 = vmax.f32 %v1479, 0.0
        %v2666 = vmax.f32 %v1484, 0.0
        %v2667 = vmax.f32 %v1489, 0.0
        %v2668 = vmax.f32 %v1494, 0.0
        %v2669 = vmax.f32 %v1499, 0.0
        %v2670 = vmax.f32 %v1504, 0.0
        %v2671 = vmax.f32 %v1509, 0.0
        %v2672 = vmax.f32 %v1514, 0.0
        %v2673 = vmax.f32 %v1519, 0.0
        %v2674 = vmax.f32 %v1524, 0.0
        %v2675 = vmax.f32 %v1529, 0.0
        %v2676 = vmax.f32 %v1534, 0.0
        %v2677 = vmax.f32 %v1539, 0.0
        %v2678 = vmax.f32 %v1544, 0.0
        %v2679 = vmax.f32 %v1549, 0.0
        %v2680 = vmax.f32 %v1554, 0.0
        %v2681 = vmax.f32 %v1559, 0.0
        %v2682 = vmax.f32 %v1564, 0.0
        %v2683 = vmax.f32 %v1569, 0.0
        %v2684 = vmax.f32 %v1574, 0.0
        %v2685 = vmax.f32 %v1579, 0.0
        %v2686 = vmax.f32 %v1584, 0.0
        %v2687 = vmax.f32 %v1589, 0.0
        %v2688 = vmax.f32 %v1594, 0.0
        %v2689 = vmax.f32 %v1599, 0.0
        %v2690 = vmax.f32 %v1604, 0.0
        %v2691 = vmax.f32 %v1609, 0.0
        %v2692 = vmax.f32 %v1614, 0.0
        %v2693 = vmax.f32 %v1619, 0.0
        %v2694 = vmax.f32 %v1624, 0.0
        %v2695 = vmax.f32 %v1629, 0.0
        %v2696 = vmax.f32 %v1634, 0.0
        %v2697 = vmax.f32 %v1639, 0.0
        %v2698 = vmax.f32 %v1644, 0.0
        %v2699 = vmax.f32 %v1649, 0.0
        %v2700 = vmax.f32 %v1654, 0.0
        %v2701 = vmax.f32 %v1659, 0.0
        %v2702 = vmax.f32 %v1664, 0.0
        %v2703 = vmax.f32 %v1669, 0.0
        %v2704 = vmax.f32 %v1674, 0.0
        %v2705 = vmax.f32 %v1679, 0.0
        %v2706 = vmax.f32 %v1684, 0.0
        %v2707 = vmax.f32 %v1689, 0.0
        %v2708 = vmax.f32 %v1694, 0.0
        %v2709 = vmax.f32 %v1699, 0.0
        %v2710 = vmax.f32 %v1704, 0.0
        %v2711 = vmax.f32 %v1709, 0.0
        %v2712 = vmax.f32 %v1714, 0.0
        %v2713 = vmax.f32 %v1719, 0.0
        %v2714 = vmax.f32 %v1724, 0.0
        %v2715 = vmax.f32 %v1729, 0.0
        %v2716 = vmax.f32 %v1734, 0.0
        %v2717 = vmax.f32 %v1739, 0.0
        %v2718 = vmax.f32 %v1744, 0.0
        %v2719 = vmax.f32 %v1749, 0.0
        %v2720 = vmax.f32 %v1754, 0.0
        %v2721 = vmax.f32 %v1759, 0.0
        %v2722 = vmax.f32 %v1764, 0.0
        %v2723 = vmax.f32 %v1769, 0.0
        %v2724 = vmax.f32 %v1774, 0.0
        %v2725 = vmax.f32 %v1779, 0.0
        %v2726 = vmax.f32 %v1784, 0.0
        %v2727 = vmax.f32 %v1789, 0.0
        %v2728 = vmax.f32 %v1794, 0.0
        %v2729 = vmax.f32 %v1799, 0.0
        %v2730 = vmax.f32 %v1804, 0.0
        %v2731 = vmax.f32 %v1809, 0.0
        %v2732 = vmax.f32 %v1814, 0.0
        %v2733 = vmax.f32 %v1819, 0.0
        %v2734 = vmax.f32 %v1824, 0.0
        %v2735 = vmax.f32 %v1829, 0.0
        %v2736 = vmax.f32 %v1834, 0.0
        %v2737 = vmax.f32 %v1839, 0.0
        %v2738 = vmax.f32 %v1844, 0.0
        %v2739 = vmax.f32 %v1849, 0.0
        %v2740 = vmax.f32 %v1854, 0.0
        %v2741 = vmax.f32 %v1859, 0.0
        %v2742 = vmax.f32 %v1864, 0.0
        %v2743 = vmax.f32 %v1869, 0.0
        %v2744 = vmax.f32 %v1874, 0.0
        %v2745 = vmax.f32 %v1879, 0.0
        %v2746 = vmax.f32 %v1884, 0.0
        %v2747 = vmax.f32 %v1889, 0.0
        %v2748 = vmax.f32 %v1894, 0.0
        %v2749 = vmax.f32 %v1899, 0.0
        %v2750 = vmax.f32 %v1904, 0.0
        %v2751 = vmax.f32 %v1909, 0.0
        %v2752 = vmax.f32 %v1914, 0.0
        %v2753 = vmax.f32 %v1919, 0.0
        %v2754 = vmax.f32 %v1924, 0.0
        %v2755 = vmax.f32 %v1929, 0.0
        %v2756 = vmax.f32 %v1934, 0.0
        %v2757 = vmax.f32 %v1939, 0.0
        %v2758 = vmax.f32 %v1944, 0.0
        %v2759 = vmax.f32 %v1949, 0.0
        %v2760 = vmax.f32 %v1954, 0.0
        %v2761 = vmax.f32 %v1959, 0.0
        %v2762 = vmax.f32 %v1964, 0.0
        %v2763 = vmax.f32 %v1969, 0.0
        %v2764 = vmax.f32 %v1974, 0.0
        %v2765 = vmax.f32 %v1979, 0.0
        %v2766 = vmax.f32 %v1984, 0.0
        %v2767 = vmax.f32 %v1989, 0.0
        %v2768 = vmax.f32 %v1994, 0.0
        %v2769 = vmax.f32 %v1999, 0.0
        %v2770 = vmax.f32 %v2004, 0.0
        %v2771 = vmax.f32 %v2009, 0.0
        %v2772 = vmax.f32 %v2014, 0.0
        %v2773 = vmax.f32 %v2019, 0.0
        %v2774 = vmax.f32 %v2024, 0.0
        %v2775 = vmax.f32 %v2029, 0.0
        %v2776 = vmax.f32 %v2034, 0.0
        %v2777 = vmax.f32 %v2039, 0.0
        %v2778 = vmax.f32 %v2044, 0.0
        %v2779 = vmax.f32 %v2049, 0.0
        %v2780 = vmax.f32 %v2054, 0.0
        %v2781 = vmax.f32 %v2059, 0.0
        %v2782 = vmax.f32 %v2064, 0.0
        %v2783 = vmax.f32 %v2069, 0.0
        %v2784 = vmax.f32 %v2074, 0.0
        %v2785 = vmax.f32 %v2079, 0.0
        %v2786 = vmax.f32 %v2084, 0.0
        %v2787 = vmax.f32 %v2089, 0.0
        %v2788 = vmax.f32 %v2094, 0.0
        %v2789 = vmax.f32 %v2099, 0.0
        %v2790 = vmax.f32 %v2104, 0.0
        %v2791 = vmax.f32 %v2109, 0.0
        %v2792 = vmax.f32 %v2114, 0.0
        %v2793 = vmax.f32 %v2119, 0.0
        %v2794 = vmax.f32 %v2124, 0.0
        %v2795 = vmax.f32 %v2129, 0.0
        %v2796 = vmax.f32 %v2134, 0.0
        %v2797 = vmax.f32 %v2139, 0.0
        %v2798 = vmax.f32 %v2144, 0.0
        %v2799 = vmax.f32 %v2149, 0.0
        %v2800 = vmax.f32 %v2154, 0.0
        %v2801 = vmax.f32 %v2159, 0.0
        %v2802 = vmax.f32 %v2164, 0.0
        %v2803 = vmax.f32 %v2169, 0.0
        %v2804 = vmax.f32 %v2174, 0.0
        %v2805 = vmax.f32 %v2179, 0.0
        %v2806 = vmax.f32 %v2184, 0.0
        %v2807 = vmax.f32 %v2189, 0.0
        %v2808 = vmax.f32 %v2194, 0.0
        %v2809 = vmax.f32 %v2199, 0.0
        %v2810 = vmax.f32 %v2204, 0.0
        %v2811 = vmax.f32 %v2209, 0.0
        %v2812 = vmax.f32 %v2214, 0.0
        %v2813 = vmax.f32 %v2219, 0.0
        %v2814 = vmax.f32 %v2224, 0.0
        %v2815 = vmax.f32 %v2229, 0.0
        %v2816 = vmax.f32 %v2234, 0.0
        %v2817 = vmax.f32 %v2239, 0.0
        %v2818 = vmax.f32 %v2244, 0.0
        %v2819 = vmax.f32 %v2249, 0.0
        %v2820 = vmax.f32 %v2254, 0.0
        %v2821 = vmax.f32 %v2259, 0.0
        %v2822 = vmax.f32 %v2264, 0.0
        %v2823 = vmax.f32 %v2269, 0.0
        %v2824 = vmax.f32 %v2274, 0.0
        %v2825 = vmax.f32 %v2279, 0.0
        %v2826 = vmax.f32 %v2284, 0.0
        %v2827 = vmax.f32 %v2289, 0.0
        %v2828 = vmax.f32 %v2294, 0.0
        %v2829 = vmax.f32 %v2299, 0.0
        %v2830 = vmax.f32 %v2304, 0.0
        %v2831 = vmax.f32 %v2309, 0.0
        %v2832 = vmax.f32 %v2314, 0.0
        %v2833 = vmax.f32 %v2319, 0.0
        %v2834 = vmax.f32 %v2324, 0.0
        %v2835 = vmax.f32 %v2329, 0.0
        %v2836 = vmax.f32 %v2334, 0.0
        %v2837 = vmax.f32 %v2339, 0.0
        %v2838 = vmax.f32 %v2344, 0.0
        %v2839 = vmax.f32 %v2349, 0.0
        %v2840 = vmax.f32 %v2354, 0.0
        %v2841 = vmax.f32 %v2359, 0.0
        %v2842 = vmax.f32 %v2364, 0.0
        %v2843 = vmax.f32 %v2369, 0.0
        %v2844 = vmax.f32 %v2374, 0.0
        %v2845 = vmax.f32 %v2379, 0.0
        %v2846 = vmax.f32 %v2384, 0.0
        %v2847 = vmax.f32 %v2389, 0.0
        %v2848 = vmax.f32 %v2394, 0.0
        %v2849 = vmax.f32 %v2399, 0.0
        %v2850 = vmax.f32 %v2404, 0.0
        %v2851 = vmax.f32 %v2409, 0.0
        %v2852 = vmax.f32 %v2414, 0.0
        %v2853 = vmax.f32 %v2419, 0.0
        %v2854 = vmax.f32 %v2424, 0.0
        %v2855 = vmax.f32 %v2429, 0.0
        %v2856 = vmax.f32 %v2434, 0.0
        %v2857 = vmax.f32 %v2439, 0.0
        %v2858 = vmax.f32 %v2444, 0.0
        %v2859 = vmax.f32 %v2449, 0.0
        %v2860 = vmax.f32 %v2454, 0.0
        %v2861 = vmax.f32 %v2459, 0.0
        %v2862 = vmax.f32 %v2464, 0.0
        %v2863 = vmax.f32 %v2469, 0.0
        %v2864 = vmax.f32 %v2474, 0.0
        %v2865 = vmax.f32 %v2479, 0.0
        %v2866 = vmax.f32 %v2484, 0.0
        %v2867 = vmax.f32 %v2489, 0.0
        %v2868 = vmax.f32 %v2494, 0.0
        %v2869 = vmax.f32 %v2499, 0.0
        %v2870 = vmax.f32 %v2504, 0.0
        %v2871 = vmax.f32 %v2509, 0.0
        %v2872 = vmax.f32 %v2514, 0.0
        %v2873 = vmax.f32 %v2519, 0.0
        %v2874 = vmax.f32 %v2524, 0.0
        %v2875 = vmax.f32 %v2529, 0.0
        %v2876 = vmax.f32 %v2534, 0.0
        %v2877 = vmax.f32 %v2539, 0.0
        %v2878 = vmax.f32 %v2544, 0.0
        %v2879 = vmax.f32 %v2549, 0.0
        %v2880 = vmax.f32 %v2554, 0.0
        %v2881 = vmax.f32 %v2559, 0.0
        %v2882 = vmax.f32 %v2564, 0.0
        %v2883 = vmax.f32 %v2569, 0.0
        %v2884 = vmax.f32 %v2574, 0.0
        %v2885 = vmax.f32 %v2579, 0.0
        %v2886 = vmax.f32 %v2584, 0.0
        %v2887 = vmax.f32 %v2589, 0.0
        %v2888 = vmax.f32 %v2594, 0.0
        %v2889 = vmax.f32 %v2599, 0.0
        %v2890 = vmax.f32 %v2604, 0.0
        %v2891 = vmax.f32 %v2609, 0.0
        %v2892 = vmax.f32 %v2614, 0.0
        %v2893 = vmax.f32 %v2619, 0.0
        %v2894 = vmax.f32 %v2624, 0.0
        %v2895 = vmax.f32 %v2629, 0.0
        %v2896 = vmax.f32 %v2634, 0.0
        %v2897 = vmax.f32 %v2639, 0.0
        %v2898 = vadd.f32 %v2642, %v2643
        %v2899 = vadd.f32 %v2898, %v2644
        %v2900 = vadd.f32 %v2899, %v2645
        %v2901 = vadd.f32 %v2900, %v2646
        %v2902 = vadd.f32 %v2901, %v2647
        %v2903 = vadd.f32 %v2902, %v2648
        %v2904 = vadd.f32 %v2903, %v2649
        %v2905 = vadd.f32 %v2904, %v2650
        %v2906 = vadd.f32 %v2905, %v2651
        %v2907 = vadd.f32 %v2906, %v2652
        %v2908 = vadd.f32 %v2907, %v2653
        %v2909 = vadd.f32 %v2908, %v2654
        %v2910 = vadd.f32 %v2909, %v2655
        %v2911 = vadd.f32 %v2910, %v2656
        %v2912 = vadd.f32 %v2911, %v2657
        %v2913 = vadd.f32 %v2912, %v2658
        %v2914 = vadd.f32 %v2913, %v2659
        %v2915 = vadd.f32 %v2914, %v2660
        %v2916 = vadd.f32 %v2915, %v2661
        %v2917 = vadd.f32 %v2916, %v2662
        %v2918 = vadd.f32 %v2917, %v2663
        %v2919 = vadd.f32 %v2918, %v2664
        %v2920 = vadd.f32 %v2919, %v2665
        %v2921 = vadd.f32 %v2920, %v2666
        %v2922 = vadd.f32 %v2921, %v2667
        %v2923 = vadd.f32 %v2922, %v2668
        %v2924 = vadd.f32 %v2923, %v2669
        %v2925 = vadd.f32 %v2924, %v2670
        %v2926 = vadd.f32 %v2925, %v2671
        %v2927 = vadd.f32 %v2926, %v2672
        %v2928 = vadd.f32 %v2927, %v2673
        %v2929 = vrot.slane %v2928, 4
        %v2930 = vadd.f32 %v2928, %v2929
        %v2931 = vrot.slane %v2930, 2
        %v2932 = vadd.f32 %v2930, %v2931
        %v2933 = vrot.slane %v2932, 1
        %v2934 = vadd.f32 %v2932, %v2933
        %v2935 = vadd.f32 %v2674, %v2675
        %v2936 = vadd.f32 %v2935, %v2676
        %v2937 = vadd.f32 %v2936, %v2677
        %v2938 = vadd.f32 %v2937, %v2678
        %v2939 = vadd.f32 %v2938, %v2679
        %v2940 = vadd.f32 %v2939, %v2680
        %v2941 = vadd.f32 %v2940, %v2681
        %v2942 = vadd.f32 %v2941, %v2682
        %v2943 = vadd.f32 %v2942, %v2683
        %v2944 = vadd.f32 %v2943, %v2684
        %v2945 = vadd.f32 %v2944, %v2685
        %v2946 = vadd.f32 %v2945, %v2686
        %v2947 = vadd.f32 %v2946, %v2687
        %v2948 = vadd.f32 %v2947, %v2688
        %v2949 = vadd.f32 %v2948, %v2689
        %v2950 = vadd.f32 %v2949, %v2690
        %v2951 = vadd.f32 %v2950, %v2691
        %v2952 = vadd.f32 %v2951, %v2692
        %v2953 = vadd.f32 %v2952, %v2693
        %v2954 = vadd.f32 %v2953, %v2694
        %v2955 = vadd.f32 %v2954, %v2695
        %v2956 = vadd.f32 %v2955, %v2696
        %v2957 = vadd.f32 %v2956, %v2697
        %v2958 = vadd.f32 %v2957, %v2698
        %v2959 = vadd.f32 %v2958, %v2699
        %v2960 = vadd.f32 %v2959, %v2700
        %v2961 = vadd.f32 %v2960, %v2701
        %v2962 = vadd.f32 %v2961, %v2702
        %v2963 = vadd.f32 %v2962, %v2703
        %v2964 = vadd.f32 %v2963, %v2704
        %v2965 = vadd.f32 %v2964, %v2705
        %v2966 = vrot.slane %v2965, 4
        %v2967 = vadd.f32 %v2965, %v2966
        %v2968 = vrot.slane %v2967, 2
        %v2969 = vadd.f32 %v2967, %v2968
        %v2970 = vrot.slane %v2969, 1
        %v2971 = vadd.f32 %v2969, %v2970
        %v2972 = vadd.f32 %v2706, %v2707
        %v2973 = vadd.f32 %v2972, %v2708
        %v2974 = vadd.f32 %v2973, %v2709
        %v2975 = vadd.f32 %v2974, %v2710
        %v2976 = vadd.f32 %v2975, %v2711
        %v2977 = vadd.f32 %v2976, %v2712
        %v2978 = vadd.f32 %v2977, %v2713
        %v2979 = vadd.f32 %v2978, %v2714
        %v2980 = vadd.f32 %v2979, %v2715
        %v2981 = vadd.f32 %v2980, %v2716
        %v2982 = vadd.f32 %v2981, %v2717
        %v2983 = vadd.f32 %v2982, %v2718
        %v2984 = vadd.f32 %v2983, %v2719
        %v2985 = vadd.f32 %v2984, %v2720
        %v2986 = vadd.f32 %v2985, %v2721
        %v2987 = vadd.f32 %v2986, %v2722
        %v2988 = vadd.f32 %v2987, %v2723
        %v2989 = vadd.f32 %v2988, %v2724
        %v2990 = vadd.f32 %v2989, %v2725
        %v2991 = vadd.f32 %v2990, %v2726
        %v2992 = vadd.f32 %v2991, %v2727
        %v2993 = vadd.f32 %v2992, %v2728
        %v2994 = vadd.f32 %v2993, %v2729
        %v2995 = vadd.f32 %v2994, %v2730
        %v2996 = vadd.f32 %v2995, %v2731
        %v2997 = vadd.f32 %v2996, %v2732
        %v2998 = vadd.f32 %v2997, %v2733
        %v2999 = vadd.f32 %v2998, %v2734
        %v3000 = vadd.f32 %v2999, %v2735
        %v3001 = vadd.f32 %v3000, %v2736
        %v3002 = vadd.f32 %v3001, %v2737
        %v3003 = vrot.slane %v3002, 4
        %v3004 = vadd.f32 %v3002, %v3003
        %v3005 = vrot.slane %v3004, 2
        %v3006 = vadd.f32 %v3004, %v3005
        %v3007 = vrot.slane %v3006, 1
        %v3008 = vadd.f32 %v3006, %v3007
        %v3009 = vadd.f32 %v2738, %v2739
        %v3010 = vadd.f32 %v3009, %v2740
        %v3011 = vadd.f32 %v3010, %v2741
        %v3012 = vadd.f32 %v3011, %v2742
        %v3013 = vadd.f32 %v3012, %v2743
        %v3014 = vadd.f32 %v3013, %v2744
        %v3015 = vadd.f32 %v3014, %v2745
        %v3016 = vadd.f32 %v3015, %v2746
        %v3017 = vadd.f32 %v3016, %v2747
        %v3018 = vadd.f32 %v3017, %v2748
        %v3019 = vadd.f32 %v3018, %v2749
        %v3020 = vadd.f32 %v3019, %v2750
        %v3021 = vadd.f32 %v3020, %v2751
        %v3022 = vadd.f32 %v3021, %v2752
        %v3023 = vadd.f32 %v3022, %v2753
        %v3024 = vadd.f32 %v3023, %v2754
        %v3025 = vadd.f32 %v3024, %v2755
        %v3026 = vadd.f32 %v3025, %v2756
        %v3027 = vadd.f32 %v3026, %v2757
        %v3028 = vadd.f32 %v3027, %v2758
        %v3029 = vadd.f32 %v3028, %v2759
        %v3030 = vadd.f32 %v3029, %v2760
        %v3031 = vadd.f32 %v3030, %v2761
        %v3032 = vadd.f32 %v3031, %v2762
        %v3033 = vadd.f32 %v3032, %v2763
        %v3034 = vadd.f32 %v3033, %v2764
        %v3035 = vadd.f32 %v3034, %v2765
        %v3036 = vadd.f32 %v3035, %v2766
        %v3037 = vadd.f32 %v3036, %v2767
        %v3038 = vadd.f32 %v3037, %v2768
        %v3039 = vadd.f32 %v3038, %v2769
        %v3040 = vrot.slane %v3039, 4
        %v3041 = vadd.f32 %v3039, %v3040
        %v3042 = vrot.slane %v3041, 2
        %v3043 = vadd.f32 %v3041, %v3042
        %v3044 = vrot.slane %v3043, 1
        %v3045 = vadd.f32 %v3043, %v3044
        %v3046 = vadd.f32 %v2770, %v2771
        %v3047 = vadd.f32 %v3046, %v2772
        %v3048 = vadd.f32 %v3047, %v2773
        %v3049 = vadd.f32 %v3048, %v2774
        %v3050 = vadd.f32 %v3049, %v2775
        %v3051 = vadd.f32 %v3050, %v2776
        %v3052 = vadd.f32 %v3051, %v2777
        %v3053 = vadd.f32 %v3052, %v2778
        %v3054 = vadd.f32 %v3053, %v2779
        %v3055 = vadd.f32 %v3054, %v2780
        %v3056 = vadd.f32 %v3055, %v2781
        %v3057 = vadd.f32 %v3056, %v2782
        %v3058 = vadd.f32 %v3057, %v2783
        %v3059 = vadd.f32 %v3058, %v2784
        %v3060 = vadd.f32 %v3059, %v2785
        %v3061 = vadd.f32 %v3060, %v2786
        %v3062 = vadd.f32 %v3061, %v2787
        %v3063 = vadd.f32 %v3062, %v2788
        %v3064 = vadd.f32 %v3063, %v2789
        %v3065 = vadd.f32 %v3064, %v2790
        %v3066 = vadd.f32 %v3065, %v2791
        %v3067 = vadd.f32 %v3066, %v2792
        %v3068 = vadd.f32 %v3067, %v2793
        %v3069 = vadd.f32 %v3068, %v2794
        %v3070 = vadd.f32 %v3069, %v2795
        %v3071 = vadd.f32 %v3070, %v2796
        %v3072 = vadd.f32 %v3071, %v2797
        %v3073 = vadd.f32 %v3072, %v2798
        %v3074 = vadd.f32 %v3073, %v2799
        %v3075 = vadd.f32 %v3074, %v2800
        %v3076 = vadd.f32 %v3075, %v2801
        %v3077 = vrot.slane %v3076, 4
        %v3078 = vadd.f32 %v3076, %v3077
        %v3079 = vrot.slane %v3078, 2
        %v3080 = vadd.f32 %v3078, %v3079
        %v3081 = vrot.slane %v3080, 1
        %v3082 = vadd.f32 %v3080, %v3081
        %v3083 = vadd.f32 %v2802, %v2803
        %v3084 = vadd.f32 %v3083, %v2804
        %v3085 = vadd.f32 %v3084, %v2805
        %v3086 = vadd.f32 %v3085, %v2806
        %v3087 = vadd.f32 %v3086, %v2807
        %v3088 = vadd.f32 %v3087, %v2808
        %v3089 = vadd.f32 %v3088, %v2809
        %v3090 = vadd.f32 %v3089, %v2810
        %v3091 = vadd.f32 %v3090, %v2811
        %v3092 = vadd.f32 %v3091, %v2812
        %v3093 = vadd.f32 %v3092, %v2813
        %v3094 = vadd.f32 %v3093, %v2814
        %v3095 = vadd.f32 %v3094, %v2815
        %v3096 = vadd.f32 %v3095, %v2816
        %v3097 = vadd.f32 %v3096, %v2817
        %v3098 = vadd.f32 %v3097, %v2818
        %v3099 = vadd.f32 %v3098, %v2819
        %v3100 = vadd.f32 %v3099, %v2820
        %v3101 = vadd.f32 %v3100, %v2821
        %v3102 = vadd.f32 %v3101, %v2822
        %v3103 = vadd.f32 %v3102, %v2823
        %v3104 = vadd.f32 %v3103, %v2824
        %v3105 = vadd.f32 %v3104, %v2825
        %v3106 = vadd.f32 %v3105, %v2826
        %v3107 = vadd.f32 %v3106, %v2827
        %v3108 = vadd.f32 %v3107, %v2828
        %v3109 = vadd.f32 %v3108, %v2829
        %v3110 = vadd.f32 %v3109, %v2830
        %v3111 = vadd.f32 %v3110, %v2831
        %v3112 = vadd.f32 %v3111, %v2832
        %v3113 = vadd.f32 %v3112, %v2833
        %v3114 = vrot.slane %v3113, 4
        %v3115 = vadd.f32 %v3113, %v3114
        %v3116 = vrot.slane %v3115, 2
        %v3117 = vadd.f32 %v3115, %v3116
        %v3118 = vrot.slane %v3117, 1
        %v3119 = vadd.f32 %v3117, %v3118
        %v3120 = vadd.f32 %v2834, %v2835
        %v3121 = vadd.f32 %v3120, %v2836
        %v3122 = vadd.f32 %v3121, %v2837
        %v3123 = vadd.f32 %v3122, %v2838
        %v3124 = vadd.f32 %v3123, %v2839
        %v3125 = vadd.f32 %v3124, %v2840
        %v3126 = vadd.f32 %v3125, %v2841
        %v3127 = vadd.f32 %v3126, %v2842
        %v3128 = vadd.f32 %v3127, %v2843
        %v3129 = vadd.f32 %v3128, %v2844
        %v3130 = vadd.f32 %v3129, %v2845
        %v3131 = vadd.f32 %v3130, %v2846
        %v3132 = vadd.f32 %v3131, %v2847
        %v3133 = vadd.f32 %v3132, %v2848
        %v3134 = vadd.f32 %v3133, %v2849
        %v3135 = vadd.f32 %v3134, %v2850
        %v3136 = vadd.f32 %v3135, %v2851
        %v3137 = vadd.f32 %v3136, %v2852
        %v3138 = vadd.f32 %v3137, %v2853
        %v3139 = vadd.f32 %v3138, %v2854
        %v3140 = vadd.f32 %v3139, %v2855
        %v3141 = vadd.f32 %v3140, %v2856
        %v3142 = vadd.f32 %v3141, %v2857
        %v3143 = vadd.f32 %v3142, %v2858
        %v3144 = vadd.f32 %v3143, %v2859
        %v3145 = vadd.f32 %v3144, %v2860
        %v3146 = vadd.f32 %v3145, %v2861
        %v3147 = vadd.f32 %v3146, %v2862
        %v3148 = vadd.f32 %v3147, %v2863
        %v3149 = vadd.f32 %v3148, %v2864
        %v3150 = vadd.f32 %v3149, %v2865
        %v3151 = vrot.slane %v3150, 4
        %v3152 = vadd.f32 %v3150, %v3151
        %v3153 = vrot.slane %v3152, 2
        %v3154 = vadd.f32 %v3152, %v3153
        %v3155 = vrot.slane %v3154, 1
        %v3156 = vadd.f32 %v3154, %v3155
        %v3157 = vadd.f32 %v2866, %v2867
        %v3158 = vadd.f32 %v3157, %v2868
        %v3159 = vadd.f32 %v3158, %v2869
        %v3160 = vadd.f32 %v3159, %v2870
        %v3161 = vadd.f32 %v3160, %v2871
        %v3162 = vadd.f32 %v3161, %v2872
        %v3163 = vadd.f32 %v3162, %v2873
        %v3164 = vadd.f32 %v3163, %v2874
        %v3165 = vadd.f32 %v3164, %v2875
        %v3166 = vadd.f32 %v3165, %v2876
        %v3167 = vadd.f32 %v3166, %v2877
        %v3168 = vadd.f32 %v3167, %v2878
        %v3169 = vadd.f32 %v3168, %v2879
        %v3170 = vadd.f32 %v3169, %v2880
        %v3171 = vadd.f32 %v3170, %v2881
        %v3172 = vadd.f32 %v3171, %v2882
        %v3173 = vadd.f32 %v3172, %v2883
        %v3174 = vadd.f32 %v3173, %v2884
        %v3175 = vadd.f32 %v3174, %v2885
        %v3176 = vadd.f32 %v3175, %v2886
        %v3177 = vadd.f32 %v3176, %v2887
        %v3178 = vadd.f32 %v3177, %v2888
        %v3179 = vadd.f32 %v3178, %v2889
        %v3180 = vadd.f32 %v3179, %v2890
        %v3181 = vadd.f32 %v3180, %v2891
        %v3182 = vadd.f32 %v3181, %v2892
        %v3183 = vadd.f32 %v3182, %v2893
        %v3184 = vadd.f32 %v3183, %v2894
        %v3185 = vadd.f32 %v3184, %v2895
        %v3186 = vadd.f32 %v3185, %v2896
        %v3187 = vadd.f32 %v3186, %v2897
        %v3188 = vrot.slane %v3187, 4
        %v3189 = vadd.f32 %v3187, %v3188
        %v3190 = vrot.slane %v3189, 2
        %v3191 = vadd.f32 %v3189, %v3190
        %v3192 = vrot.slane %v3191, 1
        %v3193 = vadd.f32 %v3191, %v3192
        %v3194 = vrcp.pop 256.0
        %v3195 = vmul.f32 %v2934, %v3194
        %v3196 = vmul.f32 %v2971, %v3194
        %v3197 = vmul.f32 %v3008, %v3194
        %v3198 = vmul.f32 %v3045, %v3194
        %v3199 = vmul.f32 %v3082, %v3194
        %v3200 = vmul.f32 %v3119, %v3194
        %v3201 = vmul.f32 %v3156, %v3194
        %v3202 = vmul.f32 %v3193, %v3194
        %vm3211 = vcmask 1041409
        %v3212 = vsel %vm3211, %v3196, %v3195
        %vm3213 = vcmask 1042434
        %v3214 = vsel %vm3213, %v3197, %v3212
        %vm3215 = vcmask 1043459
        %v3216 = vsel %vm3215, %v3198, %v3214
        %vm3217 = vcmask 1044484
        %v3218 = vsel %vm3217, %v3199, %v3216
        %vm3219 = vcmask 1045509
        %v3220 = vsel %vm3219, %v3200, %v3218
        %vm3221 = vcmask 1046534
        %v3222 = vsel %vm3221, %v3201, %v3220
        %vm3223 = vcmask 1047559
        %v3224 = vsel %vm3223, %v3202, %v3222
        %3226 = vst [vmem:[%s262] sm:$0xff] %v3224
        %v3227 = vld [vmem:[%s2] sm:$0xff]
        %v3228 = vld [vmem:[%s2 + $0x8] sm:$0xff]
        %v3229 = vld [vmem:[%s2 + $0x10] sm:$0xff]
        %v3230 = vld [vmem:[%s2 + $0x18] sm:$0xff]
        %v3231 = vld [vmem:[%s2 + $0x20] sm:$0xff]
        %v3232 = vld [vmem:[%s2 + $0x28] sm:$0xff]
        %v3233 = vld [vmem:[%s2 + $0x30] sm:$0xff]
        %v3234 = vld [vmem:[%s2 + $0x38] sm:$0xff]
        %v3235 = vld [vmem:[%s2 + $0x40] sm:$0xff]
        %v3236 = vld [vmem:[%s2 + $0x48] sm:$0xff]
        %v3237 = vld [vmem:[%s2 + $0x50] sm:$0xff]
        %v3238 = vld [vmem:[%s2 + $0x58] sm:$0xff]
        %v3239 = vld [vmem:[%s2 + $0x60] sm:$0xff]
        %v3240 = vld [vmem:[%s2 + $0x68] sm:$0xff]
        %v3241 = vld [vmem:[%s2 + $0x70] sm:$0xff]
        %v3242 = vld [vmem:[%s2 + $0x78] sm:$0xff]
        %v3243 = vld [vmem:[%s2 + $0x80] sm:$0xff]
        %v3244 = vld [vmem:[%s2 + $0x88] sm:$0xff]
        %v3245 = vld [vmem:[%s2 + $0x90] sm:$0xff]
        %v3246 = vld [vmem:[%s2 + $0x98] sm:$0xff]
        %v3247 = vld [vmem:[%s2 + $0xa0] sm:$0xff]
        %v3248 = vld [vmem:[%s2 + $0xa8] sm:$0xff]
        %v3249 = vld [vmem:[%s2 + $0xb0] sm:$0xff]
        %v3250 = vld [vmem:[%s2 + $0xb8] sm:$0xff]
        %v3251 = vld [vmem:[%s2 + $0xc0] sm:$0xff]
        %v3252 = vld [vmem:[%s2 + $0xc8] sm:$0xff]
        %v3253 = vld [vmem:[%s2 + $0xd0] sm:$0xff]
        %v3254 = vld [vmem:[%s2 + $0xd8] sm:$0xff]
        %v3255 = vld [vmem:[%s2 + $0xe0] sm:$0xff]
        %v3256 = vld [vmem:[%s2 + $0xe8] sm:$0xff]
        %v3257 = vld [vmem:[%s2 + $0xf0] sm:$0xff]
        %v3258 = vld [vmem:[%s2 + $0xf8] sm:$0xff]
        %v3259 = vld [vmem:[%s2 + $0x100] sm:$0xff]
        %v3260 = vld [vmem:[%s2 + $0x108] sm:$0xff]
        %v3261 = vld [vmem:[%s2 + $0x110] sm:$0xff]
        %v3262 = vld [vmem:[%s2 + $0x118] sm:$0xff]
        %v3263 = vld [vmem:[%s2 + $0x120] sm:$0xff]
        %v3264 = vld [vmem:[%s2 + $0x128] sm:$0xff]
        %v3265 = vld [vmem:[%s2 + $0x130] sm:$0xff]
        %v3266 = vld [vmem:[%s2 + $0x138] sm:$0xff]
        %v3267 = vld [vmem:[%s2 + $0x140] sm:$0xff]
        %v3268 = vld [vmem:[%s2 + $0x148] sm:$0xff]
        %v3269 = vld [vmem:[%s2 + $0x150] sm:$0xff]
        %v3270 = vld [vmem:[%s2 + $0x158] sm:$0xff]
        %v3271 = vld [vmem:[%s2 + $0x160] sm:$0xff]
        %v3272 = vld [vmem:[%s2 + $0x168] sm:$0xff]
        %v3273 = vld [vmem:[%s2 + $0x170] sm:$0xff]
        %v3274 = vld [vmem:[%s2 + $0x178] sm:$0xff]
        %v3275 = vld [vmem:[%s2 + $0x180] sm:$0xff]
        %v3276 = vld [vmem:[%s2 + $0x188] sm:$0xff]
        %v3277 = vld [vmem:[%s2 + $0x190] sm:$0xff]
        %v3278 = vld [vmem:[%s2 + $0x198] sm:$0xff]
        %v3279 = vld [vmem:[%s2 + $0x1a0] sm:$0xff]
        %v3280 = vld [vmem:[%s2 + $0x1a8] sm:$0xff]
        %v3281 = vld [vmem:[%s2 + $0x1b0] sm:$0xff]
        %v3282 = vld [vmem:[%s2 + $0x1b8] sm:$0xff]
        %v3283 = vld [vmem:[%s2 + $0x1c0] sm:$0xff]
        %v3284 = vld [vmem:[%s2 + $0x1c8] sm:$0xff]
        %v3285 = vld [vmem:[%s2 + $0x1d0] sm:$0xff]
        %v3286 = vld [vmem:[%s2 + $0x1d8] sm:$0xff]
        %v3287 = vld [vmem:[%s2 + $0x1e0] sm:$0xff]
        %v3288 = vld [vmem:[%s2 + $0x1e8] sm:$0xff]
        %v3289 = vld [vmem:[%s2 + $0x1f0] sm:$0xff]
        %v3290 = vld [vmem:[%s2 + $0x1f8] sm:$0xff]
        %v3291 = vld [vmem:[%s2 + $0x200] sm:$0xff]
        %v3292 = vld [vmem:[%s2 + $0x208] sm:$0xff]
        %v3293 = vld [vmem:[%s2 + $0x210] sm:$0xff]
        %v3294 = vld [vmem:[%s2 + $0x218] sm:$0xff]
        %v3295 = vld [vmem:[%s2 + $0x220] sm:$0xff]
        %v3296 = vld [vmem:[%s2 + $0x228] sm:$0xff]
        %v3297 = vld [vmem:[%s2 + $0x230] sm:$0xff]
        %v3298 = vld [vmem:[%s2 + $0x238] sm:$0xff]
        %v3299 = vld [vmem:[%s2 + $0x240] sm:$0xff]
        %v3300 = vld [vmem:[%s2 + $0x248] sm:$0xff]
        %v3301 = vld [vmem:[%s2 + $0x250] sm:$0xff]
        %v3302 = vld [vmem:[%s2 + $0x258] sm:$0xff]
        %v3303 = vld [vmem:[%s2 + $0x260] sm:$0xff]
        %v3304 = vld [vmem:[%s2 + $0x268] sm:$0xff]
        %v3305 = vld [vmem:[%s2 + $0x270] sm:$0xff]
        %v3306 = vld [vmem:[%s2 + $0x278] sm:$0xff]
        %v3307 = vld [vmem:[%s3] sm:$0xff]
        %3308 = vmatprep.subr.mxu0 0.0
        %3309 = vmatpush1.msra.mxu0 %v3227
        %3310 = vmatprep.subr.mxu0 0.0
        %3311 = vmatpush1.msra.mxu0 %v3228
        %3312 = vmatprep.subr.mxu0 0.0
        %3313 = vmatpush1.msra.mxu0 %v3229
        %3314 = vmatprep.subr.mxu0 0.0
        %3315 = vmatpush1.msra.mxu0 %v3230
        %3316 = vmatprep.subr.mxu0 0.0
        %3317 = vmatpush1.msra.mxu0 %v3231
        %3318 = vmatprep.subr.mxu0 0.0
        %3319 = vmatpush1.msra.mxu0 %v3232
        %3320 = vmatprep.subr.mxu0 0.0
        %3321 = vmatpush1.msra.mxu0 %v3233
        %3322 = vmatprep.subr.mxu0 0.0
        %3323 = vmatpush1.msra.mxu0 %v3234
        %3324 = vmatprep.subr.mxu0 0.0
        %3325 = vmatpush1.msra.mxu0 %v3235
        %3326 = vmatprep.subr.mxu0 0.0
        %3327 = vmatpush1.msra.mxu0 %v3236
        %3328 = vmatprep.subr.mxu0 0.0
        %3329 = vmatpush1.msra.mxu0 %v3237
        %3330 = vmatprep.subr.mxu0 0.0
        %3331 = vmatpush1.msra.mxu0 %v3238
        %3332 = vmatprep.subr.mxu0 0.0
        %3333 = vmatpush1.msra.mxu0 %v3239
        %3334 = vmatprep.subr.mxu0 0.0
        %3335 = vmatpush1.msra.mxu0 %v3240
        %3336 = vmatprep.subr.mxu0 0.0
        %3337 = vmatpush1.msra.mxu0 %v3241
        %3338 = vmatprep.subr.mxu0 0.0
        %3339 = vmatpush1.msra.mxu0 %v3242
        %3340 = vmatprep.subr.mxu0 0.0
        %3341 = vmatpush1.msra.mxu0 0.0
        %3342 = vmatprep.subr.mxu0 0.0
        %3343 = vmatpush1.msra.mxu0 0.0
        %3344 = vmatprep.subr.mxu0 0.0
        %3345 = vmatpush1.msra.mxu0 0.0
        %3346 = vmatprep.subr.mxu0 0.0
        %3347 = vmatpush1.msra.mxu0 0.0
        %3348 = vmatprep.subr.mxu0 0.0
        %3349 = vmatpush1.msra.mxu0 0.0
        %3350 = vmatprep.subr.mxu0 0.0
        %3351 = vmatpush1.msra.mxu0 0.0
        %3352 = vmatprep.subr.mxu0 0.0
        %3353 = vmatpush1.msra.mxu0 0.0
        %3354 = vmatprep.subr.mxu0 0.0
        %3355 = vmatpush1.msra.mxu0 0.0
        %3356 = vmatprep.subr.mxu0 0.0
        %3357 = vmatpush1.msra.mxu0 0.0
        %3358 = vmatprep.subr.mxu0 0.0
        %3359 = vmatpush1.msra.mxu0 0.0
        %3360 = vmatprep.subr.mxu0 0.0
        %3361 = vmatpush1.msra.mxu0 0.0
        %3362 = vmatprep.subr.mxu0 0.0
        %3363 = vmatpush1.msra.mxu0 0.0
        %3364 = vmatprep.subr.mxu0 0.0
        %3365 = vmatpush1.msra.mxu0 0.0
        %3366 = vmatprep.subr.mxu0 0.0
        %3367 = vmatpush1.msra.mxu0 0.0
        %3368 = vmatprep.subr.mxu0 0.0
        %3369 = vmatpush1.msra.mxu0 0.0
        %3370 = vmatprep.subr.mxu0 0.0
        %3371 = vmatpush1.msra.mxu0 0.0
        %3372 = vmatprep.mubr.f32.mxu0 0.0
        %3373 = vmatmul.mubr.f32.gmra.mrb[0].mxu0 %v3224
        %v3374 = vpop.f32.mrb[0].mxu0
        %v3375 = vadd.f32 0.0, %v3374
        %v3376 = vpop.f32.mrb[0].mxu0
        %3377 = vdwg.mxu0
        %v3378 = vrot.slane %v3375, 4
        %v3379 = vadd.f32 %v3375, %v3378
        %v3380 = vrot.slane %v3379, 2
        %v3381 = vadd.f32 %v3379, %v3380
        %v3382 = vrot.slane %v3381, 1
        %v3383 = vadd.f32 %v3381, %v3382
        %v3384 = vrcp.pop 8.0
        %v3385 = vmul.f32 %v3383, %v3384
        %v3386 = vsub.f32 %v3375, %v3385
        %v3387 = vmul.f32 %v3386, %v3386
        %v3388 = vrot.slane %v3387, 4
        %v3389 = vadd.f32 %v3387, %v3388
        %v3390 = vrot.slane %v3389, 2
        %v3391 = vadd.f32 %v3389, %v3390
        %v3392 = vrot.slane %v3391, 1
        %v3393 = vadd.f32 %v3391, %v3392
        %v3394 = vmul.f32 %v3393, %v3384
        %v3395 = vadd.f32 %v3394, 1e-05
        %v3396 = vrsqrt.pop %v3395
        %v3397 = vmul.f32 %v3396, %v3307
        %v3398 = vlaneseq
        %v3399 = vshrl.u32 %v3398, 7
        %v3400 = vsub.s32 0, %v3399
        %v3401 = vrot.slane %v3397, %v3400
        %v3402 = vmul.f32 %v3375, %v3401
        %v3403 = vmul.f32 %v3385, %v3397
        %v3405 = vrot.slane %v3403, 7
        %v3407 = vsub.f32 %v3307, %v3405
        %v3408 = vlaneseq
        %v3409 = vshrl.u32 %v3408, 7
        %v3410 = vsub.s32 1, %v3409
        %v3411 = vrot.slane %v3407, %v3410
        %v3412 = vadd.f32 %v3402, %v3411
        %v3413 = vmax.f32 %v3412, 0.0
        %3414 = vmatprep.subr.mxu0 0.0
        %3415 = vmatpush1.msra.mxu0 %v3243
        %3416 = vmatprep.subr.mxu0 0.0
        %3417 = vmatpush1.msra.mxu0 %v3244
        %3418 = vmatprep.subr.mxu0 0.0
        %3419 = vmatpush1.msra.mxu0 %v3245
        %3420 = vmatprep.subr.mxu0 0.0
        %3421 = vmatpush1.msra.mxu0 %v3246
        %3422 = vmatprep.subr.mxu0 0.0
        %3423 = vmatpush1.msra.mxu0 %v3247
        %3424 = vmatprep.subr.mxu0 0.0
        %3425 = vmatpush1.msra.mxu0 %v3248
        %3426 = vmatprep.subr.mxu0 0.0
        %3427 = vmatpush1.msra.mxu0 %v3249
        %3428 = vmatprep.subr.mxu0 0.0
        %3429 = vmatpush1.msra.mxu0 %v3250
        %3430 = vmatprep.subr.mxu0 0.0
        %3431 = vmatpush1.msra.mxu0 %v3251
        %3432 = vmatprep.subr.mxu0 0.0
        %3433 = vmatpush1.msra.mxu0 %v3252
        %3434 = vmatprep.subr.mxu0 0.0
        %3435 = vmatpush1.msra.mxu0 %v3253
        %3436 = vmatprep.subr.mxu0 0.0
        %3437 = vmatpush1.msra.mxu0 %v3254
        %3438 = vmatprep.subr.mxu0 0.0
        %3439 = vmatpush1.msra.mxu0 %v3255
        %3440 = vmatprep.subr.mxu0 0.0
        %3441 = vmatpush1.msra.mxu0 %v3256
        %3442 = vmatprep.subr.mxu0 0.0
        %3443 = vmatpush1.msra.mxu0 %v3257
        %3444 = vmatprep.subr.mxu0 0.0
        %3445 = vmatpush1.msra.mxu0 %v3258
        %3446 = vmatprep.subr.mxu0 0.0
        %3447 = vmatpush1.msra.mxu0 0.0
        %3448 = vmatprep.subr.mxu0 0.0
        %3449 = vmatpush1.msra.mxu0 0.0
        %3450 = vmatprep.subr.mxu0 0.0
        %3451 = vmatpush1.msra.mxu0 0.0
        %3452 = vmatprep.subr.mxu0 0.0
        %3453 = vmatpush1.msra.mxu0 0.0
        %3454 = vmatprep.subr.mxu0 0.0
        %3455 = vmatpush1.msra.mxu0 0.0
        %3456 = vmatprep.subr.mxu0 0.0
        %3457 = vmatpush1.msra.mxu0 0.0
        %3458 = vmatprep.subr.mxu0 0.0
        %3459 = vmatpush1.msra.mxu0 0.0
        %3460 = vmatprep.subr.mxu0 0.0
        %3461 = vmatpush1.msra.mxu0 0.0
        %3462 = vmatprep.subr.mxu0 0.0
        %3463 = vmatpush1.msra.mxu0 0.0
        %3464 = vmatprep.subr.mxu0 0.0
        %3465 = vmatpush1.msra.mxu0 0.0
        %3466 = vmatprep.subr.mxu0 0.0
        %3467 = vmatpush1.msra.mxu0 0.0
        %3468 = vmatprep.subr.mxu0 0.0
        %3469 = vmatpush1.msra.mxu0 0.0
        %3470 = vmatprep.subr.mxu0 0.0
        %3471 = vmatpush1.msra.mxu0 0.0
        %3472 = vmatprep.subr.mxu0 0.0
        %3473 = vmatpush1.msra.mxu0 0.0
        %3474 = vmatprep.subr.mxu0 0.0
        %3475 = vmatpush1.msra.mxu0 0.0
        %3476 = vmatprep.subr.mxu0 0.0
        %3477 = vmatpush1.msra.mxu0 0.0
        %3478 = vmatprep.mubr.f32.mxu0 0.0
        %3479 = vmatmul.mubr.f32.gmra.mrb[0].mxu0 %v3413
        %v3480 = vpop.f32.mrb[0].mxu0
        %v3481 = vadd.f32 0.0, %v3480
        %v3482 = vpop.f32.mrb[0].mxu0
        %3483 = vdwg.mxu0
        %v3484 = vrot.slane %v3481, 4
        %v3485 = vadd.f32 %v3481, %v3484
        %v3486 = vrot.slane %v3485, 2
        %v3487 = vadd.f32 %v3485, %v3486
        %v3488 = vrot.slane %v3487, 1
        %v3489 = vadd.f32 %v3487, %v3488
        %v3490 = vmul.f32 %v3489, %v3384
        %v3491 = vsub.f32 %v3481, %v3490
        %v3492 = vmul.f32 %v3491, %v3491
        %v3493 = vrot.slane %v3492, 4
        %v3494 = vadd.f32 %v3492, %v3493
        %v3495 = vrot.slane %v3494, 2
        %v3496 = vadd.f32 %v3494, %v3495
        %v3497 = vrot.slane %v3496, 1
        %v3498 = vadd.f32 %v3496, %v3497
        %v3499 = vmul.f32 %v3498, %v3384
        %v3500 = vadd.f32 %v3499, 1e-05
        %v3501 = vrsqrt.pop %v3500
        %v3502 = vmul.f32 %v3501, %v3307
        %v3503 = vlaneseq
        %v3504 = vshrl.u32 %v3503, 7
        %v3505 = vsub.s32 2, %v3504
        %v3506 = vrot.slane %v3502, %v3505
        %v3507 = vmul.f32 %v3481, %v3506
        %v3508 = vmul.f32 %v3490, %v3502
        %v3510 = vrot.slane %v3508, 7
        %v3512 = vsub.f32 %v3307, %v3510
        %v3513 = vlaneseq
        %v3514 = vshrl.u32 %v3513, 7
        %v3515 = vsub.s32 3, %v3514
        %v3516 = vrot.slane %v3512, %v3515
        %v3517 = vadd.f32 %v3507, %v3516
        %v3518 = vmax.f32 %v3517, 0.0
        %v3519 = vlaneseq
        %v3520 = vshrl.u32 %v3519, 7
        %v3521 = vsub.s32 4, %v3520
        %v3522 = vrot.slane %v3307, %v3521
        %3523 = vmatprep.subr.mxu0 0.0
        %3524 = vmatpush1.msra.mxu0 %v3259
        %3525 = vmatprep.subr.mxu0 0.0
        %3526 = vmatpush1.msra.mxu0 %v3260
        %3527 = vmatprep.subr.mxu0 0.0
        %3528 = vmatpush1.msra.mxu0 %v3261
        %3529 = vmatprep.subr.mxu0 0.0
        %3530 = vmatpush1.msra.mxu0 %v3262
        %3531 = vmatprep.subr.mxu0 0.0
        %3532 = vmatpush1.msra.mxu0 %v3263
        %3533 = vmatprep.subr.mxu0 0.0
        %3534 = vmatpush1.msra.mxu0 %v3264
        %3535 = vmatprep.subr.mxu0 0.0
        %3536 = vmatpush1.msra.mxu0 %v3265
        %3537 = vmatprep.subr.mxu0 0.0
        %3538 = vmatpush1.msra.mxu0 %v3266
        %3539 = vmatprep.subr.mxu0 0.0
        %3540 = vmatpush1.msra.mxu0 %v3267
        %3541 = vmatprep.subr.mxu0 0.0
        %3542 = vmatpush1.msra.mxu0 %v3268
        %3543 = vmatprep.subr.mxu0 0.0
        %3544 = vmatpush1.msra.mxu0 %v3269
        %3545 = vmatprep.subr.mxu0 0.0
        %3546 = vmatpush1.msra.mxu0 %v3270
        %3547 = vmatprep.subr.mxu0 0.0
        %3548 = vmatpush1.msra.mxu0 %v3271
        %3549 = vmatprep.subr.mxu0 0.0
        %3550 = vmatpush1.msra.mxu0 %v3272
        %3551 = vmatprep.subr.mxu0 0.0
        %3552 = vmatpush1.msra.mxu0 %v3273
        %3553 = vmatprep.subr.mxu0 0.0
        %3554 = vmatpush1.msra.mxu0 %v3274
        %3555 = vmatprep.subr.mxu0 0.0
        %3556 = vmatpush1.msra.mxu0 0.0
        %3557 = vmatprep.subr.mxu0 0.0
        %3558 = vmatpush1.msra.mxu0 0.0
        %3559 = vmatprep.subr.mxu0 0.0
        %3560 = vmatpush1.msra.mxu0 0.0
        %3561 = vmatprep.subr.mxu0 0.0
        %3562 = vmatpush1.msra.mxu0 0.0
        %3563 = vmatprep.subr.mxu0 0.0
        %3564 = vmatpush1.msra.mxu0 0.0
        %3565 = vmatprep.subr.mxu0 0.0
        %3566 = vmatpush1.msra.mxu0 0.0
        %3567 = vmatprep.subr.mxu0 0.0
        %3568 = vmatpush1.msra.mxu0 0.0
        %3569 = vmatprep.subr.mxu0 0.0
        %3570 = vmatpush1.msra.mxu0 0.0
        %3571 = vmatprep.subr.mxu0 0.0
        %3572 = vmatpush1.msra.mxu0 0.0
        %3573 = vmatprep.subr.mxu0 0.0
        %3574 = vmatpush1.msra.mxu0 0.0
        %3575 = vmatprep.subr.mxu0 0.0
        %3576 = vmatpush1.msra.mxu0 0.0
        %3577 = vmatprep.subr.mxu0 0.0
        %3578 = vmatpush1.msra.mxu0 0.0
        %3579 = vmatprep.subr.mxu0 0.0
        %3580 = vmatpush1.msra.mxu0 0.0
        %3581 = vmatprep.subr.mxu0 0.0
        %3582 = vmatpush1.msra.mxu0 0.0
        %3583 = vmatprep.subr.mxu0 0.0
        %3584 = vmatpush1.msra.mxu0 0.0
        %3585 = vmatprep.subr.mxu0 0.0
        %3586 = vmatpush1.msra.mxu0 0.0
        %3587 = vmatprep.mubr.f32.mxu0 0.0
        %3588 = vmatmul.mubr.f32.gmra.mrb[0].mxu0 %v3518
        %v3589 = vpop.f32.mrb[0].mxu0
        %v3590 = vadd.f32 %v3522, %v3589
        %v3591 = vpop.f32.mrb[0].mxu0
        %3592 = vdwg.mxu0
        %v3593 = vrot.slane %v3590, 4
        %v3594 = vadd.f32 %v3590, %v3593
        %v3595 = vrot.slane %v3594, 2
        %v3596 = vadd.f32 %v3594, %v3595
        %v3597 = vrot.slane %v3596, 1
        %v3598 = vadd.f32 %v3596, %v3597
        %v3599 = vmul.f32 %v3598, %v3384
        %v3600 = vsub.f32 %v3590, %v3599
        %v3601 = vmul.f32 %v3600, %v3600
        %v3602 = vrot.slane %v3601, 4
        %v3603 = vadd.f32 %v3601, %v3602
        %v3604 = vrot.slane %v3603, 2
        %v3605 = vadd.f32 %v3603, %v3604
        %v3606 = vrot.slane %v3605, 1
        %v3607 = vadd.f32 %v3605, %v3606
        %v3608 = vmul.f32 %v3607, %v3384
        %v3609 = vadd.f32 %v3608, 1e-05
        %v3610 = vrsqrt.pop %v3609
        %v3611 = vmul.f32 %v3590, %v3610
        %v3612 = vmul.f32 %v3599, %v3610
        %v3613 = vsub.f32 0.0, %v3612
        %v3614 = vadd.f32 %v3611, %v3613
        %3615 = vmatprep.subr.mxu0 0.0
        %3616 = vmatpush1.msra.mxu0 %v3275
        %3617 = vmatprep.subr.mxu0 0.0
        %3618 = vmatpush1.msra.mxu0 %v3276
        %3619 = vmatprep.subr.mxu0 0.0
        %3620 = vmatpush1.msra.mxu0 %v3277
        %3621 = vmatprep.subr.mxu0 0.0
        %3622 = vmatpush1.msra.mxu0 %v3278
        %3623 = vmatprep.subr.mxu0 0.0
        %3624 = vmatpush1.msra.mxu0 %v3279
        %3625 = vmatprep.subr.mxu0 0.0
        %3626 = vmatpush1.msra.mxu0 %v3280
        %3627 = vmatprep.subr.mxu0 0.0
        %3628 = vmatpush1.msra.mxu0 %v3281
        %3629 = vmatprep.subr.mxu0 0.0
        %3630 = vmatpush1.msra.mxu0 %v3282
        %3631 = vmatprep.subr.mxu0 0.0
        %3632 = vmatpush1.msra.mxu0 %v3283
        %3633 = vmatprep.subr.mxu0 0.0
        %3634 = vmatpush1.msra.mxu0 %v3284
        %3635 = vmatprep.subr.mxu0 0.0
        %3636 = vmatpush1.msra.mxu0 %v3285
        %3637 = vmatprep.subr.mxu0 0.0
        %3638 = vmatpush1.msra.mxu0 %v3286
        %3639 = vmatprep.subr.mxu0 0.0
        %3640 = vmatpush1.msra.mxu0 %v3287
        %3641 = vmatprep.subr.mxu0 0.0
        %3642 = vmatpush1.msra.mxu0 %v3288
        %3643 = vmatprep.subr.mxu0 0.0
        %3644 = vmatpush1.msra.mxu0 %v3289
        %3645 = vmatprep.subr.mxu0 0.0
        %3646 = vmatpush1.msra.mxu0 %v3290
        %3647 = vmatprep.subr.mxu0 0.0
        %3648 = vmatpush1.msra.mxu0 0.0
        %3649 = vmatprep.subr.mxu0 0.0
        %3650 = vmatpush1.msra.mxu0 0.0
        %3651 = vmatprep.subr.mxu0 0.0
        %3652 = vmatpush1.msra.mxu0 0.0
        %3653 = vmatprep.subr.mxu0 0.0
        %3654 = vmatpush1.msra.mxu0 0.0
        %3655 = vmatprep.subr.mxu0 0.0
        %3656 = vmatpush1.msra.mxu0 0.0
        %3657 = vmatprep.subr.mxu0 0.0
        %3658 = vmatpush1.msra.mxu0 0.0
        %3659 = vmatprep.subr.mxu0 0.0
        %3660 = vmatpush1.msra.mxu0 0.0
        %3661 = vmatprep.subr.mxu0 0.0
        %3662 = vmatpush1.msra.mxu0 0.0
        %3663 = vmatprep.subr.mxu0 0.0
        %3664 = vmatpush1.msra.mxu0 0.0
        %3665 = vmatprep.subr.mxu0 0.0
        %3666 = vmatpush1.msra.mxu0 0.0
        %3667 = vmatprep.subr.mxu0 0.0
        %3668 = vmatpush1.msra.mxu0 0.0
        %3669 = vmatprep.subr.mxu0 0.0
        %3670 = vmatpush1.msra.mxu0 0.0
        %3671 = vmatprep.subr.mxu0 0.0
        %3672 = vmatpush1.msra.mxu0 0.0
        %3673 = vmatprep.subr.mxu0 0.0
        %3674 = vmatpush1.msra.mxu0 0.0
        %3675 = vmatprep.subr.mxu0 0.0
        %3676 = vmatpush1.msra.mxu0 0.0
        %3677 = vmatprep.subr.mxu0 0.0
        %3678 = vmatpush1.msra.mxu0 0.0
        %3679 = vmatprep.mubr.f32.mxu0 0.0
        %3680 = vmatmul.mubr.f32.gmra.mrb[0].mxu0 %v3614
        %v3681 = vpop.f32.mrb[0].mxu0
        %v3682 = vadd.f32 0.0, %v3681
        %v3683 = vpop.f32.mrb[0].mxu0
        %3684 = vdwg.mxu0
        %v3685 = vrot.slane %v3682, 4
        %v3686 = vadd.f32 %v3682, %v3685
        %v3687 = vrot.slane %v3686, 2
        %v3688 = vadd.f32 %v3686, %v3687
        %v3689 = vrot.slane %v3688, 1
        %v3690 = vadd.f32 %v3688, %v3689
        %v3691 = vmul.f32 %v3690, %v3384
        %v3692 = vsub.f32 %v3682, %v3691
        %v3693 = vmul.f32 %v3692, %v3692
        %v3694 = vrot.slane %v3693, 4
        %v3695 = vadd.f32 %v3693, %v3694
        %v3696 = vrot.slane %v3695, 2
        %v3697 = vadd.f32 %v3695, %v3696
        %v3698 = vrot.slane %v3697, 1
        %v3699 = vadd.f32 %v3697, %v3698
        %v3700 = vmul.f32 %v3699, %v3384
        %v3701 = vadd.f32 %v3700, 1e-05
        %v3702 = vrsqrt.pop %v3701
        %v3703 = vmul.f32 %v3702, %v3307
        %v3704 = vlaneseq
        %v3705 = vshrl.u32 %v3704, 7
        %v3706 = vsub.s32 5, %v3705
        %v3707 = vrot.slane %v3703, %v3706
        %v3708 = vmul.f32 %v3682, %v3707
        %v3709 = vmul.f32 %v3691, %v3703
        %v3711 = vrot.slane %v3709, 7
        %v3713 = vsub.f32 %v3307, %v3711
        %v3714 = vlaneseq
        %v3715 = vshrl.u32 %v3714, 7
        %v3716 = vsub.s32 6, %v3715
        %v3717 = vrot.slane %v3713, %v3716
        %v3718 = vadd.f32 %v3708, %v3717
        %v3719 = vmax.f32 %v3718, 0.0
        %v3720 = vlaneseq
        %v3721 = vshrl.u32 %v3720, 7
        %v3722 = vsub.s32 7, %v3721
        %v3723 = vrot.slane %v3307, %v3722
        %3724 = vmatprep.subr.mxu0 0.0
        %3725 = vmatpush1.msra.mxu0 %v3291
        %3726 = vmatprep.subr.mxu0 0.0
        %3727 = vmatpush1.msra.mxu0 %v3292
        %3728 = vmatprep.subr.mxu0 0.0
        %3729 = vmatpush1.msra.mxu0 %v3293
        %3730 = vmatprep.subr.mxu0 0.0
        %3731 = vmatpush1.msra.mxu0 %v3294
        %3732 = vmatprep.subr.mxu0 0.0
        %3733 = vmatpush1.msra.mxu0 %v3295
        %3734 = vmatprep.subr.mxu0 0.0
        %3735 = vmatpush1.msra.mxu0 %v3296
        %3736 = vmatprep.subr.mxu0 0.0
        %3737 = vmatpush1.msra.mxu0 %v3297
        %3738 = vmatprep.subr.mxu0 0.0
        %3739 = vmatpush1.msra.mxu0 %v3298
        %3740 = vmatprep.subr.mxu0 0.0
        %3741 = vmatpush1.msra.mxu0 %v3299
        %3742 = vmatprep.subr.mxu0 0.0
        %3743 = vmatpush1.msra.mxu0 %v3300
        %3744 = vmatprep.subr.mxu0 0.0
        %3745 = vmatpush1.msra.mxu0 %v3301
        %3746 = vmatprep.subr.mxu0 0.0
        %3747 = vmatpush1.msra.mxu0 %v3302
        %3748 = vmatprep.subr.mxu0 0.0
        %3749 = vmatpush1.msra.mxu0 %v3303
        %3750 = vmatprep.subr.mxu0 0.0
        %3751 = vmatpush1.msra.mxu0 %v3304
        %3752 = vmatprep.subr.mxu0 0.0
        %3753 = vmatpush1.msra.mxu0 %v3305
        %3754 = vmatprep.subr.mxu0 0.0
        %3755 = vmatpush1.msra.mxu0 %v3306
        %3756 = vmatprep.subr.mxu0 0.0
        %3757 = vmatpush1.msra.mxu0 0.0
        %3758 = vmatprep.subr.mxu0 0.0
        %3759 = vmatpush1.msra.mxu0 0.0
        %3760 = vmatprep.subr.mxu0 0.0
        %3761 = vmatpush1.msra.mxu0 0.0
        %3762 = vmatprep.subr.mxu0 0.0
        %3763 = vmatpush1.msra.mxu0 0.0
        %3764 = vmatprep.subr.mxu0 0.0
        %3765 = vmatpush1.msra.mxu0 0.0
        %3766 = vmatprep.subr.mxu0 0.0
        %3767 = vmatpush1.msra.mxu0 0.0
        %3768 = vmatprep.subr.mxu0 0.0
        %3769 = vmatpush1.msra.mxu0 0.0
        %3770 = vmatprep.subr.mxu0 0.0
        %3771 = vmatpush1.msra.mxu0 0.0
        %3772 = vmatprep.subr.mxu0 0.0
        %3773 = vmatpush1.msra.mxu0 0.0
        %3774 = vmatprep.subr.mxu0 0.0
        %3775 = vmatpush1.msra.mxu0 0.0
        %3776 = vmatprep.subr.mxu0 0.0
        %3777 = vmatpush1.msra.mxu0 0.0
        %3778 = vmatprep.subr.mxu0 0.0
        %3779 = vmatpush1.msra.mxu0 0.0
        %3780 = vmatprep.subr.mxu0 0.0
        %3781 = vmatpush1.msra.mxu0 0.0
        %3782 = vmatprep.subr.mxu0 0.0
        %3783 = vmatpush1.msra.mxu0 0.0
        %3784 = vmatprep.subr.mxu0 0.0
        %3785 = vmatpush1.msra.mxu0 0.0
        %3786 = vmatprep.subr.mxu0 0.0
        %3787 = vmatpush1.msra.mxu0 0.0
        %3788 = vmatprep.mubr.f32.mxu0 0.0
        %3789 = vmatmul.mubr.f32.gmra.mrb[0].mxu0 %v3719
        %v3790 = vpop.f32.mrb[0].mxu0
        %v3791 = vadd.f32 %v3723, %v3790
        %v3792 = vpop.f32.mrb[0].mxu0
        %3793 = vdwg.mxu0
        %3794 = vst [vmem:[%s247] sm:$0xff] %v3614
        %3795 = vst [vmem:[%s253] sm:$0xff] %v3791
        %s3796 = scalar_lea.vmem %s2, 640
        %v3797 = vld [vmem:[%s3796] sm:$0xff]
        %v3798 = vld [vmem:[%s3796 + $0x8] sm:$0xff]
        %v3799 = vld [vmem:[%s3796 + $0x10] sm:$0xff]
        %v3800 = vld [vmem:[%s3796 + $0x18] sm:$0xff]
        %v3801 = vld [vmem:[%s3796 + $0x20] sm:$0xff]
        %v3802 = vld [vmem:[%s3796 + $0x28] sm:$0xff]
        %v3803 = vld [vmem:[%s3796 + $0x30] sm:$0xff]
        %v3804 = vld [vmem:[%s3796 + $0x38] sm:$0xff]
        %v3805 = vld [vmem:[%s3796 + $0x40] sm:$0xff]
        %v3806 = vld [vmem:[%s3796 + $0x48] sm:$0xff]
        %v3807 = vld [vmem:[%s3796 + $0x50] sm:$0xff]
        %v3808 = vld [vmem:[%s3796 + $0x58] sm:$0xff]
        %v3809 = vld [vmem:[%s3796 + $0x60] sm:$0xff]
        %v3810 = vld [vmem:[%s3796 + $0x68] sm:$0xff]
        %v3811 = vld [vmem:[%s3796 + $0x70] sm:$0xff]
        %v3812 = vld [vmem:[%s3796 + $0x78] sm:$0xff]
        %v3813 = vld [vmem:[%s3796 + $0x80] sm:$0xff]
        %v3814 = vld [vmem:[%s3796 + $0x88] sm:$0xff]
        %v3815 = vld [vmem:[%s3796 + $0x90] sm:$0xff]
        %v3816 = vld [vmem:[%s3796 + $0x98] sm:$0xff]
        %v3817 = vld [vmem:[%s3796 + $0xa0] sm:$0xff]
        %v3818 = vld [vmem:[%s3796 + $0xa8] sm:$0xff]
        %v3819 = vld [vmem:[%s3796 + $0xb0] sm:$0xff]
        %v3820 = vld [vmem:[%s3796 + $0xb8] sm:$0xff]
        %v3821 = vld [vmem:[%s3796 + $0xc0] sm:$0xff]
        %v3822 = vld [vmem:[%s3796 + $0xc8] sm:$0xff]
        %v3823 = vld [vmem:[%s3796 + $0xd0] sm:$0xff]
        %v3824 = vld [vmem:[%s3796 + $0xd8] sm:$0xff]
        %v3825 = vld [vmem:[%s3796 + $0xe0] sm:$0xff]
        %v3826 = vld [vmem:[%s3796 + $0xe8] sm:$0xff]
        %v3827 = vld [vmem:[%s3796 + $0xf0] sm:$0xff]
        %v3828 = vld [vmem:[%s3796 + $0xf8] sm:$0xff]
        %v3829 = vld [vmem:[%s3796 + $0x100] sm:$0xff]
        %v3830 = vld [vmem:[%s3796 + $0x108] sm:$0xff]
        %v3831 = vld [vmem:[%s3796 + $0x110] sm:$0xff]
        %v3832 = vld [vmem:[%s3796 + $0x118] sm:$0xff]
        %v3833 = vld [vmem:[%s3796 + $0x120] sm:$0xff]
        %v3834 = vld [vmem:[%s3796 + $0x128] sm:$0xff]
        %v3835 = vld [vmem:[%s3796 + $0x130] sm:$0xff]
        %v3836 = vld [vmem:[%s3796 + $0x138] sm:$0xff]
        %v3837 = vld [vmem:[%s3796 + $0x140] sm:$0xff]
        %v3838 = vld [vmem:[%s3796 + $0x148] sm:$0xff]
        %v3839 = vld [vmem:[%s3796 + $0x150] sm:$0xff]
        %v3840 = vld [vmem:[%s3796 + $0x158] sm:$0xff]
        %v3841 = vld [vmem:[%s3796 + $0x160] sm:$0xff]
        %v3842 = vld [vmem:[%s3796 + $0x168] sm:$0xff]
        %v3843 = vld [vmem:[%s3796 + $0x170] sm:$0xff]
        %v3844 = vld [vmem:[%s3796 + $0x178] sm:$0xff]
        %v3845 = vld [vmem:[%s3796 + $0x180] sm:$0xff]
        %v3846 = vld [vmem:[%s3796 + $0x188] sm:$0xff]
        %v3847 = vld [vmem:[%s3796 + $0x190] sm:$0xff]
        %v3848 = vld [vmem:[%s3796 + $0x198] sm:$0xff]
        %v3849 = vld [vmem:[%s3796 + $0x1a0] sm:$0xff]
        %v3850 = vld [vmem:[%s3796 + $0x1a8] sm:$0xff]
        %v3851 = vld [vmem:[%s3796 + $0x1b0] sm:$0xff]
        %v3852 = vld [vmem:[%s3796 + $0x1b8] sm:$0xff]
        %v3853 = vld [vmem:[%s3796 + $0x1c0] sm:$0xff]
        %v3854 = vld [vmem:[%s3796 + $0x1c8] sm:$0xff]
        %v3855 = vld [vmem:[%s3796 + $0x1d0] sm:$0xff]
        %v3856 = vld [vmem:[%s3796 + $0x1d8] sm:$0xff]
        %v3857 = vld [vmem:[%s3796 + $0x1e0] sm:$0xff]
        %v3858 = vld [vmem:[%s3796 + $0x1e8] sm:$0xff]
        %v3859 = vld [vmem:[%s3796 + $0x1f0] sm:$0xff]
        %v3860 = vld [vmem:[%s3796 + $0x1f8] sm:$0xff]
        %v3861 = vld [vmem:[%s3796 + $0x200] sm:$0xff]
        %v3862 = vld [vmem:[%s3796 + $0x208] sm:$0xff]
        %v3863 = vld [vmem:[%s3796 + $0x210] sm:$0xff]
        %v3864 = vld [vmem:[%s3796 + $0x218] sm:$0xff]
        %v3865 = vld [vmem:[%s3796 + $0x220] sm:$0xff]
        %v3866 = vld [vmem:[%s3796 + $0x228] sm:$0xff]
        %v3867 = vld [vmem:[%s3796 + $0x230] sm:$0xff]
        %v3868 = vld [vmem:[%s3796 + $0x238] sm:$0xff]
        %v3869 = vld [vmem:[%s3796 + $0x240] sm:$0xff]
        %v3870 = vld [vmem:[%s3796 + $0x248] sm:$0xff]
        %v3871 = vld [vmem:[%s3796 + $0x250] sm:$0xff]
        %v3872 = vld [vmem:[%s3796 + $0x258] sm:$0xff]
        %v3873 = vld [vmem:[%s3796 + $0x260] sm:$0xff]
        %v3874 = vld [vmem:[%s3796 + $0x268] sm:$0xff]
        %v3875 = vld [vmem:[%s3796 + $0x270] sm:$0xff]
        %v3876 = vld [vmem:[%s3796 + $0x278] sm:$0xff]
        %s3877 = scalar_lea.vmem %s3, 8
        %v3878 = vld [vmem:[%s3877] sm:$0xff]
        %3879 = vmatprep.subr.mxu0 0.0
        %3880 = vmatpush1.msra.mxu0 %v3797
        %3881 = vmatprep.subr.mxu0 0.0
        %3882 = vmatpush1.msra.mxu0 %v3798
        %3883 = vmatprep.subr.mxu0 0.0
        %3884 = vmatpush1.msra.mxu0 %v3799
        %3885 = vmatprep.subr.mxu0 0.0
        %3886 = vmatpush1.msra.mxu0 %v3800
        %3887 = vmatprep.subr.mxu0 0.0
        %3888 = vmatpush1.msra.mxu0 %v3801
        %3889 = vmatprep.subr.mxu0 0.0
        %3890 = vmatpush1.msra.mxu0 %v3802
        %3891 = vmatprep.subr.mxu0 0.0
        %3892 = vmatpush1.msra.mxu0 %v3803
        %3893 = vmatprep.subr.mxu0 0.0
        %3894 = vmatpush1.msra.mxu0 %v3804
        %3895 = vmatprep.subr.mxu0 0.0
        %3896 = vmatpush1.msra.mxu0 %v3805
        %3897 = vmatprep.subr.mxu0 0.0
        %3898 = vmatpush1.msra.mxu0 %v3806
        %3899 = vmatprep.subr.mxu0 0.0
        %3900 = vmatpush1.msra.mxu0 %v3807
        %3901 = vmatprep.subr.mxu0 0.0
        %3902 = vmatpush1.msra.mxu0 %v3808
        %3903 = vmatprep.subr.mxu0 0.0
        %3904 = vmatpush1.msra.mxu0 %v3809
        %3905 = vmatprep.subr.mxu0 0.0
        %3906 = vmatpush1.msra.mxu0 %v3810
        %3907 = vmatprep.subr.mxu0 0.0
        %3908 = vmatpush1.msra.mxu0 %v3811
        %3909 = vmatprep.subr.mxu0 0.0
        %3910 = vmatpush1.msra.mxu0 %v3812
        %3911 = vmatprep.subr.mxu0 0.0
        %3912 = vmatpush1.msra.mxu0 0.0
        %3913 = vmatprep.subr.mxu0 0.0
        %3914 = vmatpush1.msra.mxu0 0.0
        %3915 = vmatprep.subr.mxu0 0.0
        %3916 = vmatpush1.msra.mxu0 0.0
        %3917 = vmatprep.subr.mxu0 0.0
        %3918 = vmatpush1.msra.mxu0 0.0
        %3919 = vmatprep.subr.mxu0 0.0
        %3920 = vmatpush1.msra.mxu0 0.0
        %3921 = vmatprep.subr.mxu0 0.0
        %3922 = vmatpush1.msra.mxu0 0.0
        %3923 = vmatprep.subr.mxu0 0.0
        %3924 = vmatpush1.msra.mxu0 0.0
        %3925 = vmatprep.subr.mxu0 0.0
        %3926 = vmatpush1.msra.mxu0 0.0
        %3927 = vmatprep.subr.mxu0 0.0
        %3928 = vmatpush1.msra.mxu0 0.0
        %3929 = vmatprep.subr.mxu0 0.0
        %3930 = vmatpush1.msra.mxu0 0.0
        %3931 = vmatprep.subr.mxu0 0.0
        %3932 = vmatpush1.msra.mxu0 0.0
        %3933 = vmatprep.subr.mxu0 0.0
        %3934 = vmatpush1.msra.mxu0 0.0
        %3935 = vmatprep.subr.mxu0 0.0
        %3936 = vmatpush1.msra.mxu0 0.0
        %3937 = vmatprep.subr.mxu0 0.0
        %3938 = vmatpush1.msra.mxu0 0.0
        %3939 = vmatprep.subr.mxu0 0.0
        %3940 = vmatpush1.msra.mxu0 0.0
        %3941 = vmatprep.subr.mxu0 0.0
        %3942 = vmatpush1.msra.mxu0 0.0
        %3943 = vmatprep.mubr.f32.mxu0 0.0
        %3944 = vmatmul.mubr.f32.gmra.mrb[0].mxu0 %v3224
        %v3945 = vpop.f32.mrb[0].mxu0
        %v3946 = vadd.f32 0.0, %v3945
        %v3947 = vpop.f32.mrb[0].mxu0
        %3948 = vdwg.mxu0
        %v3949 = vrot.slane %v3946, 4
        %v3950 = vadd.f32 %v3946, %v3949
        %v3951 = vrot.slane %v3950, 2
        %v3952 = vadd.f32 %v3950, %v3951
        %v3953 = vrot.slane %v3952, 1
        %v3954 = vadd.f32 %v3952, %v3953
        %v3955 = vmul.f32 %v3954, %v3384
        %v3956 = vsub.f32 %v3946, %v3955
        %v3957 = vmul.f32 %v3956, %v3956
        %v3958 = vrot.slane %v3957, 4
        %v3959 = vadd.f32 %v3957, %v3958
        %v3960 = vrot.slane %v3959, 2
        %v3961 = vadd.f32 %v3959, %v3960
        %v3962 = vrot.slane %v3961, 1
        %v3963 = vadd.f32 %v3961, %v3962
        %v3964 = vmul.f32 %v3963, %v3384
        %v3965 = vadd.f32 %v3964, 1e-05
        %v3966 = vrsqrt.pop %v3965
        %v3967 = vmul.f32 %v3966, %v3878
        %v3968 = vlaneseq
        %v3969 = vshrl.u32 %v3968, 7
        %v3970 = vsub.s32 0, %v3969
        %v3971 = vrot.slane %v3967, %v3970
        %v3972 = vmul.f32 %v3946, %v3971
        %v3973 = vmul.f32 %v3955, %v3967
        %v3975 = vrot.slane %v3973, 7
        %v3977 = vsub.f32 %v3878, %v3975
        %v3978 = vlaneseq
        %v3979 = vshrl.u32 %v3978, 7
        %v3980 = vsub.s32 1, %v3979
        %v3981 = vrot.slane %v3977, %v3980
        %v3982 = vadd.f32 %v3972, %v3981
        %v3983 = vmax.f32 %v3982, 0.0
        %3984 = vmatprep.subr.mxu0 0.0
        %3985 = vmatpush1.msra.mxu0 %v3813
        %3986 = vmatprep.subr.mxu0 0.0
        %3987 = vmatpush1.msra.mxu0 %v3814
        %3988 = vmatprep.subr.mxu0 0.0
        %3989 = vmatpush1.msra.mxu0 %v3815
        %3990 = vmatprep.subr.mxu0 0.0
        %3991 = vmatpush1.msra.mxu0 %v3816
        %3992 = vmatprep.subr.mxu0 0.0
        %3993 = vmatpush1.msra.mxu0 %v3817
        %3994 = vmatprep.subr.mxu0 0.0
        %3995 = vmatpush1.msra.mxu0 %v3818
        %3996 = vmatprep.subr.mxu0 0.0
        %3997 = vmatpush1.msra.mxu0 %v3819
        %3998 = vmatprep.subr.mxu0 0.0
        %3999 = vmatpush1.msra.mxu0 %v3820
        %4000 = vmatprep.subr.mxu0 0.0
        %4001 = vmatpush1.msra.mxu0 %v3821
        %4002 = vmatprep.subr.mxu0 0.0
        %4003 = vmatpush1.msra.mxu0 %v3822
        %4004 = vmatprep.subr.mxu0 0.0
        %4005 = vmatpush1.msra.mxu0 %v3823
        %4006 = vmatprep.subr.mxu0 0.0
        %4007 = vmatpush1.msra.mxu0 %v3824
        %4008 = vmatprep.subr.mxu0 0.0
        %4009 = vmatpush1.msra.mxu0 %v3825
        %4010 = vmatprep.subr.mxu0 0.0
        %4011 = vmatpush1.msra.mxu0 %v3826
        %4012 = vmatprep.subr.mxu0 0.0
        %4013 = vmatpush1.msra.mxu0 %v3827
        %4014 = vmatprep.subr.mxu0 0.0
        %4015 = vmatpush1.msra.mxu0 %v3828
        %4016 = vmatprep.subr.mxu0 0.0
        %4017 = vmatpush1.msra.mxu0 0.0
        %4018 = vmatprep.subr.mxu0 0.0
        %4019 = vmatpush1.msra.mxu0 0.0
        %4020 = vmatprep.subr.mxu0 0.0
        %4021 = vmatpush1.msra.mxu0 0.0
        %4022 = vmatprep.subr.mxu0 0.0
        %4023 = vmatpush1.msra.mxu0 0.0
        %4024 = vmatprep.subr.mxu0 0.0
        %4025 = vmatpush1.msra.mxu0 0.0
        %4026 = vmatprep.subr.mxu0 0.0
        %4027 = vmatpush1.msra.mxu0 0.0
        %4028 = vmatprep.subr.mxu0 0.0
        %4029 = vmatpush1.msra.mxu0 0.0
        %4030 = vmatprep.subr.mxu0 0.0
        %4031 = vmatpush1.msra.mxu0 0.0
        %4032 = vmatprep.subr.mxu0 0.0
        %4033 = vmatpush1.msra.mxu0 0.0
        %4034 = vmatprep.subr.mxu0 0.0
        %4035 = vmatpush1.msra.mxu0 0.0
        %4036 = vmatprep.subr.mxu0 0.0
        %4037 = vmatpush1.msra.mxu0 0.0
        %4038 = vmatprep.subr.mxu0 0.0
        %4039 = vmatpush1.msra.mxu0 0.0
        %4040 = vmatprep.subr.mxu0 0.0
        %4041 = vmatpush1.msra.mxu0 0.0
        %4042 = vmatprep.subr.mxu0 0.0
        %4043 = vmatpush1.msra.mxu0 0.0
        %4044 = vmatprep.subr.mxu0 0.0
        %4045 = vmatpush1.msra.mxu0 0.0
        %4046 = vmatprep.subr.mxu0 0.0
        %4047 = vmatpush1.msra.mxu0 0.0
        %4048 = vmatprep.mubr.f32.mxu0 0.0
        %4049 = vmatmul.mubr.f32.gmra.mrb[0].mxu0 %v3983
        %v4050 = vpop.f32.mrb[0].mxu0
        %v4051 = vadd.f32 0.0, %v4050
        %v4052 = vpop.f32.mrb[0].mxu0
        %4053 = vdwg.mxu0
        %v4054 = vrot.slane %v4051, 4
        %v4055 = vadd.f32 %v4051, %v4054
        %v4056 = vrot.slane %v4055, 2
        %v4057 = vadd.f32 %v4055, %v4056
        %v4058 = vrot.slane %v4057, 1
        %v4059 = vadd.f32 %v4057, %v4058
        %v4060 = vmul.f32 %v4059, %v3384
        %v4061 = vsub.f32 %v4051, %v4060
        %v4062 = vmul.f32 %v4061, %v4061
        %v4063 = vrot.slane %v4062, 4
        %v4064 = vadd.f32 %v4062, %v4063
        %v4065 = vrot.slane %v4064, 2
        %v4066 = vadd.f32 %v4064, %v4065
        %v4067 = vrot.slane %v4066, 1
        %v4068 = vadd.f32 %v4066, %v4067
        %v4069 = vmul.f32 %v4068, %v3384
        %v4070 = vadd.f32 %v4069, 1e-05
        %v4071 = vrsqrt.pop %v4070
        %v4072 = vmul.f32 %v4071, %v3878
        %v4073 = vlaneseq
        %v4074 = vshrl.u32 %v4073, 7
        %v4075 = vsub.s32 2, %v4074
        %v4076 = vrot.slane %v4072, %v4075
        %v4077 = vmul.f32 %v4051, %v4076
        %v4078 = vmul.f32 %v4060, %v4072
        %v4080 = vrot.slane %v4078, 7
        %v4082 = vsub.f32 %v3878, %v4080
        %v4083 = vlaneseq
        %v4084 = vshrl.u32 %v4083, 7
        %v4085 = vsub.s32 3, %v4084
        %v4086 = vrot.slane %v4082, %v4085
        %v4087 = vadd.f32 %v4077, %v4086
        %v4088 = vmax.f32 %v4087, 0.0
        %v4089 = vlaneseq
        %v4090 = vshrl.u32 %v4089, 7
        %v4091 = vsub.s32 4, %v4090
        %v4092 = vrot.slane %v3878, %v4091
        %4093 = vmatprep.subr.mxu0 0.0
        %4094 = vmatpush1.msra.mxu0 %v3829
        %4095 = vmatprep.subr.mxu0 0.0
        %4096 = vmatpush1.msra.mxu0 %v3830
        %4097 = vmatprep.subr.mxu0 0.0
        %4098 = vmatpush1.msra.mxu0 %v3831
        %4099 = vmatprep.subr.mxu0 0.0
        %4100 = vmatpush1.msra.mxu0 %v3832
        %4101 = vmatprep.subr.mxu0 0.0
        %4102 = vmatpush1.msra.mxu0 %v3833
        %4103 = vmatprep.subr.mxu0 0.0
        %4104 = vmatpush1.msra.mxu0 %v3834
        %4105 = vmatprep.subr.mxu0 0.0
        %4106 = vmatpush1.msra.mxu0 %v3835
        %4107 = vmatprep.subr.mxu0 0.0
        %4108 = vmatpush1.msra.mxu0 %v3836
        %4109 = vmatprep.subr.mxu0 0.0
        %4110 = vmatpush1.msra.mxu0 %v3837
        %4111 = vmatprep.subr.mxu0 0.0
        %4112 = vmatpush1.msra.mxu0 %v3838
        %4113 = vmatprep.subr.mxu0 0.0
        %4114 = vmatpush1.msra.mxu0 %v3839
        %4115 = vmatprep.subr.mxu0 0.0
        %4116 = vmatpush1.msra.mxu0 %v3840
        %4117 = vmatprep.subr.mxu0 0.0
        %4118 = vmatpush1.msra.mxu0 %v3841
        %4119 = vmatprep.subr.mxu0 0.0
        %4120 = vmatpush1.msra.mxu0 %v3842
        %4121 = vmatprep.subr.mxu0 0.0
        %4122 = vmatpush1.msra.mxu0 %v3843
        %4123 = vmatprep.subr.mxu0 0.0
        %4124 = vmatpush1.msra.mxu0 %v3844
        %4125 = vmatprep.subr.mxu0 0.0
        %4126 = vmatpush1.msra.mxu0 0.0
        %4127 = vmatprep.subr.mxu0 0.0
        %4128 = vmatpush1.msra.mxu0 0.0
        %4129 = vmatprep.subr.mxu0 0.0
        %4130 = vmatpush1.msra.mxu0 0.0
        %4131 = vmatprep.subr.mxu0 0.0
        %4132 = vmatpush1.msra.mxu0 0.0
        %4133 = vmatprep.subr.mxu0 0.0
        %4134 = vmatpush1.msra.mxu0 0.0
        %4135 = vmatprep.subr.mxu0 0.0
        %4136 = vmatpush1.msra.mxu0 0.0
        %4137 = vmatprep.subr.mxu0 0.0
        %4138 = vmatpush1.msra.mxu0 0.0
        %4139 = vmatprep.subr.mxu0 0.0
        %4140 = vmatpush1.msra.mxu0 0.0
        %4141 = vmatprep.subr.mxu0 0.0
        %4142 = vmatpush1.msra.mxu0 0.0
        %4143 = vmatprep.subr.mxu0 0.0
        %4144 = vmatpush1.msra.mxu0 0.0
        %4145 = vmatprep.subr.mxu0 0.0
        %4146 = vmatpush1.msra.mxu0 0.0
        %4147 = vmatprep.subr.mxu0 0.0
        %4148 = vmatpush1.msra.mxu0 0.0
        %4149 = vmatprep.subr.mxu0 0.0
        %4150 = vmatpush1.msra.mxu0 0.0
        %4151 = vmatprep.subr.mxu0 0.0
        %4152 = vmatpush1.msra.mxu0 0.0
        %4153 = vmatprep.subr.mxu0 0.0
        %4154 = vmatpush1.msra.mxu0 0.0
        %4155 = vmatprep.subr.mxu0 0.0
        %4156 = vmatpush1.msra.mxu0 0.0
        %4157 = vmatprep.mubr.f32.mxu0 0.0
        %4158 = vmatmul.mubr.f32.gmra.mrb[0].mxu0 %v4088
        %v4159 = vpop.f32.mrb[0].mxu0
        %v4160 = vadd.f32 %v4092, %v4159
        %v4161 = vpop.f32.mrb[0].mxu0
        %4162 = vdwg.mxu0
        %v4163 = vrot.slane %v4160, 4
        %v4164 = vadd.f32 %v4160, %v4163
        %v4165 = vrot.slane %v4164, 2
        %v4166 = vadd.f32 %v4164, %v4165
        %v4167 = vrot.slane %v4166, 1
        %v4168 = vadd.f32 %v4166, %v4167
        %v4169 = vmul.f32 %v4168, %v3384
        %v4170 = vsub.f32 %v4160, %v4169
        %v4171 = vmul.f32 %v4170, %v4170
        %v4172 = vrot.slane %v4171, 4
        %v4173 = vadd.f32 %v4171, %v4172
        %v4174 = vrot.slane %v4173, 2
        %v4175 = vadd.f32 %v4173, %v4174
        %v4176 = vrot.slane %v4175, 1
        %v4177 = vadd.f32 %v4175, %v4176
        %v4178 = vmul.f32 %v4177, %v3384
        %v4179 = vadd.f32 %v4178, 1e-05
        %v4180 = vrsqrt.pop %v4179
        %v4181 = vmul.f32 %v4160, %v4180
        %v4182 = vmul.f32 %v4169, %v4180
        %v4183 = vsub.f32 0.0, %v4182
        %v4184 = vadd.f32 %v4181, %v4183
        %4185 = vmatprep.subr.mxu0 0.0
        %4186 = vmatpush1.msra.mxu0 %v3845
        %4187 = vmatprep.subr.mxu0 0.0
        %4188 = vmatpush1.msra.mxu0 %v3846
        %4189 = vmatprep.subr.mxu0 0.0
        %4190 = vmatpush1.msra.mxu0 %v3847
        %4191 = vmatprep.subr.mxu0 0.0
        %4192 = vmatpush1.msra.mxu0 %v3848
        %4193 = vmatprep.subr.mxu0 0.0
        %4194 = vmatpush1.msra.mxu0 %v3849
        %4195 = vmatprep.subr.mxu0 0.0
        %4196 = vmatpush1.msra.mxu0 %v3850
        %4197 = vmatprep.subr.mxu0 0.0
        %4198 = vmatpush1.msra.mxu0 %v3851
        %4199 = vmatprep.subr.mxu0 0.0
        %4200 = vmatpush1.msra.mxu0 %v3852
        %4201 = vmatprep.subr.mxu0 0.0
        %4202 = vmatpush1.msra.mxu0 %v3853
        %4203 = vmatprep.subr.mxu0 0.0
        %4204 = vmatpush1.msra.mxu0 %v3854
        %4205 = vmatprep.subr.mxu0 0.0
        %4206 = vmatpush1.msra.mxu0 %v3855
        %4207 = vmatprep.subr.mxu0 0.0
        %4208 = vmatpush1.msra.mxu0 %v3856
        %4209 = vmatprep.subr.mxu0 0.0
        %4210 = vmatpush1.msra.mxu0 %v3857
        %4211 = vmatprep.subr.mxu0 0.0
        %4212 = vmatpush1.msra.mxu0 %v3858
        %4213 = vmatprep.subr.mxu0 0.0
        %4214 = vmatpush1.msra.mxu0 %v3859
        %4215 = vmatprep.subr.mxu0 0.0
        %4216 = vmatpush1.msra.mxu0 %v3860
        %4217 = vmatprep.subr.mxu0 0.0
        %4218 = vmatpush1.msra.mxu0 0.0
        %4219 = vmatprep.subr.mxu0 0.0
        %4220 = vmatpush1.msra.mxu0 0.0
        %4221 = vmatprep.subr.mxu0 0.0
        %4222 = vmatpush1.msra.mxu0 0.0
        %4223 = vmatprep.subr.mxu0 0.0
        %4224 = vmatpush1.msra.mxu0 0.0
        %4225 = vmatprep.subr.mxu0 0.0
        %4226 = vmatpush1.msra.mxu0 0.0
        %4227 = vmatprep.subr.mxu0 0.0
        %4228 = vmatpush1.msra.mxu0 0.0
        %4229 = vmatprep.subr.mxu0 0.0
        %4230 = vmatpush1.msra.mxu0 0.0
        %4231 = vmatprep.subr.mxu0 0.0
        %4232 = vmatpush1.msra.mxu0 0.0
        %4233 = vmatprep.subr.mxu0 0.0
        %4234 = vmatpush1.msra.mxu0 0.0
        %4235 = vmatprep.subr.mxu0 0.0
        %4236 = vmatpush1.msra.mxu0 0.0
        %4237 = vmatprep.subr.mxu0 0.0
        %4238 = vmatpush1.msra.mxu0 0.0
        %4239 = vmatprep.subr.mxu0 0.0
        %4240 = vmatpush1.msra.mxu0 0.0
        %4241 = vmatprep.subr.mxu0 0.0
        %4242 = vmatpush1.msra.mxu0 0.0
        %4243 = vmatprep.subr.mxu0 0.0
        %4244 = vmatpush1.msra.mxu0 0.0
        %4245 = vmatprep.subr.mxu0 0.0
        %4246 = vmatpush1.msra.mxu0 0.0
        %4247 = vmatprep.subr.mxu0 0.0
        %4248 = vmatpush1.msra.mxu0 0.0
        %4249 = vmatprep.mubr.f32.mxu0 0.0
        %4250 = vmatmul.mubr.f32.gmra.mrb[0].mxu0 %v4184
        %v4251 = vpop.f32.mrb[0].mxu0
        %v4252 = vadd.f32 0.0, %v4251
        %v4253 = vpop.f32.mrb[0].mxu0
        %4254 = vdwg.mxu0
        %v4255 = vrot.slane %v4252, 4
        %v4256 = vadd.f32 %v4252, %v4255
        %v4257 = vrot.slane %v4256, 2
        %v4258 = vadd.f32 %v4256, %v4257
        %v4259 = vrot.slane %v4258, 1
        %v4260 = vadd.f32 %v4258, %v4259
        %v4261 = vmul.f32 %v4260, %v3384
        %v4262 = vsub.f32 %v4252, %v4261
        %v4263 = vmul.f32 %v4262, %v4262
        %v4264 = vrot.slane %v4263, 4
        %v4265 = vadd.f32 %v4263, %v4264
        %v4266 = vrot.slane %v4265, 2
        %v4267 = vadd.f32 %v4265, %v4266
        %v4268 = vrot.slane %v4267, 1
        %v4269 = vadd.f32 %v4267, %v4268
        %v4270 = vmul.f32 %v4269, %v3384
        %v4271 = vadd.f32 %v4270, 1e-05
        %v4272 = vrsqrt.pop %v4271
        %v4273 = vmul.f32 %v4272, %v3878
        %v4274 = vlaneseq
        %v4275 = vshrl.u32 %v4274, 7
        %v4276 = vsub.s32 5, %v4275
        %v4277 = vrot.slane %v4273, %v4276
        %v4278 = vmul.f32 %v4252, %v4277
        %v4279 = vmul.f32 %v4261, %v4273
        %v4281 = vrot.slane %v4279, 7
        %v4283 = vsub.f32 %v3878, %v4281
        %v4284 = vlaneseq
        %v4285 = vshrl.u32 %v4284, 7
        %v4286 = vsub.s32 6, %v4285
        %v4287 = vrot.slane %v4283, %v4286
        %v4288 = vadd.f32 %v4278, %v4287
        %v4289 = vmax.f32 %v4288, 0.0
        %v4290 = vlaneseq
        %v4291 = vshrl.u32 %v4290, 7
        %v4292 = vsub.s32 7, %v4291
        %v4293 = vrot.slane %v3878, %v4292
        %4294 = vmatprep.subr.mxu0 0.0
        %4295 = vmatpush1.msra.mxu0 %v3861
        %4296 = vmatprep.subr.mxu0 0.0
        %4297 = vmatpush1.msra.mxu0 %v3862
        %4298 = vmatprep.subr.mxu0 0.0
        %4299 = vmatpush1.msra.mxu0 %v3863
        %4300 = vmatprep.subr.mxu0 0.0
        %4301 = vmatpush1.msra.mxu0 %v3864
        %4302 = vmatprep.subr.mxu0 0.0
        %4303 = vmatpush1.msra.mxu0 %v3865
        %4304 = vmatprep.subr.mxu0 0.0
        %4305 = vmatpush1.msra.mxu0 %v3866
        %4306 = vmatprep.subr.mxu0 0.0
        %4307 = vmatpush1.msra.mxu0 %v3867
        %4308 = vmatprep.subr.mxu0 0.0
        %4309 = vmatpush1.msra.mxu0 %v3868
        %4310 = vmatprep.subr.mxu0 0.0
        %4311 = vmatpush1.msra.mxu0 %v3869
        %4312 = vmatprep.subr.mxu0 0.0
        %4313 = vmatpush1.msra.mxu0 %v3870
        %4314 = vmatprep.subr.mxu0 0.0
        %4315 = vmatpush1.msra.mxu0 %v3871
        %4316 = vmatprep.subr.mxu0 0.0
        %4317 = vmatpush1.msra.mxu0 %v3872
        %4318 = vmatprep.subr.mxu0 0.0
        %4319 = vmatpush1.msra.mxu0 %v3873
        %4320 = vmatprep.subr.mxu0 0.0
        %4321 = vmatpush1.msra.mxu0 %v3874
        %4322 = vmatprep.subr.mxu0 0.0
        %4323 = vmatpush1.msra.mxu0 %v3875
        %4324 = vmatprep.subr.mxu0 0.0
        %4325 = vmatpush1.msra.mxu0 %v3876
        %4326 = vmatprep.subr.mxu0 0.0
        %4327 = vmatpush1.msra.mxu0 0.0
        %4328 = vmatprep.subr.mxu0 0.0
        %4329 = vmatpush1.msra.mxu0 0.0
        %4330 = vmatprep.subr.mxu0 0.0
        %4331 = vmatpush1.msra.mxu0 0.0
        %4332 = vmatprep.subr.mxu0 0.0
        %4333 = vmatpush1.msra.mxu0 0.0
        %4334 = vmatprep.subr.mxu0 0.0
        %4335 = vmatpush1.msra.mxu0 0.0
        %4336 = vmatprep.subr.mxu0 0.0
        %4337 = vmatpush1.msra.mxu0 0.0
        %4338 = vmatprep.subr.mxu0 0.0
        %4339 = vmatpush1.msra.mxu0 0.0
        %4340 = vmatprep.subr.mxu0 0.0
        %4341 = vmatpush1.msra.mxu0 0.0
        %4342 = vmatprep.subr.mxu0 0.0
        %4343 = vmatpush1.msra.mxu0 0.0
        %4344 = vmatprep.subr.mxu0 0.0
        %4345 = vmatpush1.msra.mxu0 0.0
        %4346 = vmatprep.subr.mxu0 0.0
        %4347 = vmatpush1.msra.mxu0 0.0
        %4348 = vmatprep.subr.mxu0 0.0
        %4349 = vmatpush1.msra.mxu0 0.0
        %4350 = vmatprep.subr.mxu0 0.0
        %4351 = vmatpush1.msra.mxu0 0.0
        %4352 = vmatprep.subr.mxu0 0.0
        %4353 = vmatpush1.msra.mxu0 0.0
        %4354 = vmatprep.subr.mxu0 0.0
        %4355 = vmatpush1.msra.mxu0 0.0
        %4356 = vmatprep.subr.mxu0 0.0
        %4357 = vmatpush1.msra.mxu0 0.0
        %4358 = vmatprep.mubr.f32.mxu0 0.0
        %4359 = vmatmul.mubr.f32.gmra.mrb[0].mxu0 %v4289
        %v4360 = vpop.f32.mrb[0].mxu0
        %v4361 = vadd.f32 %v4293, %v4360
        %v4362 = vpop.f32.mrb[0].mxu0
        %4363 = vdwg.mxu0
        %s4364 = scalar_lea.vmem %s247, 8 [#allocation2]
        %4365 = vst [vmem:[%s4364] sm:$0xff] %v4184
        %s4366 = scalar_lea.vmem %s253, 8 [#allocation3]
        %4367 = vst [vmem:[%s4366] sm:$0xff] %v4361
        %p4368 = scmp.lt.s32.totalorder %s18, 1
        %s4369 = scalar_select %p4368, %s18, 1
        %s4370 = smul.addr %s4369, 8
        %s4371 = scalar_lea.vmem %s4, %s4370
        %s4372 = sand.u32 %s141, 1
        %s4373 = sand.u32 %s141, 1
        %s4374 = smul.addr %s4373, 16
        %s4375 = scalar_lea.vmem [#allocation2], %s4374
        %s4376 = sand.u32 %s167, 1
        %s4377 = sand.u32 %s167, 1
        %s4378 = smul.addr %s4377, 16
        %s4379 = scalar_lea.vmem [#allocation3], %s4378
        // Predicated region
        $region37: #{drl_simsiam_forward.1} parent=35 // pred_check
          %p4380 = pneg %p125
        $region38: #{drl_simsiam_forward.1} parent=35 // pred_check_branch
          %4382 = sbr.rel (%p4380) target = $region40
        $region39: #{drl_simsiam_forward.1} parent=35 // pred_region
          _
        $region40: #{drl_simsiam_forward.1} parent=35 // pred_fallthru
          _
        // Predicated region
        $region41: #{drl_simsiam_forward.1} parent=35 // pred_check
          %p4383 = pneg %p151
        $region42: #{drl_simsiam_forward.1} parent=35 // pred_check_branch
          %4385 = sbr.rel (%p4383) target = $region44
        $region43: #{drl_simsiam_forward.1} parent=35 // pred_region
          %s4386 = smul.addr %s18, 8
          %s4387 = scalar_lea.vmem %s5, %s4386
          // Predicated region
          $region45: #{drl_simsiam_forward.1} parent=43 // pred_check
            _
          $region46: #{drl_simsiam_forward.1} parent=43 // pred_check_branch
            %4389 = sbr.rel (0) target = $region48
          $region47: #{drl_simsiam_forward.1} parent=43 // pred_region
            // Predicated region
            $region49: #{drl_simsiam_forward.1} parent=47 // pred_check
              _
            $region50: #{drl_simsiam_forward.1} parent=47 // pred_check_branch
              %4391 = sbr.rel (0) target = $region52
            $region51: #{drl_simsiam_forward.1} parent=47 // pred_region
              // Predicated region
              $region64: #{drl_simsiam_forward.1} parent=51 // pred_check
                _
              $region65: #{drl_simsiam_forward.1} parent=51 // pred_check_branch
                %4408 = sbr.rel (0) target = $region67
              $region66: #{drl_simsiam_forward.1} parent=51 // pred_region
                loop: start=0, step=1, limit=1
                $region68: #{drl_simsiam_forward.1} parent=66 // loop_pre_header
                  _
                $region69: #{drl_simsiam_forward.1} parent=66 // loop_header
                  %s4410 = sphi 0, %s4414
                  %p4411 = scmp.ge.s32.totalorder %s4410, 1
                  %s4415 = sphi %s4375, %s4375
                  %s4416 = sphi %s4387, %s4387
                $region70: #{drl_simsiam_forward.1} parent=66 // loop_header_branch
                  %4413 = sbr.rel (%p4411) target = $region74
                $region71: #{drl_simsiam_forward.1} parent=66 // loop_body
                  %v4417 = vld [vmem:[%s4415] sm:$0xff]
                  %4418 = vst [vmem:[%s4416] sm:$0xff] %v4417
                  %v4419 = vld [vmem:[%s4415 + $0x8] sm:$0xff]
                  %4420 = vst [vmem:[%s4416 + $0x10] sm:$0xff] %v4419
                $region72: #{drl_simsiam_forward.1} parent=66 // loop_footer
                  %s4414 = sadd.s32 1, %s4410
                $region73: #{drl_simsiam_forward.1} parent=66 // loop_footer_branch
                  %4409 = sbr.rel target = $region69
                $region74: #{drl_simsiam_forward.1} parent=66 // loop_exit
                  _
              $region67: #{drl_simsiam_forward.1} parent=51 // pred_fallthru
                _
              // Predicated region
              $region75: #{drl_simsiam_forward.1} parent=51 // pred_check
                _
              $region76: #{drl_simsiam_forward.1} parent=51 // pred_check_branch
                %4422 = sbr.rel target = $region78
              $region77: #{drl_simsiam_forward.1} parent=51 // pred_region
                _
              $region78: #{drl_simsiam_forward.1} parent=51 // pred_fallthru
                _
            $region52: #{drl_simsiam_forward.1} parent=47 // pred_fallthru
              _
            // Predicated region
            $region53: #{drl_simsiam_forward.1} parent=47 // pred_check
              _
            $region54: #{drl_simsiam_forward.1} parent=47 // pred_check_branch
              %4393 = sbr.rel target = $region56
            $region55: #{drl_simsiam_forward.1} parent=47 // pred_region
              loop: start=0, step=1, limit=1
              $region57: #{drl_simsiam_forward.1} parent=55 // loop_pre_header
                _
              $region58: #{drl_simsiam_forward.1} parent=55 // loop_header
                %s4396 = sphi 0, %s4400
                %p4397 = scmp.ge.s32.totalorder %s4396, 1
                %s4401 = sphi %s4375, %s4375
                %s4402 = sphi %s4387, %s4387
              $region59: #{drl_simsiam_forward.1} parent=55 // loop_header_branch
                %4399 = sbr.rel (%p4397) target = $region63
              $region60: #{drl_simsiam_forward.1} parent=55 // loop_body
                %v4403 = vld [vmem:[%s4401] sm:$0xff]
                %4404 = vst [vmem:[%s4402] sm:$0xff] %v4403
                %v4405 = vld [vmem:[%s4401 + $0x8] sm:$0xff]
                %4406 = vst [vmem:[%s4402 + $0x10] sm:$0xff] %v4405
              $region61: #{drl_simsiam_forward.1} parent=55 // loop_footer
                %s4400 = sadd.s32 1, %s4396
              $region62: #{drl_simsiam_forward.1} parent=55 // loop_footer_branch
                %4395 = sbr.rel target = $region58
              $region63: #{drl_simsiam_forward.1} parent=55 // loop_exit
                _
            $region56: #{drl_simsiam_forward.1} parent=47 // pred_fallthru
              _
          $region48: #{drl_simsiam_forward.1} parent=43 // pred_fallthru
            _
          %4423 = vnop
        $region44: #{drl_simsiam_forward.1} parent=35 // pred_fallthru
          _
        // Predicated region
        $region79: #{drl_simsiam_forward.1} parent=35 // pred_check
          %p4424 = pneg %p177
        $region80: #{drl_simsiam_forward.1} parent=35 // pred_check_branch
          %4426 = sbr.rel (%p4424) target = $region82
        $region81: #{drl_simsiam_forward.1} parent=35 // pred_region
          %s4427 = smul.addr %s18, 8
          %s4428 = scalar_lea.vmem %s6, %s4427
          // Predicated region
          $region83: #{drl_simsiam_forward.1} parent=81 // pred_check
            _
          $region84: #{drl_simsiam_forward.1} parent=81 // pred_check_branch
            %4430 = sbr.rel (0) target = $region86
          $region85: #{drl_simsiam_forward.1} parent=81 // pred_region
            // Predicated region
            $region87: #{drl_simsiam_forward.1} parent=85 // pred_check
              _
            $region88: #{drl_simsiam_forward.1} parent=85 // pred_check_branch
              %4432 = sbr.rel (0) target = $region90
            $region89: #{drl_simsiam_forward.1} parent=85 // pred_region
              // Predicated region
              $region102: #{drl_simsiam_forward.1} parent=89 // pred_check
                _
              $region103: #{drl_simsiam_forward.1} parent=89 // pred_check_branch
                %4449 = sbr.rel (0) target = $region105
              $region104: #{drl_simsiam_forward.1} parent=89 // pred_region
                loop: start=0, step=1, limit=1
                $region106: #{drl_simsiam_forward.1} parent=104 // loop_pre_header
                  _
                $region107: #{drl_simsiam_forward.1} parent=104 // loop_header
                  %s4451 = sphi 0, %s4455
                  %p4452 = scmp.ge.s32.totalorder %s4451, 1
                  %s4456 = sphi %s4379, %s4379
                  %s4457 = sphi %s4428, %s4428
                $region108: #{drl_simsiam_forward.1} parent=104 // loop_header_branch
                  %4454 = sbr.rel (%p4452) target = $region112
                $region109: #{drl_simsiam_forward.1} parent=104 // loop_body
                  %v4458 = vld [vmem:[%s4456] sm:$0xff]
                  %4459 = vst [vmem:[%s4457] sm:$0xff] %v4458
                  %v4460 = vld [vmem:[%s4456 + $0x8] sm:$0xff]
                  %4461 = vst [vmem:[%s4457 + $0x10] sm:$0xff] %v4460
                $region110: #{drl_simsiam_forward.1} parent=104 // loop_footer
                  %s4455 = sadd.s32 1, %s4451
                $region111: #{drl_simsiam_forward.1} parent=104 // loop_footer_branch
                  %4450 = sbr.rel target = $region107
                $region112: #{drl_simsiam_forward.1} parent=104 // loop_exit
                  _
              $region105: #{drl_simsiam_forward.1} parent=89 // pred_fallthru
                _
              // Predicated region
              $region113: #{drl_simsiam_forward.1} parent=89 // pred_check
                _
              $region114: #{drl_simsiam_forward.1} parent=89 // pred_check_branch
                %4463 = sbr.rel target = $region116
              $region115: #{drl_simsiam_forward.1} parent=89 // pred_region
                _
              $region116: #{drl_simsiam_forward.1} parent=89 // pred_fallthru
                _
            $region90: #{drl_simsiam_forward.1} parent=85 // pred_fallthru
              _
            // Predicated region
            $region91: #{drl_simsiam_forward.1} parent=85 // pred_check
              _
            $region92: #{drl_simsiam_forward.1} parent=85 // pred_check_branch
              %4434 = sbr.rel target = $region94
            $region93: #{drl_simsiam_forward.1} parent=85 // pred_region
              loop: start=0, step=1, limit=1
              $region95: #{drl_simsiam_forward.1} parent=93 // loop_pre_header
                _
              $region96: #{drl_simsiam_forward.1} parent=93 // loop_header
                %s4437 = sphi 0, %s4441
                %p4438 = scmp.ge.s32.totalorder %s4437, 1
                %s4442 = sphi %s4379, %s4379
                %s4443 = sphi %s4428, %s4428
              $region97: #{drl_simsiam_forward.1} parent=93 // loop_header_branch
                %4440 = sbr.rel (%p4438) target = $region101
              $region98: #{drl_simsiam_forward.1} parent=93 // loop_body
                %v4444 = vld [vmem:[%s4442] sm:$0xff]
                %4445 = vst [vmem:[%s4443] sm:$0xff] %v4444
                %v4446 = vld [vmem:[%s4442 + $0x8] sm:$0xff]
                %4447 = vst [vmem:[%s4443 + $0x10] sm:$0xff] %v4446
              $region99: #{drl_simsiam_forward.1} parent=93 // loop_footer
                %s4441 = sadd.s32 1, %s4437
              $region100: #{drl_simsiam_forward.1} parent=93 // loop_footer_branch
                %4436 = sbr.rel target = $region96
              $region101: #{drl_simsiam_forward.1} parent=93 // loop_exit
                _
            $region94: #{drl_simsiam_forward.1} parent=85 // pred_fallthru
              _
          $region86: #{drl_simsiam_forward.1} parent=81 // pred_fallthru
            _
          %4464 = vnop
        $region82: #{drl_simsiam_forward.1} parent=35 // pred_fallthru
          _
      $region36: #{drl_simsiam_forward.1} parent=5 // pred_fallthru
        _
      %p4465 = scmp.le.s32.totalorder 2, %s13
      // Predicated region
      $region117: #{drl_simsiam_forward.1} parent=5 // pred_check
        %p4466 = pneg %p4465
      $region118: #{drl_simsiam_forward.1} parent=5 // pred_check_branch
        %4468 = sbr.rel (%p4466) target = $region120
      $region119: #{drl_simsiam_forward.1} parent=5 // pred_region
        %s4469 = ssub.s32 %s13, 2
        // Predicated region
        $region121: #{drl_simsiam_forward.1} parent=119 // pred_check
          %p4470 = pneg %p131
        $region122: #{drl_simsiam_forward.1} parent=119 // pred_check_branch
          %4472 = sbr.rel (%p4470) target = $region124
        $region123: #{drl_simsiam_forward.1} parent=119 // pred_region
          %p4473 = scmp.lt.s32.totalorder %s19, 1
          %s4474 = scalar_select %p4473, %s19, 1
          %s4475 = smul.addr %s4474, 8
          %s4476 = scalar_lea.vmem %s4, %s4475
        $region124: #{drl_simsiam_forward.1} parent=119 // pred_fallthru
          _
        // Predicated region
        $region125: #{drl_simsiam_forward.1} parent=119 // pred_check
          %p4477 = pneg %p157
        $region126: #{drl_simsiam_forward.1} parent=119 // pred_check_branch
          %4479 = sbr.rel (%p4477) target = $region128
        $region127: #{drl_simsiam_forward.1} parent=119 // pred_region
          %s4480 = sand.u32 %s142, 1
          %s4481 = sand.u32 %s142, 1
          %s4482 = smul.addr %s4481, 16
          %s4483 = scalar_lea.vmem [#allocation2], %s4482
        $region128: #{drl_simsiam_forward.1} parent=119 // pred_fallthru
          _
        // Predicated region
        $region129: #{drl_simsiam_forward.1} parent=119 // pred_check
          %p4484 = pneg %p183
        $region130: #{drl_simsiam_forward.1} parent=119 // pred_check_branch
          %4486 = sbr.rel (%p4484) target = $region132
        $region131: #{drl_simsiam_forward.1} parent=119 // pred_region
          %s4487 = sand.u32 %s168, 1
          %s4488 = sand.u32 %s168, 1
          %s4489 = smul.addr %s4488, 16
          %s4490 = scalar_lea.vmem [#allocation3], %s4489
        $region132: #{drl_simsiam_forward.1} parent=119 // pred_fallthru
          _
      $region120: #{drl_simsiam_forward.1} parent=5 // pred_fallthru
        _
    $region6: #{drl_simsiam_forward.1} parent=1 // loop_footer
      %s17 = sadd.s32 1, %s13
    $region7: #{drl_simsiam_forward.1} parent=1 // loop_footer_branch
      %12 = sbr.rel target = $region3
    $region8: #{drl_simsiam_forward.1} parent=1 // loop_exit
      _

</llo_original>
